<compile_context>
chip_gen: v6e
topology: v6e:2x2x1
jax: 0.10.0
libtpu: 0.0.40
codegen_flags: <defaults>
</compile_context>

<pallas_src>
import functools
import math

import jax
import jax.numpy as jnp
from jax.experimental import pallas as pl
from jax.experimental.pallas import tpu as pltpu


def eca_kernel_size(c, b=1, gamma=2):
    """Kernel size used by EfficientChannelAttention(c)."""
    t = int(abs((math.log(c, 2) + b) / gamma))
    return t if t % 2 else t + 1


# ------------------------------- kernel --------------------------------------


def resblock_kernel(x_ref, w1_ref, g1_ref, eca_ref, w2_ref, g2_ref, vec_ref,
                    o_ref, *, H, W, Nb):
    C = x_ref.shape[1]
    HW = H * W
    L = Nb * HW

    # Load the Nb per-sample (C, HW) tiles and place them side by side along
    # the lane axis -> one lane-dense (C, L) working slab (upcast after load).
    if Nb == 1:
        x = x_ref[0].astype(jnp.float32)
    else:
        x = jnp.concatenate(
            [x_ref[n].astype(jnp.float32) for n in range(Nb)], axis=1)

    # Reflect-padding edge masks: channel-invariant, so build them once from a
    # (1, L) iota and broadcast to (C, L) a single time (reused by both convs).
    pos = jax.lax.broadcasted_iota(jnp.int32, (1, L), 1) % HW   # within-sample
    col = pos % W
    row0 = jnp.broadcast_to(pos < W, (C, L))         # first image row
    rowL = jnp.broadcast_to(pos >= HW - W, (C, L))   # last image row
    col0 = jnp.broadcast_to(col == 0, (C, L))        # first image column
    colL = jnp.broadcast_to(col == W - 1, (C, L))    # last image column

    def shift(v, s):
        # result[p] = v[(p + s) mod L]   (pure lane rotation on the XLU)
        return pltpu.roll(v, shift=(-s) % L, axis=1)

    def conv3x3(v, w_ref, bias_col):
        # 3x3 conv with ReflectionPad2d(1) as 9 accumulated (C,C)x(C,L) MXU
        # matmuls over reflect-shifted taps; no im2col slab is materialized.
        # The edge masks guarantee values rolled across image / sample
        # boundaries are never selected.  MXU inputs are bf16, acc stays f32.
        v_up = shift(v, -W)                          # source row i-1
        v_dn = shift(v, W)                           # source row i+1
        r_m1 = jnp.where(row0, v_dn, v_up)           # row offset -1 (reflect)
        r_p1 = jnp.where(rowL, v_up, v_dn)           # row offset +1 (reflect)
        acc = None
        t = 0
        for z in (r_m1, v, r_p1):                    # row offsets -1, 0, +1
            z_l = shift(z, -1)                       # source col j-1
            z_r = shift(z, 1)                        # source col j+1
            for tap in (jnp.where(col0, z_r, z_l),   # col offset -1 (reflect)
                        z,                           # col offset  0
                        jnp.where(colL, z_l, z_r)):  # col offset +1 (reflect)
                d = jnp.dot(w_ref[t], tap.astype(jnp.bfloat16),
                            preferred_element_type=jnp.float32)
                acc = d if acc is None else acc + d
                t += 1
        return acc + bias_col

    def igdn(v, gamma, beta_col):
        # inverse GDN: y = x * sqrt(beta + gamma @ x^2).  GDN's parameter
        # contract is beta, gamma >= 0, so the sqrt argument is non-negative
        # for any valid checkpoint (no clamp, to stay in parity with the
        # unclamped reference).  Kept in f32 (precision-sensitive path).
        norm = jnp.dot(gamma, v * v,
                       preferred_element_type=jnp.float32) + beta_col
        return v * jnp.sqrt(norm)

    c1b = vec_ref[:, 0:1]
    g1b = vec_ref[:, 1:2]
    c2b = vec_ref[:, 2:3]
    g2b = vec_ref[:, 3:4]
    alpha = vec_ref[:, 4:5]

    y = conv3x3(x, w1_ref, c1b)
    y = igdn(y, g1_ref[...], g1b)
    y = jnp.where(y >= 0.0, y, alpha * y)            # PReLU (single parameter)

    # ECA, pool-first form: sigmoid(band @ GAP(y)) == sigmoid(mean(band @ y))
    # by linearity.  Pooling is per sample, so gate each sample's lane range.
    pieces = []
    for n in range(Nb):
        yn = y[:, n * HW:(n + 1) * HW]
        pooled = jnp.mean(yn, axis=1, keepdims=True)                 # (C, 1)
        att = jnp.dot(eca_ref[...], pooled,
                      preferred_element_type=jnp.float32)            # (C, 1)
        pieces.append(yn * jax.nn.sigmoid(att))
    y = pieces[0] if Nb == 1 else jnp.concatenate(pieces, axis=1)

    y = conv3x3(y, w2_ref, c2b)
    y = igdn(y, g2_ref[...], g2b)

    out = x + y                                      # residual connection
    for n in range(Nb):
        o_ref[n] = out[:, n * HW:(n + 1) * HW].astype(o_ref.dtype)


# ------------------------------- wrapper --------------------------------------


@jax.jit
def decoding_res_block(x_nchw, params):
    """Pallas implementation of DecodingResBlock.forward.

    Input/output are NCHW in the caller's dtype (no wrapper-side astype copy).
    """
    N, C, H, W = x_nchw.shape
    HW = H * W
    k = eca_kernel_size(C)
    x = x_nchw.reshape(N, C, HW)           # free layout change, native dtype

    # Fold batch samples into the lane axis until the matmul RHS is >= 1024
    # lanes (amortizes the weight-stationary MXU side and the ~0.35 us fixed
    # per-step overhead).  At production spatial sizes (HW >= 1024) this
    # degenerates to one sample per grid step, and the batch grid then feeds
    # v7x megacore via dimension_semantics=("parallel",).
    nb = 1
    while nb < N and N % (nb * 2) == 0 and nb * HW < 1024:
        nb *= 2

    # conv weights HWIO (3,3,Cin,Cout) -> (9, Cout, Cin) with (kh, kw)
    # row-major tap order, pre-cast to bf16 for the MXU.
    def pack_w(w_hwio):
        return jnp.transpose(w_hwio, (0, 1, 3, 2)).reshape(
            9, C, C).astype(jnp.bfloat16)

    w1p = pack_w(params["c1w"])
    w2p = pack_w(params["c2w"])

    # ECA zero-padded conv1d (size k) as a (C, C) band matrix (f32).
    half = k // 2
    eca_band = jnp.zeros((C, C), jnp.float32)
    for t in range(k):
        eca_band = eca_band + params["ew"][0, t] * jnp.eye(
            C, k=t - half, dtype=jnp.float32)

    # All tiny per-channel params packed into one (C, 8) tile (cols 5..7 pad).
    vec = jnp.stack([
        params["c1b"].reshape(C),
        params["g1b"].reshape(C),
        params["c2b"].reshape(C),
        params["g2b"].reshape(C),
        jnp.full((C,), params["pa"].reshape(())),
        jnp.zeros((C,), jnp.float32),
        jnp.zeros((C,), jnp.float32),
        jnp.zeros((C,), jnp.float32),
    ], axis=1).astype(jnp.float32)

    def full_spec(shape):
        nd = len(shape)
        return pl.BlockSpec(shape, lambda i, nd=nd: (0,) * nd)

    kernel = functools.partial(resblock_kernel, H=H, W=W, Nb=nb)
    out = pl.pallas_call(
        kernel,
        out_shape=jax.ShapeDtypeStruct((N, C, HW), x.dtype),
        grid=(N // nb,),
        in_specs=[
            pl.BlockSpec((nb, C, HW), lambda i: (i, 0, 0)),   # x
            full_spec((9, C, C)),    # conv1 weights, per-tap (bf16)
            full_spec((C, C)),       # IGDN1 gamma (f32)
            full_spec((C, C)),       # ECA band matrix (f32)
            full_spec((9, C, C)),    # conv2 weights, per-tap (bf16)
            full_spec((C, C)),       # IGDN2 gamma (f32)
            full_spec((C, 8)),       # packed biases / betas / PReLU alpha
        ],
        out_specs=pl.BlockSpec((nb, C, HW), lambda i: (i, 0, 0)),
        input_output_aliases={0: 0},                # out = x + y, same buffer
        compiler_params=pltpu.CompilerParams(
            dimension_semantics=("parallel",)),     # megacore over batch
    )(x, w1p, params["g1g"].astype(jnp.float32), eca_band, w2p,
      params["g2g"].astype(jnp.float32), vec)
    return out.reshape(N, C, H, W)


# ------------------------------ reference -------------------------------------


def reference(x_nchw, params, k):
    """Pure-JAX f32 reference (independent formulation) for correctness."""
    x = x_nchw.astype(jnp.float32)

    def conv3x3(v, w_hwio, b):
        vp = jnp.pad(v, ((0, 0), (0, 0), (1, 1), (1, 1)), mode="reflect")
        out = jax.lax.conv_general_dilated(
            vp, w_hwio, window_strides=(1, 1), padding="VALID",
            dimension_numbers=("NCHW", "HWIO", "NCHW"))
        return out + b.reshape(1, -1, 1, 1)

    def igdn(v, gamma, beta):
        norm = jnp.einsum("nchw,dc->ndhw", v * v, gamma) + beta.reshape(1, -1, 1, 1)
        return v * jnp.sqrt(norm)

    def eca(v, w, k):
        N, C, H, W = v.shape
        pooled = v.mean(axis=(2, 3))                       # (N, C)
        half = k // 2
        pp = jnp.pad(pooled, ((0, 0), (half, half)))
        att = sum(w[0, t] * pp[:, t:t + C] for t in range(k))
        return v * jax.nn.sigmoid(att)[:, :, None, None]

    y = conv3x3(x, params["c1w"], params["c1b"])
    y = igdn(y, params["g1g"], params["g1b"])
    alpha = params["pa"].reshape(())
    y = jnp.where(y >= 0.0, y, alpha * y)
    y = eca(y, params["ew"], k)
    y = conv3x3(y, params["c2w"], params["c2b"])
    y = igdn(y, params["g2g"], params["g2b"])
    return x + y


# -------------------------------- main ----------------------------------------

if __name__ == "__main__":
    N, C, H, W = 2, 8, 16, 16          # small synthetic shapes
    k = eca_kernel_size(C)             # = 3 for C = 8

    key = jax.random.PRNGKey(0)
    kx, k1, k2, k3, k4, k5 = jax.random.split(key, 6)
    x = jax.random.normal(kx, (N, C, H, W), jnp.float32)

    # Deterministic synthetic parameters (conv weights stored as HWIO).
    params = {
        "c1w": 0.1 * jax.random.normal(k1, (3, 3, C, C), jnp.float32),
        "c1b": 0.1 * jax.random.normal(k2, (1, C), jnp.float32),
        "g1b": jnp.ones((1, C), jnp.float32),                       # GDN beta
        "g1g": 0.1 * jnp.eye(C, dtype=jnp.float32) + 0.01,          # GDN gamma
        "pa": jnp.full((1, 1), 0.25, jnp.float32),                  # PReLU init
        "ew": 0.1 * jax.random.normal(k3, (1, k), jnp.float32),     # ECA conv1d
        "c2w": 0.1 * jax.random.normal(k4, (3, 3, C, C), jnp.float32),
        "c2b": 0.1 * jax.random.normal(k5, (1, C), jnp.float32),
        "g2b": jnp.ones((1, C), jnp.float32),
        "g2g": 0.1 * jnp.eye(C, dtype=jnp.float32) + 0.01,
    }

    out = decoding_res_block(x, params)
    out = jax.block_until_ready(out)

    ref = reference(x, params, k)
    assert out.shape == (N, C, H, W)
    max_err = float(jnp.max(jnp.abs(out - ref)))
    # bf16 MXU feed (f32 accumulation) -> tolerance relaxed from 1e-4 (pure
    # f32) to 5e-2; observed error is ~1e-2 at these magnitudes.
    assert max_err < 5e-2, f"mismatch vs reference: {max_err}"

    print("KERNEL_OK")
</pallas_src>

<mosaic_0001>
module attributes {stable_mosaic.version = 11 : i64} {
  func.func @resblock_kernel(%arg0: i32, %arg1: memref<2x8x256xf32, #tpu.memory_space<vmem>>, %arg2: memref<9x8x8xbf16, #tpu.memory_space<vmem>>, %arg3: memref<8x8xf32, #tpu.memory_space<vmem>>, %arg4: memref<8x8xf32, #tpu.memory_space<vmem>>, %arg5: memref<9x8x8xbf16, #tpu.memory_space<vmem>>, %arg6: memref<8x8xf32, #tpu.memory_space<vmem>>, %arg7: memref<8x8xf32, #tpu.memory_space<vmem>>, %arg8: memref<2x8x256xf32, #tpu.memory_space<vmem>>) attributes {dimension_semantics = [#tpu.dimension_semantics<parallel>], iteration_bounds = array<i64: 1>, scalar_prefetch = 0 : i64, scratch_operands = 0 : i64, tpu.core_type = #tpu.core_type<tc>, window_params = [{transform_indices = @transform_0, window_bounds = array<i64: 2, 8, 256>}, {pipeline_mode = #tpu.pipeline_mode<synchronous>, transform_indices = @transform_1, window_bounds = array<i64: 9, 8, 8>}, {pipeline_mode = #tpu.pipeline_mode<synchronous>, transform_indices = @transform_2, window_bounds = array<i64: 8, 8>}, {pipeline_mode = #tpu.pipeline_mode<synchronous>, transform_indices = @transform_3, window_bounds = array<i64: 8, 8>}, {pipeline_mode = #tpu.pipeline_mode<synchronous>, transform_indices = @transform_4, window_bounds = array<i64: 9, 8, 8>}, {pipeline_mode = #tpu.pipeline_mode<synchronous>, transform_indices = @transform_5, window_bounds = array<i64: 8, 8>}, {pipeline_mode = #tpu.pipeline_mode<synchronous>, transform_indices = @transform_6, window_bounds = array<i64: 8, 8>}, {transform_indices = @transform_7, window_bounds = array<i64: 2, 8, 256>}]} {
    %c0 = arith.constant 0 : index
    %c0_0 = arith.constant 0 : index
    %c0_1 = arith.constant 0 : index
    %0 = vector.load %arg1[%c0, %c0_0, %c0_1] : memref<2x8x256xf32, #tpu.memory_space<vmem>>, vector<1x8x256xf32>
    %1 = vector.shape_cast %0 : vector<1x8x256xf32> to vector<8x256xf32>
    %c1 = arith.constant 1 : index
    %c0_2 = arith.constant 0 : index
    %c0_3 = arith.constant 0 : index
    %2 = vector.load %arg1[%c1, %c0_2, %c0_3] : memref<2x8x256xf32, #tpu.memory_space<vmem>>, vector<1x8x256xf32>
    %3 = vector.shape_cast %2 : vector<1x8x256xf32> to vector<8x256xf32>
    %4 = tpu.concatenate %1, %3 in 1 : vector<8x256xf32>, vector<8x256xf32> -> vector<8x512xf32>
    %5 = tpu.iota {dimensions = array<i32: 1>} : vector<1x512xi32>
    %c256_i32 = arith.constant 256 : i32
    %c0_i32 = arith.constant 0 : i32
    %6 = arith.cmpi eq, %c256_i32, %c0_i32 : i32
    %c1_i32 = arith.constant 1 : i32
    %7 = arith.select %6, %c1_i32, %c256_i32 : i32
    %8 = vector.broadcast %7 : i32 to vector<1x512xi32>
    %9 = arith.remsi %5, %8 : vector<1x512xi32>
    %c0_i32_4 = arith.constant 0 : i32
    %10 = vector.broadcast %c0_i32_4 : i32 to vector<1x512xi32>
    %11 = arith.cmpi ne, %9, %10 : vector<1x512xi32>
    %c0_i32_5 = arith.constant 0 : i32
    %12 = vector.broadcast %c0_i32_5 : i32 to vector<1x512xi32>
    %13 = arith.cmpi slt, %9, %12 : vector<1x512xi32>
    %c0_i32_6 = arith.constant 0 : i32
    %14 = arith.cmpi slt, %7, %c0_i32_6 : i32
    %15 = vector.broadcast %14 : i1 to vector<1x512xi1>
    %16 = vector.broadcast %15 : vector<1x512xi1> to vector<1x512xi1>
    %17 = arith.xori %13, %16 : vector<1x512xi1>
    %18 = arith.andi %17, %11 : vector<1x512xi1>
    %19 = vector.broadcast %7 : i32 to vector<1x512xi32>
    %20 = arith.addi %9, %19 : vector<1x512xi32>
    %21 = arith.select %18, %20, %9 : vector<1x512xi1>, vector<1x512xi32>
    %c16_i32 = arith.constant 16 : i32
    %c0_i32_7 = arith.constant 0 : i32
    %22 = arith.cmpi eq, %c16_i32, %c0_i32_7 : i32
    %c1_i32_8 = arith.constant 1 : i32
    %23 = arith.select %22, %c1_i32_8, %c16_i32 : i32
    %24 = vector.broadcast %23 : i32 to vector<1x512xi32>
    %25 = arith.remsi %21, %24 : vector<1x512xi32>
    %c0_i32_9 = arith.constant 0 : i32
    %26 = vector.broadcast %c0_i32_9 : i32 to vector<1x512xi32>
    %27 = arith.cmpi ne, %25, %26 : vector<1x512xi32>
    %c0_i32_10 = arith.constant 0 : i32
    %28 = vector.broadcast %c0_i32_10 : i32 to vector<1x512xi32>
    %29 = arith.cmpi slt, %25, %28 : vector<1x512xi32>
    %c0_i32_11 = arith.constant 0 : i32
    %30 = arith.cmpi slt, %23, %c0_i32_11 : i32
    %31 = vector.broadcast %30 : i1 to vector<1x512xi1>
    %32 = vector.broadcast %31 : vector<1x512xi1> to vector<1x512xi1>
    %33 = arith.xori %29, %32 : vector<1x512xi1>
    %34 = arith.andi %33, %27 : vector<1x512xi1>
    %35 = vector.broadcast %23 : i32 to vector<1x512xi32>
    %36 = arith.addi %25, %35 : vector<1x512xi32>
    %37 = arith.select %34, %36, %25 : vector<1x512xi1>, vector<1x512xi32>
    %c16_i32_12 = arith.constant 16 : i32
    %38 = vector.broadcast %c16_i32_12 : i32 to vector<1x512xi32>
    %39 = arith.cmpi slt, %21, %38 : vector<1x512xi32>
    %40 = vector.shape_cast %39 : vector<1x512xi1> to vector<1x512xi1>
    %41 = vector.broadcast %40 : vector<1x512xi1> to vector<8x512xi1>
    %c240_i32 = arith.constant 240 : i32
    %42 = vector.broadcast %c240_i32 : i32 to vector<1x512xi32>
    %43 = arith.cmpi sge, %21, %42 : vector<1x512xi32>
    %44 = vector.shape_cast %43 : vector<1x512xi1> to vector<1x512xi1>
    %45 = vector.broadcast %44 : vector<1x512xi1> to vector<8x512xi1>
    %c0_i32_13 = arith.constant 0 : i32
    %46 = vector.broadcast %c0_i32_13 : i32 to vector<1x512xi32>
    %47 = arith.cmpi eq, %37, %46 : vector<1x512xi32>
    %48 = vector.shape_cast %47 : vector<1x512xi1> to vector<1x512xi1>
    %49 = vector.broadcast %48 : vector<1x512xi1> to vector<8x512xi1>
    %c15_i32 = arith.constant 15 : i32
    %50 = vector.broadcast %c15_i32 : i32 to vector<1x512xi32>
    %51 = arith.cmpi eq, %37, %50 : vector<1x512xi32>
    %52 = vector.shape_cast %51 : vector<1x512xi1> to vector<1x512xi1>
    %53 = vector.broadcast %52 : vector<1x512xi1> to vector<8x512xi1>
    %c0_14 = arith.constant 0 : index
    %c0_15 = arith.constant 0 : index
    %54 = vector.load %arg7[%c0_14, %c0_15] : memref<8x8xf32, #tpu.memory_space<vmem>>, vector<8x1xf32>
    %c0_16 = arith.constant 0 : index
    %c1_17 = arith.constant 1 : index
    %55 = vector.load %arg7[%c0_16, %c1_17] : memref<8x8xf32, #tpu.memory_space<vmem>>, vector<8x1xf32>
    %c0_18 = arith.constant 0 : index
    %c2 = arith.constant 2 : index
    %56 = vector.load %arg7[%c0_18, %c2] : memref<8x8xf32, #tpu.memory_space<vmem>>, vector<8x1xf32>
    %c0_19 = arith.constant 0 : index
    %c3 = arith.constant 3 : index
    %57 = vector.load %arg7[%c0_19, %c3] : memref<8x8xf32, #tpu.memory_space<vmem>>, vector<8x1xf32>
    %c0_20 = arith.constant 0 : index
    %c4 = arith.constant 4 : index
    %58 = vector.load %arg7[%c0_20, %c4] : memref<8x8xf32, #tpu.memory_space<vmem>>, vector<8x1xf32>
    %c16_i32_21 = arith.constant 16 : i32
    %59 = tpu.dynamic_rotate %4 by %c16_i32_21 dim 1 : vector<8x512xf32>, i32 -> vector<8x512xf32>
    %c496_i32 = arith.constant 496 : i32
    %60 = tpu.dynamic_rotate %4 by %c496_i32 dim 1 : vector<8x512xf32>, i32 -> vector<8x512xf32>
    %61 = arith.select %41, %60, %59 : vector<8x512xi1>, vector<8x512xf32>
    %62 = arith.select %45, %59, %60 : vector<8x512xi1>, vector<8x512xf32>
    %c1_i32_22 = arith.constant 1 : i32
    %63 = tpu.dynamic_rotate %61 by %c1_i32_22 dim 1 : vector<8x512xf32>, i32 -> vector<8x512xf32>
    %c511_i32 = arith.constant 511 : i32
    %64 = tpu.dynamic_rotate %61 by %c511_i32 dim 1 : vector<8x512xf32>, i32 -> vector<8x512xf32>
    %65 = arith.select %49, %64, %63 : vector<8x512xi1>, vector<8x512xf32>
    %66 = arith.select %53, %63, %64 : vector<8x512xi1>, vector<8x512xf32>
    %c0_23 = arith.constant 0 : index
    %c0_24 = arith.constant 0 : index
    %c0_25 = arith.constant 0 : index
    %67 = vector.load %arg2[%c0_23, %c0_24, %c0_25] : memref<9x8x8xbf16, #tpu.memory_space<vmem>>, vector<1x8x8xbf16>
    %68 = vector.shape_cast %67 : vector<1x8x8xbf16> to vector<8x8xbf16>
    %69 = arith.truncf %65 : vector<8x512xf32> to vector<8x512xbf16>
    %cst = arith.constant dense<0.000000e+00> : vector<8x512xf32>
    %70 = tpu.matmul %68, %69, %cst {dimension_numbers = #tpu.dot_dimension_numbers<[1], [0], [0], [1], [0, 0, 1, 1], [], []>} : vector<8x8xbf16>, vector<8x512xbf16>, vector<8x512xf32> -> vector<8x512xf32>
    %c1_26 = arith.constant 1 : index
    %c0_27 = arith.constant 0 : index
    %c0_28 = arith.constant 0 : index
    %71 = vector.load %arg2[%c1_26, %c0_27, %c0_28] : memref<9x8x8xbf16, #tpu.memory_space<vmem>>, vector<1x8x8xbf16>
    %72 = vector.shape_cast %71 : vector<1x8x8xbf16> to vector<8x8xbf16>
    %73 = arith.truncf %61 : vector<8x512xf32> to vector<8x512xbf16>
    %cst_29 = arith.constant dense<0.000000e+00> : vector<8x512xf32>
    %74 = tpu.matmul %72, %73, %cst_29 {dimension_numbers = #tpu.dot_dimension_numbers<[1], [0], [0], [1], [0, 0, 1, 1], [], []>} : vector<8x8xbf16>, vector<8x512xbf16>, vector<8x512xf32> -> vector<8x512xf32>
    %75 = arith.addf %70, %74 : vector<8x512xf32>
    %c2_30 = arith.constant 2 : index
    %c0_31 = arith.constant 0 : index
    %c0_32 = arith.constant 0 : index
    %76 = vector.load %arg2[%c2_30, %c0_31, %c0_32] : memref<9x8x8xbf16, #tpu.memory_space<vmem>>, vector<1x8x8xbf16>
    %77 = vector.shape_cast %76 : vector<1x8x8xbf16> to vector<8x8xbf16>
    %78 = arith.truncf %66 : vector<8x512xf32> to vector<8x512xbf16>
    %cst_33 = arith.constant dense<0.000000e+00> : vector<8x512xf32>
    %79 = tpu.matmul %77, %78, %cst_33 {dimension_numbers = #tpu.dot_dimension_numbers<[1], [0], [0], [1], [0, 0, 1, 1], [], []>} : vector<8x8xbf16>, vector<8x512xbf16>, vector<8x512xf32> -> vector<8x512xf32>
    %80 = arith.addf %75, %79 : vector<8x512xf32>
    %c1_i32_34 = arith.constant 1 : i32
    %81 = tpu.dynamic_rotate %4 by %c1_i32_34 dim 1 : vector<8x512xf32>, i32 -> vector<8x512xf32>
    %c511_i32_35 = arith.constant 511 : i32
    %82 = tpu.dynamic_rotate %4 by %c511_i32_35 dim 1 : vector<8x512xf32>, i32 -> vector<8x512xf32>
    %83 = arith.select %49, %82, %81 : vector<8x512xi1>, vector<8x512xf32>
    %84 = arith.select %53, %81, %82 : vector<8x512xi1>, vector<8x512xf32>
    %c3_36 = arith.constant 3 : index
    %c0_37 = arith.constant 0 : index
    %c0_38 = arith.constant 0 : index
    %85 = vector.load %arg2[%c3_36, %c0_37, %c0_38] : memref<9x8x8xbf16, #tpu.memory_space<vmem>>, vector<1x8x8xbf16>
    %86 = vector.shape_cast %85 : vector<1x8x8xbf16> to vector<8x8xbf16>
    %87 = arith.truncf %83 : vector<8x512xf32> to vector<8x512xbf16>
    %cst_39 = arith.constant dense<0.000000e+00> : vector<8x512xf32>
    %88 = tpu.matmul %86, %87, %cst_39 {dimension_numbers = #tpu.dot_dimension_numbers<[1], [0], [0], [1], [0, 0, 1, 1], [], []>} : vector<8x8xbf16>, vector<8x512xbf16>, vector<8x512xf32> -> vector<8x512xf32>
    %89 = arith.addf %80, %88 : vector<8x512xf32>
    %c4_40 = arith.constant 4 : index
    %c0_41 = arith.constant 0 : index
    %c0_42 = arith.constant 0 : index
    %90 = vector.load %arg2[%c4_40, %c0_41, %c0_42] : memref<9x8x8xbf16, #tpu.memory_space<vmem>>, vector<1x8x8xbf16>
    %91 = vector.shape_cast %90 : vector<1x8x8xbf16> to vector<8x8xbf16>
    %92 = arith.truncf %4 : vector<8x512xf32> to vector<8x512xbf16>
    %cst_43 = arith.constant dense<0.000000e+00> : vector<8x512xf32>
    %93 = tpu.matmul %91, %92, %cst_43 {dimension_numbers = #tpu.dot_dimension_numbers<[1], [0], [0], [1], [0, 0, 1, 1], [], []>} : vector<8x8xbf16>, vector<8x512xbf16>, vector<8x512xf32> -> vector<8x512xf32>
    %94 = arith.addf %89, %93 : vector<8x512xf32>
    %c5 = arith.constant 5 : index
    %c0_44 = arith.constant 0 : index
    %c0_45 = arith.constant 0 : index
    %95 = vector.load %arg2[%c5, %c0_44, %c0_45] : memref<9x8x8xbf16, #tpu.memory_space<vmem>>, vector<1x8x8xbf16>
    %96 = vector.shape_cast %95 : vector<1x8x8xbf16> to vector<8x8xbf16>
    %97 = arith.truncf %84 : vector<8x512xf32> to vector<8x512xbf16>
    %cst_46 = arith.constant dense<0.000000e+00> : vector<8x512xf32>
    %98 = tpu.matmul %96, %97, %cst_46 {dimension_numbers = #tpu.dot_dimension_numbers<[1], [0], [0], [1], [0, 0, 1, 1], [], []>} : vector<8x8xbf16>, vector<8x512xbf16>, vector<8x512xf32> -> vector<8x512xf32>
    %99 = arith.addf %94, %98 : vector<8x512xf32>
    %c1_i32_47 = arith.constant 1 : i32
    %100 = tpu.dynamic_rotate %62 by %c1_i32_47 dim 1 : vector<8x512xf32>, i32 -> vector<8x512xf32>
    %c511_i32_48 = arith.constant 511 : i32
    %101 = tpu.dynamic_rotate %62 by %c511_i32_48 dim 1 : vector<8x512xf32>, i32 -> vector<8x512xf32>
    %102 = arith.select %49, %101, %100 : vector<8x512xi1>, vector<8x512xf32>
    %103 = arith.select %53, %100, %101 : vector<8x512xi1>, vector<8x512xf32>
    %c6 = arith.constant 6 : index
    %c0_49 = arith.constant 0 : index
    %c0_50 = arith.constant 0 : index
    %104 = vector.load %arg2[%c6, %c0_49, %c0_50] : memref<9x8x8xbf16, #tpu.memory_space<vmem>>, vector<1x8x8xbf16>
    %105 = vector.shape_cast %104 : vector<1x8x8xbf16> to vector<8x8xbf16>
    %106 = arith.truncf %102 : vector<8x512xf32> to vector<8x512xbf16>
    %cst_51 = arith.constant dense<0.000000e+00> : vector<8x512xf32>
    %107 = tpu.matmul %105, %106, %cst_51 {dimension_numbers = #tpu.dot_dimension_numbers<[1], [0], [0], [1], [0, 0, 1, 1], [], []>} : vector<8x8xbf16>, vector<8x512xbf16>, vector<8x512xf32> -> vector<8x512xf32>
    %108 = arith.addf %99, %107 : vector<8x512xf32>
    %c7 = arith.constant 7 : index
    %c0_52 = arith.constant 0 : index
    %c0_53 = arith.constant 0 : index
    %109 = vector.load %arg2[%c7, %c0_52, %c0_53] : memref<9x8x8xbf16, #tpu.memory_space<vmem>>, vector<1x8x8xbf16>
    %110 = vector.shape_cast %109 : vector<1x8x8xbf16> to vector<8x8xbf16>
    %111 = arith.truncf %62 : vector<8x512xf32> to vector<8x512xbf16>
    %cst_54 = arith.constant dense<0.000000e+00> : vector<8x512xf32>
    %112 = tpu.matmul %110, %111, %cst_54 {dimension_numbers = #tpu.dot_dimension_numbers<[1], [0], [0], [1], [0, 0, 1, 1], [], []>} : vector<8x8xbf16>, vector<8x512xbf16>, vector<8x512xf32> -> vector<8x512xf32>
    %113 = arith.addf %108, %112 : vector<8x512xf32>
    %c8 = arith.constant 8 : index
    %c0_55 = arith.constant 0 : index
    %c0_56 = arith.constant 0 : index
    %114 = vector.load %arg2[%c8, %c0_55, %c0_56] : memref<9x8x8xbf16, #tpu.memory_space<vmem>>, vector<1x8x8xbf16>
    %115 = vector.shape_cast %114 : vector<1x8x8xbf16> to vector<8x8xbf16>
    %116 = arith.truncf %103 : vector<8x512xf32> to vector<8x512xbf16>
    %cst_57 = arith.constant dense<0.000000e+00> : vector<8x512xf32>
    %117 = tpu.matmul %115, %116, %cst_57 {dimension_numbers = #tpu.dot_dimension_numbers<[1], [0], [0], [1], [0, 0, 1, 1], [], []>} : vector<8x8xbf16>, vector<8x512xbf16>, vector<8x512xf32> -> vector<8x512xf32>
    %118 = arith.addf %113, %117 : vector<8x512xf32>
    %119 = vector.broadcast %54 : vector<8x1xf32> to vector<8x512xf32>
    %120 = arith.addf %118, %119 : vector<8x512xf32>
    %c0_58 = arith.constant 0 : index
    %c0_59 = arith.constant 0 : index
    %121 = vector.load %arg3[%c0_58, %c0_59] : memref<8x8xf32, #tpu.memory_space<vmem>>, vector<8x8xf32>
    %122 = arith.mulf %120, %120 : vector<8x512xf32>
    %cst_60 = arith.constant dense<0.000000e+00> : vector<8x512xf32>
    %123 = tpu.matmul %121, %122, %cst_60 {dimension_numbers = #tpu.dot_dimension_numbers<[1], [0], [0], [1], [0, 0, 1, 1], [], []>} : vector<8x8xf32>, vector<8x512xf32>, vector<8x512xf32> -> vector<8x512xf32>
    %124 = vector.broadcast %55 : vector<8x1xf32> to vector<8x512xf32>
    %125 = arith.addf %123, %124 : vector<8x512xf32>
    %126 = math.sqrt %125 : vector<8x512xf32>
    %127 = arith.mulf %120, %126 : vector<8x512xf32>
    %cst_61 = arith.constant 0.000000e+00 : f32
    %128 = vector.broadcast %cst_61 : f32 to vector<8x512xf32>
    %129 = arith.cmpf oge, %127, %128 : vector<8x512xf32>
    %130 = vector.broadcast %58 : vector<8x1xf32> to vector<8x512xf32>
    %131 = arith.mulf %130, %127 : vector<8x512xf32>
    %132 = arith.select %129, %127, %131 : vector<8x512xi1>, vector<8x512xf32>
    %133 = vector.extract_strided_slice %132 {offsets = [0, 0], sizes = [8, 256], strides = [1, 1]} : vector<8x512xf32> to vector<8x256xf32>
    %cst_62 = arith.constant dense<0.000000e+00> : vector<8xf32>
    %134 = vector.multi_reduction <add>, %133, %cst_62 [1] : vector<8x256xf32> to vector<8xf32>
    %135 = vector.shape_cast %134 : vector<8xf32> to vector<8x1xf32>
    %cst_63 = arith.constant 2.560000e+02 : f32
    %136 = vector.broadcast %cst_63 : f32 to vector<8x1xf32>
    %137 = arith.divf %135, %136 : vector<8x1xf32>
    %c0_64 = arith.constant 0 : index
    %c0_65 = arith.constant 0 : index
    %138 = vector.load %arg4[%c0_64, %c0_65] : memref<8x8xf32, #tpu.memory_space<vmem>>, vector<8x8xf32>
    %cst_66 = arith.constant dense<0.000000e+00> : vector<8x1xf32>
    %139 = tpu.matmul %138, %137, %cst_66 {dimension_numbers = #tpu.dot_dimension_numbers<[1], [0], [0], [1], [0, 0, 1, 1], [], []>} : vector<8x8xf32>, vector<8x1xf32>, vector<8x1xf32> -> vector<8x1xf32>
    %140 = arith.negf %139 : vector<8x1xf32>
    %141 = math.exp %140 : vector<8x1xf32>
    %cst_67 = arith.constant 1.000000e+00 : f32
    %142 = vector.broadcast %cst_67 : f32 to vector<8x1xf32>
    %143 = arith.addf %142, %141 : vector<8x1xf32>
    %144 = arith.divf %142, %143 : vector<8x1xf32>
    %145 = vector.broadcast %144 : vector<8x1xf32> to vector<8x256xf32>
    %146 = arith.mulf %133, %145 : vector<8x256xf32>
    %147 = vector.extract_strided_slice %132 {offsets = [0, 256], sizes = [8, 256], strides = [1, 1]} : vector<8x512xf32> to vector<8x256xf32>
    %cst_68 = arith.constant dense<0.000000e+00> : vector<8xf32>
    %148 = vector.multi_reduction <add>, %147, %cst_68 [1] : vector<8x256xf32> to vector<8xf32>
    %149 = vector.shape_cast %148 : vector<8xf32> to vector<8x1xf32>
    %cst_69 = arith.constant 2.560000e+02 : f32
    %150 = vector.broadcast %cst_69 : f32 to vector<8x1xf32>
    %151 = arith.divf %149, %150 : vector<8x1xf32>
    %c0_70 = arith.constant 0 : index
    %c0_71 = arith.constant 0 : index
    %152 = vector.load %arg4[%c0_70, %c0_71] : memref<8x8xf32, #tpu.memory_space<vmem>>, vector<8x8xf32>
    %cst_72 = arith.constant dense<0.000000e+00> : vector<8x1xf32>
    %153 = tpu.matmul %152, %151, %cst_72 {dimension_numbers = #tpu.dot_dimension_numbers<[1], [0], [0], [1], [0, 0, 1, 1], [], []>} : vector<8x8xf32>, vector<8x1xf32>, vector<8x1xf32> -> vector<8x1xf32>
    %154 = arith.negf %153 : vector<8x1xf32>
    %155 = math.exp %154 : vector<8x1xf32>
    %cst_73 = arith.constant 1.000000e+00 : f32
    %156 = vector.broadcast %cst_73 : f32 to vector<8x1xf32>
    %157 = arith.addf %156, %155 : vector<8x1xf32>
    %158 = arith.divf %156, %157 : vector<8x1xf32>
    %159 = vector.broadcast %158 : vector<8x1xf32> to vector<8x256xf32>
    %160 = arith.mulf %147, %159 : vector<8x256xf32>
    %161 = tpu.concatenate %146, %160 in 1 : vector<8x256xf32>, vector<8x256xf32> -> vector<8x512xf32>
    %c16_i32_74 = arith.constant 16 : i32
    %162 = tpu.dynamic_rotate %161 by %c16_i32_74 dim 1 : vector<8x512xf32>, i32 -> vector<8x512xf32>
    %c496_i32_75 = arith.constant 496 : i32
    %163 = tpu.dynamic_rotate %161 by %c496_i32_75 dim 1 : vector<8x512xf32>, i32 -> vector<8x512xf32>
    %164 = arith.select %41, %163, %162 : vector<8x512xi1>, vector<8x512xf32>
    %165 = arith.select %45, %162, %163 : vector<8x512xi1>, vector<8x512xf32>
    %c1_i32_76 = arith.constant 1 : i32
    %166 = tpu.dynamic_rotate %164 by %c1_i32_76 dim 1 : vector<8x512xf32>, i32 -> vector<8x512xf32>
    %c511_i32_77 = arith.constant 511 : i32
    %167 = tpu.dynamic_rotate %164 by %c511_i32_77 dim 1 : vector<8x512xf32>, i32 -> vector<8x512xf32>
    %168 = arith.select %49, %167, %166 : vector<8x512xi1>, vector<8x512xf32>
    %169 = arith.select %53, %166, %167 : vector<8x512xi1>, vector<8x512xf32>
    %c0_78 = arith.constant 0 : index
    %c0_79 = arith.constant 0 : index
    %c0_80 = arith.constant 0 : index
    %170 = vector.load %arg5[%c0_78, %c0_79, %c0_80] : memref<9x8x8xbf16, #tpu.memory_space<vmem>>, vector<1x8x8xbf16>
    %171 = vector.shape_cast %170 : vector<1x8x8xbf16> to vector<8x8xbf16>
    %172 = arith.truncf %168 : vector<8x512xf32> to vector<8x512xbf16>
    %cst_81 = arith.constant dense<0.000000e+00> : vector<8x512xf32>
    %173 = tpu.matmul %171, %172, %cst_81 {dimension_numbers = #tpu.dot_dimension_numbers<[1], [0], [0], [1], [0, 0, 1, 1], [], []>} : vector<8x8xbf16>, vector<8x512xbf16>, vector<8x512xf32> -> vector<8x512xf32>
    %c1_82 = arith.constant 1 : index
    %c0_83 = arith.constant 0 : index
    %c0_84 = arith.constant 0 : index
    %174 = vector.load %arg5[%c1_82, %c0_83, %c0_84] : memref<9x8x8xbf16, #tpu.memory_space<vmem>>, vector<1x8x8xbf16>
    %175 = vector.shape_cast %174 : vector<1x8x8xbf16> to vector<8x8xbf16>
    %176 = arith.truncf %164 : vector<8x512xf32> to vector<8x512xbf16>
    %cst_85 = arith.constant dense<0.000000e+00> : vector<8x512xf32>
    %177 = tpu.matmul %175, %176, %cst_85 {dimension_numbers = #tpu.dot_dimension_numbers<[1], [0], [0], [1], [0, 0, 1, 1], [], []>} : vector<8x8xbf16>, vector<8x512xbf16>, vector<8x512xf32> -> vector<8x512xf32>
    %178 = arith.addf %173, %177 : vector<8x512xf32>
    %c2_86 = arith.constant 2 : index
    %c0_87 = arith.constant 0 : index
    %c0_88 = arith.constant 0 : index
    %179 = vector.load %arg5[%c2_86, %c0_87, %c0_88] : memref<9x8x8xbf16, #tpu.memory_space<vmem>>, vector<1x8x8xbf16>
    %180 = vector.shape_cast %179 : vector<1x8x8xbf16> to vector<8x8xbf16>
    %181 = arith.truncf %169 : vector<8x512xf32> to vector<8x512xbf16>
    %cst_89 = arith.constant dense<0.000000e+00> : vector<8x512xf32>
    %182 = tpu.matmul %180, %181, %cst_89 {dimension_numbers = #tpu.dot_dimension_numbers<[1], [0], [0], [1], [0, 0, 1, 1], [], []>} : vector<8x8xbf16>, vector<8x512xbf16>, vector<8x512xf32> -> vector<8x512xf32>
    %183 = arith.addf %178, %182 : vector<8x512xf32>
    %c1_i32_90 = arith.constant 1 : i32
    %184 = tpu.dynamic_rotate %161 by %c1_i32_90 dim 1 : vector<8x512xf32>, i32 -> vector<8x512xf32>
    %c511_i32_91 = arith.constant 511 : i32
    %185 = tpu.dynamic_rotate %161 by %c511_i32_91 dim 1 : vector<8x512xf32>, i32 -> vector<8x512xf32>
    %186 = arith.select %49, %185, %184 : vector<8x512xi1>, vector<8x512xf32>
    %187 = arith.select %53, %184, %185 : vector<8x512xi1>, vector<8x512xf32>
    %c3_92 = arith.constant 3 : index
    %c0_93 = arith.constant 0 : index
    %c0_94 = arith.constant 0 : index
    %188 = vector.load %arg5[%c3_92, %c0_93, %c0_94] : memref<9x8x8xbf16, #tpu.memory_space<vmem>>, vector<1x8x8xbf16>
    %189 = vector.shape_cast %188 : vector<1x8x8xbf16> to vector<8x8xbf16>
    %190 = arith.truncf %186 : vector<8x512xf32> to vector<8x512xbf16>
    %cst_95 = arith.constant dense<0.000000e+00> : vector<8x512xf32>
    %191 = tpu.matmul %189, %190, %cst_95 {dimension_numbers = #tpu.dot_dimension_numbers<[1], [0], [0], [1], [0, 0, 1, 1], [], []>} : vector<8x8xbf16>, vector<8x512xbf16>, vector<8x512xf32> -> vector<8x512xf32>
    %192 = arith.addf %183, %191 : vector<8x512xf32>
    %c4_96 = arith.constant 4 : index
    %c0_97 = arith.constant 0 : index
    %c0_98 = arith.constant 0 : index
    %193 = vector.load %arg5[%c4_96, %c0_97, %c0_98] : memref<9x8x8xbf16, #tpu.memory_space<vmem>>, vector<1x8x8xbf16>
    %194 = vector.shape_cast %193 : vector<1x8x8xbf16> to vector<8x8xbf16>
    %195 = arith.truncf %161 : vector<8x512xf32> to vector<8x512xbf16>
    %cst_99 = arith.constant dense<0.000000e+00> : vector<8x512xf32>
    %196 = tpu.matmul %194, %195, %cst_99 {dimension_numbers = #tpu.dot_dimension_numbers<[1], [0], [0], [1], [0, 0, 1, 1], [], []>} : vector<8x8xbf16>, vector<8x512xbf16>, vector<8x512xf32> -> vector<8x512xf32>
    %197 = arith.addf %192, %196 : vector<8x512xf32>
    %c5_100 = arith.constant 5 : index
    %c0_101 = arith.constant 0 : index
    %c0_102 = arith.constant 0 : index
    %198 = vector.load %arg5[%c5_100, %c0_101, %c0_102] : memref<9x8x8xbf16, #tpu.memory_space<vmem>>, vector<1x8x8xbf16>
    %199 = vector.shape_cast %198 : vector<1x8x8xbf16> to vector<8x8xbf16>
    %200 = arith.truncf %187 : vector<8x512xf32> to vector<8x512xbf16>
    %cst_103 = arith.constant dense<0.000000e+00> : vector<8x512xf32>
    %201 = tpu.matmul %199, %200, %cst_103 {dimension_numbers = #tpu.dot_dimension_numbers<[1], [0], [0], [1], [0, 0, 1, 1], [], []>} : vector<8x8xbf16>, vector<8x512xbf16>, vector<8x512xf32> -> vector<8x512xf32>
    %202 = arith.addf %197, %201 : vector<8x512xf32>
    %c1_i32_104 = arith.constant 1 : i32
    %203 = tpu.dynamic_rotate %165 by %c1_i32_104 dim 1 : vector<8x512xf32>, i32 -> vector<8x512xf32>
    %c511_i32_105 = arith.constant 511 : i32
    %204 = tpu.dynamic_rotate %165 by %c511_i32_105 dim 1 : vector<8x512xf32>, i32 -> vector<8x512xf32>
    %205 = arith.select %49, %204, %203 : vector<8x512xi1>, vector<8x512xf32>
    %206 = arith.select %53, %203, %204 : vector<8x512xi1>, vector<8x512xf32>
    %c6_106 = arith.constant 6 : index
    %c0_107 = arith.constant 0 : index
    %c0_108 = arith.constant 0 : index
    %207 = vector.load %arg5[%c6_106, %c0_107, %c0_108] : memref<9x8x8xbf16, #tpu.memory_space<vmem>>, vector<1x8x8xbf16>
    %208 = vector.shape_cast %207 : vector<1x8x8xbf16> to vector<8x8xbf16>
    %209 = arith.truncf %205 : vector<8x512xf32> to vector<8x512xbf16>
    %cst_109 = arith.constant dense<0.000000e+00> : vector<8x512xf32>
    %210 = tpu.matmul %208, %209, %cst_109 {dimension_numbers = #tpu.dot_dimension_numbers<[1], [0], [0], [1], [0, 0, 1, 1], [], []>} : vector<8x8xbf16>, vector<8x512xbf16>, vector<8x512xf32> -> vector<8x512xf32>
    %211 = arith.addf %202, %210 : vector<8x512xf32>
    %c7_110 = arith.constant 7 : index
    %c0_111 = arith.constant 0 : index
    %c0_112 = arith.constant 0 : index
    %212 = vector.load %arg5[%c7_110, %c0_111, %c0_112] : memref<9x8x8xbf16, #tpu.memory_space<vmem>>, vector<1x8x8xbf16>
    %213 = vector.shape_cast %212 : vector<1x8x8xbf16> to vector<8x8xbf16>
    %214 = arith.truncf %165 : vector<8x512xf32> to vector<8x512xbf16>
    %cst_113 = arith.constant dense<0.000000e+00> : vector<8x512xf32>
    %215 = tpu.matmul %213, %214, %cst_113 {dimension_numbers = #tpu.dot_dimension_numbers<[1], [0], [0], [1], [0, 0, 1, 1], [], []>} : vector<8x8xbf16>, vector<8x512xbf16>, vector<8x512xf32> -> vector<8x512xf32>
    %216 = arith.addf %211, %215 : vector<8x512xf32>
    %c8_114 = arith.constant 8 : index
    %c0_115 = arith.constant 0 : index
    %c0_116 = arith.constant 0 : index
    %217 = vector.load %arg5[%c8_114, %c0_115, %c0_116] : memref<9x8x8xbf16, #tpu.memory_space<vmem>>, vector<1x8x8xbf16>
    %218 = vector.shape_cast %217 : vector<1x8x8xbf16> to vector<8x8xbf16>
    %219 = arith.truncf %206 : vector<8x512xf32> to vector<8x512xbf16>
    %cst_117 = arith.constant dense<0.000000e+00> : vector<8x512xf32>
    %220 = tpu.matmul %218, %219, %cst_117 {dimension_numbers = #tpu.dot_dimension_numbers<[1], [0], [0], [1], [0, 0, 1, 1], [], []>} : vector<8x8xbf16>, vector<8x512xbf16>, vector<8x512xf32> -> vector<8x512xf32>
    %221 = arith.addf %216, %220 : vector<8x512xf32>
    %222 = vector.broadcast %56 : vector<8x1xf32> to vector<8x512xf32>
    %223 = arith.addf %221, %222 : vector<8x512xf32>
    %c0_118 = arith.constant 0 : index
    %c0_119 = arith.constant 0 : index
    %224 = vector.load %arg6[%c0_118, %c0_119] : memref<8x8xf32, #tpu.memory_space<vmem>>, vector<8x8xf32>
    %225 = arith.mulf %223, %223 : vector<8x512xf32>
    %cst_120 = arith.constant dense<0.000000e+00> : vector<8x512xf32>
    %226 = tpu.matmul %224, %225, %cst_120 {dimension_numbers = #tpu.dot_dimension_numbers<[1], [0], [0], [1], [0, 0, 1, 1], [], []>} : vector<8x8xf32>, vector<8x512xf32>, vector<8x512xf32> -> vector<8x512xf32>
    %227 = vector.broadcast %57 : vector<8x1xf32> to vector<8x512xf32>
    %228 = arith.addf %226, %227 : vector<8x512xf32>
    %229 = math.sqrt %228 : vector<8x512xf32>
    %230 = arith.mulf %223, %229 : vector<8x512xf32>
    %231 = arith.addf %4, %230 : vector<8x512xf32>
    %232 = vector.extract_strided_slice %231 {offsets = [0, 0], sizes = [8, 256], strides = [1, 1]} : vector<8x512xf32> to vector<8x256xf32>
    %c0_121 = arith.constant 0 : index
    %c0_122 = arith.constant 0 : index
    %c0_123 = arith.constant 0 : index
    %233 = vector.load %arg8[%c0_121, %c0_122, %c0_123] : memref<2x8x256xf32, #tpu.memory_space<vmem>>, vector<1x8x256xf32>
    %234 = vector.shape_cast %233 : vector<1x8x256xf32> to vector<8x256xf32>
    %235 = vector.shape_cast %232 : vector<8x256xf32> to vector<1x8x256xf32>
    tpu.vector_store %arg8[%c0_121, %c0_122, %c0_123], %235 {strides = array<i32>} : memref<2x8x256xf32, #tpu.memory_space<vmem>>, vector<1x8x256xf32>,
    %236 = vector.extract_strided_slice %231 {offsets = [0, 256], sizes = [8, 256], strides = [1, 1]} : vector<8x512xf32> to vector<8x256xf32>
    %c1_124 = arith.constant 1 : index
    %c0_125 = arith.constant 0 : index
    %c0_126 = arith.constant 0 : index
    %237 = vector.load %arg8[%c1_124, %c0_125, %c0_126] : memref<2x8x256xf32, #tpu.memory_space<vmem>>, vector<1x8x256xf32>
    %238 = vector.shape_cast %237 : vector<1x8x256xf32> to vector<8x256xf32>
    %239 = vector.shape_cast %236 : vector<8x256xf32> to vector<1x8x256xf32>
    tpu.vector_store %arg8[%c1_124, %c0_125, %c0_126], %239 {strides = array<i32>} : memref<2x8x256xf32, #tpu.memory_space<vmem>>, vector<1x8x256xf32>,
    return
  }
  func.func @transform_0(%arg0: i32) -> (i32, i32, i32) {
    %c0_i32 = arith.constant 0 : i32
    %c0_i32_0 = arith.constant 0 : i32
    %c0_i32_1 = arith.constant 0 : i32
    return %arg0, %c0_i32, %c0_i32_0 : i32, i32, i32
  }
  func.func @transform_1(%arg0: i32) -> (i32, i32, i32) {
    %c0_i32 = arith.constant 0 : i32
    %c0_i32_0 = arith.constant 0 : i32
    %c0_i32_1 = arith.constant 0 : i32
    %c0_i32_2 = arith.constant 0 : i32
    return %c0_i32, %c0_i32_0, %c0_i32_1 : i32, i32, i32
  }
  func.func @transform_2(%arg0: i32) -> (i32, i32) {
    %c0_i32 = arith.constant 0 : i32
    %c0_i32_0 = arith.constant 0 : i32
    %c0_i32_1 = arith.constant 0 : i32
    return %c0_i32, %c0_i32_0 : i32, i32
  }
  func.func @transform_3(%arg0: i32) -> (i32, i32) {
    %c0_i32 = arith.constant 0 : i32
    %c0_i32_0 = arith.constant 0 : i32
    %c0_i32_1 = arith.constant 0 : i32
    return %c0_i32, %c0_i32_0 : i32, i32
  }
  func.func @transform_4(%arg0: i32) -> (i32, i32, i32) {
    %c0_i32 = arith.constant 0 : i32
    %c0_i32_0 = arith.constant 0 : i32
    %c0_i32_1 = arith.constant 0 : i32
    %c0_i32_2 = arith.constant 0 : i32
    return %c0_i32, %c0_i32_0, %c0_i32_1 : i32, i32, i32
  }
  func.func @transform_5(%arg0: i32) -> (i32, i32) {
    %c0_i32 = arith.constant 0 : i32
    %c0_i32_0 = arith.constant 0 : i32
    %c0_i32_1 = arith.constant 0 : i32
    return %c0_i32, %c0_i32_0 : i32, i32
  }
  func.func @transform_6(%arg0: i32) -> (i32, i32) {
    %c0_i32 = arith.constant 0 : i32
    %c0_i32_0 = arith.constant 0 : i32
    %c0_i32_1 = arith.constant 0 : i32
    return %c0_i32, %c0_i32_0 : i32, i32
  }
  func.func @transform_7(%arg0: i32) -> (i32, i32, i32) {
    %c0_i32 = arith.constant 0 : i32
    %c0_i32_0 = arith.constant 0 : i32
    %c0_i32_1 = arith.constant 0 : i32
    return %arg0, %c0_i32, %c0_i32_0 : i32, i32, i32
  }
}

</mosaic_0001>

<llo_original>
// kernel: decoding_res_block.1
$region0: #{decoding_res_block.1}
  #allocation0 [shape = 'u32[]', space=smem, size = 0x4, offset = 0x4, fixed_abs, tag = 'smem constant byte address 0x4 - core index']
  #allocation1 [shape = 'u32[144,128]{1,0:T(1,128)}', space=vmem, size = 0x12000, scoped, tag = 'internal scratch']
  %s0 = inlined_call_operand.vmem [shape: f32[2,8,256], index: 0, kind: input, shape index: {}, may-alias: {0,7}]
  %s1 = inlined_call_operand.vmem [shape: bf16[9,8,8], index: 1, kind: input, shape index: {}]
  %s2 = inlined_call_operand.vmem [shape: f32[8,8], index: 2, kind: input, shape index: {}]
  %s3 = inlined_call_operand.vmem [shape: f32[8,8], index: 3, kind: input, shape index: {}]
  %s4 = inlined_call_operand.vmem [shape: bf16[9,8,8], index: 4, kind: input, shape index: {}]
  %s5 = inlined_call_operand.vmem [shape: f32[8,8], index: 5, kind: input, shape index: {}]
  %s6 = inlined_call_operand.vmem [shape: f32[8,8], index: 6, kind: input, shape index: {}]
  %s7 = inlined_call_operand.vmem [shape: f32[2,8,256], index: 7, kind: output, shape index: {}, may-alias: {0,7}]
  %s8 = sld [smem:[#allocation0]]
  $region38: #{decoding_res_block.1} parent=0
    _
  %s10 = ssub.s32 1, %s8
  %s11 = scalar_select 0, %s10, %s8
  // Predicated region
  $region2: #{decoding_res_block.1} parent=0 // pred_check
    _
  $region3: #{decoding_res_block.1} parent=0 // pred_check_branch
    %13 = sbr.rel (0) target = $region5
  $region4: #{decoding_res_block.1} parent=0 // pred_region
    _
  $region5: #{decoding_res_block.1} parent=0 // pred_fallthru
    _
  // Predicated region
  $region6: #{decoding_res_block.1} parent=0 // pred_check
    _
  $region7: #{decoding_res_block.1} parent=0 // pred_check_branch
    %15 = sbr.rel (0) target = $region9
  $region8: #{decoding_res_block.1} parent=0 // pred_region
    _
  $region9: #{decoding_res_block.1} parent=0 // pred_fallthru
    _
  // Predicated region
  $region10: #{decoding_res_block.1} parent=0 // pred_check
    _
  $region11: #{decoding_res_block.1} parent=0 // pred_check_branch
    %17 = sbr.rel (0) target = $region13
  $region12: #{decoding_res_block.1} parent=0 // pred_region
    _
  $region13: #{decoding_res_block.1} parent=0 // pred_fallthru
    _
  // Predicated region
  $region14: #{decoding_res_block.1} parent=0 // pred_check
    _
  $region15: #{decoding_res_block.1} parent=0 // pred_check_branch
    %19 = sbr.rel (0) target = $region17
  $region16: #{decoding_res_block.1} parent=0 // pred_region
    _
  $region17: #{decoding_res_block.1} parent=0 // pred_fallthru
    _
  // Predicated region
  $region18: #{decoding_res_block.1} parent=0 // pred_check
    _
  $region19: #{decoding_res_block.1} parent=0 // pred_check_branch
    %21 = sbr.rel (0) target = $region21
  $region20: #{decoding_res_block.1} parent=0 // pred_region
    _
  $region21: #{decoding_res_block.1} parent=0 // pred_fallthru
    _
  // Predicated region
  $region22: #{decoding_res_block.1} parent=0 // pred_check
    _
  $region23: #{decoding_res_block.1} parent=0 // pred_check_branch
    %23 = sbr.rel (0) target = $region25
  $region24: #{decoding_res_block.1} parent=0 // pred_region
    _
  $region25: #{decoding_res_block.1} parent=0 // pred_fallthru
    _
  // Predicated region
  $region26: #{decoding_res_block.1} parent=0 // pred_check
    _
  $region27: #{decoding_res_block.1} parent=0 // pred_check_branch
    %25 = sbr.rel (0) target = $region29
  $region28: #{decoding_res_block.1} parent=0 // pred_region
    _
  $region29: #{decoding_res_block.1} parent=0 // pred_fallthru
    _
  %v27 = vld [vmem:[%s0] sm:$0xff]
  %v28 = vld [vmem:[%s0 + $0x8] sm:$0xff]
  %s29 = scalar_lea.vmem %s0, 16
  %v30 = vld [vmem:[%s29] sm:$0xff]
  %v31 = vld [vmem:[%s29 + $0x8] sm:$0xff]
  %v32 = vlaneseq
  %v33 = vand.u32 %v32, 127
  %v34 = vadd.s32 %v33, 128
  %v35 = vadd.s32 %v33, 256
  %v36 = vadd.s32 %v33, 384
  %vm37 = vcmp.lt.s32.totalorder %v33, 0
  %v38 = vsub.s32 0, %v33
  %v39 = vsel %vm37, %v38, %v33
  %v40 = vshrl.u32 %v39, 8
  %v41 = vand.u32 %v39, 255
  %v42 = vsub.s32 0, %v41
  %v43 = vsel %vm37, %v42, %v41
  %vm44 = vcmp.lt.s32.totalorder %v34, 0
  %v45 = vsub.s32 0, %v34
  %v46 = vsel %vm44, %v45, %v34
  %v47 = vshrl.u32 %v46, 8
  %v48 = vand.u32 %v46, 255
  %v49 = vsub.s32 0, %v48
  %v50 = vsel %vm44, %v49, %v48
  %vm51 = vcmp.lt.s32.totalorder %v35, 0
  %v52 = vsub.s32 0, %v35
  %v53 = vsel %vm51, %v52, %v35
  %v54 = vshrl.u32 %v53, 8
  %v55 = vand.u32 %v53, 255
  %v56 = vsub.s32 0, %v55
  %v57 = vsel %vm51, %v56, %v55
  %vm58 = vcmp.lt.s32.totalorder %v36, 0
  %v59 = vsub.s32 0, %v36
  %v60 = vsel %vm58, %v59, %v36
  %v61 = vshrl.u32 %v60, 8
  %v62 = vand.u32 %v60, 255
  %v63 = vsub.s32 0, %v62
  %v64 = vsel %vm58, %v63, %v62
  %vm65 = vcmp.ne.s32.totalorder %v43, 0
  %vm66 = vcmp.ne.s32.totalorder %v50, 0
  %vm67 = vcmp.ne.s32.totalorder %v57, 0
  %vm68 = vcmp.ne.s32.totalorder %v64, 0
  %vm69 = vcmp.lt.s32.totalorder %v43, 0
  %vm70 = vcmp.lt.s32.totalorder %v50, 0
  %vm71 = vcmp.lt.s32.totalorder %v57, 0
  %vm72 = vcmp.lt.s32.totalorder %v64, 0
  %vm73 = vmand %vm69, %vm65
  %vm74 = vmand %vm70, %vm66
  %vm75 = vmand %vm71, %vm67
  %vm76 = vmand %vm72, %vm68
  %v77 = vadd.s32 %v43, 256
  %v78 = vadd.s32 %v50, 256
  %v79 = vadd.s32 %v57, 256
  %v80 = vadd.s32 %v64, 256
  %v81 = vsel %vm73, %v77, %v43
  %v82 = vsel %vm74, %v78, %v50
  %v83 = vsel %vm75, %v79, %v57
  %v84 = vsel %vm76, %v80, %v64
  %vm85 = vcmp.lt.s32.totalorder %v81, 0
  %v86 = vsub.s32 0, %v81
  %v87 = vsel %vm85, %v86, %v81
  %v88 = vshrl.u32 %v87, 4
  %v89 = vand.u32 %v87, 15
  %v90 = vsub.s32 0, %v89
  %v91 = vsel %vm85, %v90, %v89
  %vm92 = vcmp.lt.s32.totalorder %v82, 0
  %v93 = vsub.s32 0, %v82
  %v94 = vsel %vm92, %v93, %v82
  %v95 = vshrl.u32 %v94, 4
  %v96 = vand.u32 %v94, 15
  %v97 = vsub.s32 0, %v96
  %v98 = vsel %vm92, %v97, %v96
  %vm99 = vcmp.lt.s32.totalorder %v83, 0
  %v100 = vsub.s32 0, %v83
  %v101 = vsel %vm99, %v100, %v83
  %v102 = vshrl.u32 %v101, 4
  %v103 = vand.u32 %v101, 15
  %v104 = vsub.s32 0, %v103
  %v105 = vsel %vm99, %v104, %v103
  %vm106 = vcmp.lt.s32.totalorder %v84, 0
  %v107 = vsub.s32 0, %v84
  %v108 = vsel %vm106, %v107, %v84
  %v109 = vshrl.u32 %v108, 4
  %v110 = vand.u32 %v108, 15
  %v111 = vsub.s32 0, %v110
  %v112 = vsel %vm106, %v111, %v110
  %vm113 = vcmp.ne.s32.totalorder %v91, 0
  %vm114 = vcmp.ne.s32.totalorder %v98, 0
  %vm115 = vcmp.ne.s32.totalorder %v105, 0
  %vm116 = vcmp.ne.s32.totalorder %v112, 0
  %vm117 = vcmp.lt.s32.totalorder %v91, 0
  %vm118 = vcmp.lt.s32.totalorder %v98, 0
  %vm119 = vcmp.lt.s32.totalorder %v105, 0
  %vm120 = vcmp.lt.s32.totalorder %v112, 0
  %vm121 = vmand %vm117, %vm113
  %vm122 = vmand %vm118, %vm114
  %vm123 = vmand %vm119, %vm115
  %vm124 = vmand %vm120, %vm116
  %v125 = vadd.s32 %v91, 16
  %v126 = vadd.s32 %v98, 16
  %v127 = vadd.s32 %v105, 16
  %v128 = vadd.s32 %v112, 16
  %v129 = vsel %vm121, %v125, %v91
  %v130 = vsel %vm122, %v126, %v98
  %v131 = vsel %vm123, %v127, %v105
  %v132 = vsel %vm124, %v128, %v112
  %vm133 = vcmp.lt.s32.totalorder %v81, 16
  %vm134 = vcmp.lt.s32.totalorder %v82, 16
  %vm135 = vcmp.lt.s32.totalorder %v83, 16
  %vm136 = vcmp.lt.s32.totalorder %v84, 16
  %v137 = vsel %vm133, 1, 0
  %v138 = vsel %vm134, 1, 0
  %v139 = vsel %vm135, 1, 0
  %v140 = vsel %vm136, 1, 0
  %vm141 = vcmp.eq.s32.totalorder %v137, 1
  %vm142 = vcmp.eq.s32.totalorder %v138, 1
  %vm143 = vcmp.eq.s32.totalorder %v139, 1
  %vm144 = vcmp.eq.s32.totalorder %v140, 1
  %vm145 = vcmp.ge.s32.totalorder %v81, 240
  %vm146 = vcmp.ge.s32.totalorder %v82, 240
  %vm147 = vcmp.ge.s32.totalorder %v83, 240
  %vm148 = vcmp.ge.s32.totalorder %v84, 240
  %v149 = vsel %vm145, 1, 0
  %v150 = vsel %vm146, 1, 0
  %v151 = vsel %vm147, 1, 0
  %v152 = vsel %vm148, 1, 0
  %vm153 = vcmp.eq.s32.totalorder %v149, 1
  %vm154 = vcmp.eq.s32.totalorder %v150, 1
  %vm155 = vcmp.eq.s32.totalorder %v151, 1
  %vm156 = vcmp.eq.s32.totalorder %v152, 1
  %vm157 = vcmp.eq.s32.totalorder %v129, 0
  %vm158 = vcmp.eq.s32.totalorder %v130, 0
  %vm159 = vcmp.eq.s32.totalorder %v131, 0
  %vm160 = vcmp.eq.s32.totalorder %v132, 0
  %v161 = vsel %vm157, 1, 0
  %v162 = vsel %vm158, 1, 0
  %v163 = vsel %vm159, 1, 0
  %v164 = vsel %vm160, 1, 0
  %vm165 = vcmp.eq.s32.totalorder %v161, 1
  %vm166 = vcmp.eq.s32.totalorder %v162, 1
  %vm167 = vcmp.eq.s32.totalorder %v163, 1
  %vm168 = vcmp.eq.s32.totalorder %v164, 1
  %vm169 = vcmp.eq.s32.totalorder %v129, 15
  %vm170 = vcmp.eq.s32.totalorder %v130, 15
  %vm171 = vcmp.eq.s32.totalorder %v131, 15
  %vm172 = vcmp.eq.s32.totalorder %v132, 15
  %v173 = vsel %vm169, 1, 0
  %v174 = vsel %vm170, 1, 0
  %v175 = vsel %vm171, 1, 0
  %v176 = vsel %vm172, 1, 0
  %vm177 = vcmp.eq.s32.totalorder %v173, 1
  %vm178 = vcmp.eq.s32.totalorder %v174, 1
  %vm179 = vcmp.eq.s32.totalorder %v175, 1
  %vm180 = vcmp.eq.s32.totalorder %v176, 1
  %v181 = vld [vmem:[%s6] sm:$0xff]
  %182 = vrot.lane.b32.xlu0 %v27, 16
  %v183 = vpop.permute.xlu0 %182
  %184 = vrot.lane.b32.xlu0 %v28, 16
  %v185 = vpop.permute.xlu0 %184
  %186 = vrot.lane.b32.xlu0 %v30, 16
  %v187 = vpop.permute.xlu0 %186
  %188 = vrot.lane.b32.xlu0 %v31, 16
  %v189 = vpop.permute.xlu0 %188
  %vm190 = vcmp.lt.s32.totalorder %v33, 16
  %v191 = vsel %vm190, %v187, %v189
  %v192 = vsel %vm190, %v185, %v187
  %v193 = vsel %vm190, %v183, %v185
  %v194 = vsel %vm190, %v189, %v183
  %195 = vrot.lane.b32.xlu0 %v27, 112
  %v196 = vpop.permute.xlu0 %195
  %197 = vrot.lane.b32.xlu0 %v28, 112
  %v198 = vpop.permute.xlu0 %197
  %199 = vrot.lane.b32.xlu0 %v30, 112
  %v200 = vpop.permute.xlu0 %199
  %201 = vrot.lane.b32.xlu0 %v31, 112
  %v202 = vpop.permute.xlu0 %201
  %vm203 = vcmp.lt.s32.totalorder %v33, 112
  %v204 = vsel %vm203, %v200, %v202
  %v205 = vsel %vm203, %v198, %v200
  %v206 = vsel %vm203, %v196, %v198
  %v207 = vsel %vm203, %v202, %v196
  %v208 = vsel %vm141, %v206, %v194
  %v209 = vsel %vm142, %v205, %v193
  %v210 = vsel %vm143, %v204, %v192
  %v211 = vsel %vm144, %v207, %v191
  %v212 = vsel %vm153, %v194, %v206
  %v213 = vsel %vm154, %v193, %v205
  %v214 = vsel %vm155, %v192, %v204
  %v215 = vsel %vm156, %v191, %v207
  %216 = vrot.lane.b32.xlu0 %v208, 1
  %v217 = vpop.permute.xlu0 %216
  %218 = vrot.lane.b32.xlu0 %v209, 1
  %v219 = vpop.permute.xlu0 %218
  %220 = vrot.lane.b32.xlu0 %v210, 1
  %v221 = vpop.permute.xlu0 %220
  %222 = vrot.lane.b32.xlu0 %v211, 1
  %v223 = vpop.permute.xlu0 %222
  %vm224 = vcmp.lt.s32.totalorder %v33, 1
  %v225 = vsel %vm224, %v221, %v223
  %v226 = vsel %vm224, %v219, %v221
  %v227 = vsel %vm224, %v217, %v219
  %v228 = vsel %vm224, %v223, %v217
  %229 = vrot.lane.b32.xlu0 %v208, 127
  %v230 = vpop.permute.xlu0 %229
  %231 = vrot.lane.b32.xlu0 %v209, 127
  %v232 = vpop.permute.xlu0 %231
  %233 = vrot.lane.b32.xlu0 %v210, 127
  %v234 = vpop.permute.xlu0 %233
  %235 = vrot.lane.b32.xlu0 %v211, 127
  %v236 = vpop.permute.xlu0 %235
  %vm237 = vcmp.lt.s32.totalorder %v33, 127
  %v238 = vsel %vm237, %v234, %v236
  %v239 = vsel %vm237, %v232, %v234
  %v240 = vsel %vm237, %v230, %v232
  %v241 = vsel %vm237, %v236, %v230
  %v242 = vsel %vm165, %v240, %v228
  %v243 = vsel %vm166, %v239, %v227
  %v244 = vsel %vm167, %v238, %v226
  %v245 = vsel %vm168, %v241, %v225
  %v246 = vsel %vm177, %v228, %v240
  %v247 = vsel %vm178, %v227, %v239
  %v248 = vsel %vm179, %v226, %v238
  %v249 = vsel %vm180, %v225, %v241
  %v250 = vld [vmem:[%s1] sm:$0xf]
  %v251 = vpack.c.bf16 %v242, %v242
  %v252 = vpack.c.bf16 %v243, %v243
  %v253 = vpack.c.bf16 %v244, %v244
  %v254 = vpack.c.bf16 %v245, %v245
  %s255 = scalar_lea.vmem %s1, 4
  %v256 = vld [vmem:[%s255] sm:$0xf]
  %v257 = vpack.c.bf16 %v208, %v208
  %v258 = vpack.c.bf16 %v209, %v209
  %v259 = vpack.c.bf16 %v210, %v210
  %v260 = vpack.c.bf16 %v211, %v211
  %vm261 = vcmask 64512
  %v263 = vsel %vm261, %v256, 0
  %vm265 = vcmask 1043456
  %v267 = vsel %vm265, %v257, 0
  %v270 = vsel %vm265, %v258, 0
  %v273 = vsel %vm265, %v259, 0
  %v276 = vsel %vm265, %v260, 0
  %278 = vmatprep.subr.bf16.mxu0 0
  %279 = vmatpush1.bf16.msra.mxu0 0
  %280 = vmatprep.subr.bf16.mxu0 0
  %281 = vmatpush1.bf16.msra.mxu0 0
  %282 = vmatprep.subr.bf16.mxu0 0
  %283 = vmatpush1.bf16.msra.mxu0 0
  %284 = vmatprep.subr.bf16.mxu0 0
  %285 = vmatpush1.bf16.msra.mxu0 0
  %286 = vmatprep.subr.bf16.mxu0 0
  %287 = vmatpush1.bf16.msra.mxu0 0
  %288 = vmatprep.subr.bf16.mxu0 0
  %289 = vmatpush1.bf16.msra.mxu0 0
  %290 = vmatprep.subr.bf16.mxu0 0
  %291 = vmatpush1.bf16.msra.mxu0 0
  %292 = vmatprep.subr.bf16.mxu0 %v270
  %293 = vmatpush1.bf16.msra.mxu0 %v267
  %294 = vmatprep.subr.bf16.mxu0 0
  %295 = vmatpush2.bf16.msra.mxu0 0
  %296 = vmatprep.subr.bf16.mxu0 0
  %297 = vmatpush2.bf16.msra.mxu0 0
  %298 = vmatprep.subr.bf16.mxu0 0
  %299 = vmatpush2.bf16.msra.mxu0 0
  %300 = vmatprep.subr.bf16.mxu0 0
  %301 = vmatpush2.bf16.msra.mxu0 0
  %302 = vmatprep.subr.bf16.mxu0 0
  %303 = vmatpush2.bf16.msra.mxu0 0
  %304 = vmatprep.subr.bf16.mxu0 0
  %305 = vmatpush2.bf16.msra.mxu0 0
  %306 = vmatprep.subr.bf16.mxu0 0
  %307 = vmatpush2.bf16.msra.mxu0 0
  %308 = vmatprep.subr.bf16.mxu0 0
  %309 = vmatpush2.bf16.msra.mxu0 0
  %310 = vmatprep.mubr.bf16.mxu0 0
  %311 = vmatmul.mubr.bf16.gmra.mxu0 %v263
  %v312 = vpop.f32.mrf.mxu0
  %v313 = vadd.f32 0.0, %v312
  %v314 = vpop.f32.mrf.mxu0
  %v315 = vadd.f32 0.0, %v314
  %v316 = vpop.f32.mrf.mxu0
  %v317 = vpop.f32.mrf.mxu0
  %318 = vdwg.mxu0
  %319 = vmatprep.subr.bf16.mxu0 0
  %320 = vmatpush1.bf16.msra.mxu0 0
  %321 = vmatprep.subr.bf16.mxu0 0
  %322 = vmatpush1.bf16.msra.mxu0 0
  %323 = vmatprep.subr.bf16.mxu0 0
  %324 = vmatpush1.bf16.msra.mxu0 0
  %325 = vmatprep.subr.bf16.mxu0 0
  %326 = vmatpush1.bf16.msra.mxu0 0
  %327 = vmatprep.subr.bf16.mxu0 0
  %328 = vmatpush1.bf16.msra.mxu0 0
  %329 = vmatprep.subr.bf16.mxu0 0
  %330 = vmatpush1.bf16.msra.mxu0 0
  %331 = vmatprep.subr.bf16.mxu0 0
  %332 = vmatpush1.bf16.msra.mxu0 0
  %333 = vmatprep.subr.bf16.mxu0 %v276
  %334 = vmatpush1.bf16.msra.mxu0 %v273
  %335 = vmatprep.subr.bf16.mxu0 0
  %336 = vmatpush2.bf16.msra.mxu0 0
  %337 = vmatprep.subr.bf16.mxu0 0
  %338 = vmatpush2.bf16.msra.mxu0 0
  %339 = vmatprep.subr.bf16.mxu0 0
  %340 = vmatpush2.bf16.msra.mxu0 0
  %341 = vmatprep.subr.bf16.mxu0 0
  %342 = vmatpush2.bf16.msra.mxu0 0
  %343 = vmatprep.subr.bf16.mxu0 0
  %344 = vmatpush2.bf16.msra.mxu0 0
  %345 = vmatprep.subr.bf16.mxu0 0
  %346 = vmatpush2.bf16.msra.mxu0 0
  %347 = vmatprep.subr.bf16.mxu0 0
  %348 = vmatpush2.bf16.msra.mxu0 0
  %349 = vmatprep.subr.bf16.mxu0 0
  %350 = vmatpush2.bf16.msra.mxu0 0
  %351 = vmatprep.mubr.bf16.mxu0 0
  %352 = vmatmul.mubr.bf16.gmra.mxu0 %v263
  %v353 = vpop.f32.mrf.mxu0
  %v354 = vadd.f32 0.0, %v353
  %v355 = vpop.f32.mrf.mxu0
  %v356 = vadd.f32 0.0, %v355
  %v357 = vpop.f32.mrf.mxu0
  %v358 = vpop.f32.mrf.mxu0
  %359 = vdwg.mxu0
  %v361 = vsel %vm261, %v250, 0
  %v364 = vsel %vm265, %v251, 0
  %v367 = vsel %vm265, %v252, 0
  %v370 = vsel %vm265, %v253, 0
  %v373 = vsel %vm265, %v254, 0
  %375 = vmatprep.subr.bf16.mxu0 0
  %376 = vmatpush1.bf16.msra.mxu0 0
  %377 = vmatprep.subr.bf16.mxu0 0
  %378 = vmatpush1.bf16.msra.mxu0 0
  %379 = vmatprep.subr.bf16.mxu0 0
  %380 = vmatpush1.bf16.msra.mxu0 0
  %381 = vmatprep.subr.bf16.mxu0 0
  %382 = vmatpush1.bf16.msra.mxu0 0
  %383 = vmatprep.subr.bf16.mxu0 0
  %384 = vmatpush1.bf16.msra.mxu0 0
  %385 = vmatprep.subr.bf16.mxu0 0
  %386 = vmatpush1.bf16.msra.mxu0 0
  %387 = vmatprep.subr.bf16.mxu0 0
  %388 = vmatpush1.bf16.msra.mxu0 0
  %389 = vmatprep.subr.bf16.mxu0 %v367
  %390 = vmatpush1.bf16.msra.mxu0 %v364
  %391 = vmatprep.subr.bf16.mxu0 0
  %392 = vmatpush2.bf16.msra.mxu0 0
  %393 = vmatprep.subr.bf16.mxu0 0
  %394 = vmatpush2.bf16.msra.mxu0 0
  %395 = vmatprep.subr.bf16.mxu0 0
  %396 = vmatpush2.bf16.msra.mxu0 0
  %397 = vmatprep.subr.bf16.mxu0 0
  %398 = vmatpush2.bf16.msra.mxu0 0
  %399 = vmatprep.subr.bf16.mxu0 0
  %400 = vmatpush2.bf16.msra.mxu0 0
  %401 = vmatprep.subr.bf16.mxu0 0
  %402 = vmatpush2.bf16.msra.mxu0 0
  %403 = vmatprep.subr.bf16.mxu0 0
  %404 = vmatpush2.bf16.msra.mxu0 0
  %405 = vmatprep.subr.bf16.mxu0 0
  %406 = vmatpush2.bf16.msra.mxu0 0
  %407 = vmatprep.mubr.bf16.mxu0 0
  %408 = vmatmul.mubr.bf16.gmra.mxu0 %v361
  %v409 = vpop.f32.mrf.mxu0
  %v410 = vadd.f32 %v313, %v409
  %v411 = vpop.f32.mrf.mxu0
  %v412 = vadd.f32 %v315, %v411
  %v413 = vpop.f32.mrf.mxu0
  %v414 = vpop.f32.mrf.mxu0
  %415 = vdwg.mxu0
  %416 = vmatprep.subr.bf16.mxu0 0
  %417 = vmatpush1.bf16.msra.mxu0 0
  %418 = vmatprep.subr.bf16.mxu0 0
  %419 = vmatpush1.bf16.msra.mxu0 0
  %420 = vmatprep.subr.bf16.mxu0 0
  %421 = vmatpush1.bf16.msra.mxu0 0
  %422 = vmatprep.subr.bf16.mxu0 0
  %423 = vmatpush1.bf16.msra.mxu0 0
  %424 = vmatprep.subr.bf16.mxu0 0
  %425 = vmatpush1.bf16.msra.mxu0 0
  %426 = vmatprep.subr.bf16.mxu0 0
  %427 = vmatpush1.bf16.msra.mxu0 0
  %428 = vmatprep.subr.bf16.mxu0 0
  %429 = vmatpush1.bf16.msra.mxu0 0
  %430 = vmatprep.subr.bf16.mxu0 %v373
  %431 = vmatpush1.bf16.msra.mxu0 %v370
  %432 = vmatprep.subr.bf16.mxu0 0
  %433 = vmatpush2.bf16.msra.mxu0 0
  %434 = vmatprep.subr.bf16.mxu0 0
  %435 = vmatpush2.bf16.msra.mxu0 0
  %436 = vmatprep.subr.bf16.mxu0 0
  %437 = vmatpush2.bf16.msra.mxu0 0
  %438 = vmatprep.subr.bf16.mxu0 0
  %439 = vmatpush2.bf16.msra.mxu0 0
  %440 = vmatprep.subr.bf16.mxu0 0
  %441 = vmatpush2.bf16.msra.mxu0 0
  %442 = vmatprep.subr.bf16.mxu0 0
  %443 = vmatpush2.bf16.msra.mxu0 0
  %444 = vmatprep.subr.bf16.mxu0 0
  %445 = vmatpush2.bf16.msra.mxu0 0
  %446 = vmatprep.subr.bf16.mxu0 0
  %447 = vmatpush2.bf16.msra.mxu0 0
  %448 = vmatprep.mubr.bf16.mxu0 0
  %449 = vmatmul.mubr.bf16.gmra.mxu0 %v361
  %v450 = vpop.f32.mrf.mxu0
  %v451 = vadd.f32 %v354, %v450
  %v452 = vpop.f32.mrf.mxu0
  %v453 = vadd.f32 %v356, %v452
  %v454 = vpop.f32.mrf.mxu0
  %v455 = vpop.f32.mrf.mxu0
  %456 = vdwg.mxu0
  %s457 = scalar_lea.vmem %s1, 8
  %v458 = vld [vmem:[%s457] sm:$0xf]
  %v459 = vpack.c.bf16 %v246, %v246
  %v460 = vpack.c.bf16 %v247, %v247
  %v461 = vpack.c.bf16 %v248, %v248
  %v462 = vpack.c.bf16 %v249, %v249
  %v464 = vsel %vm261, %v458, 0
  %v467 = vsel %vm265, %v459, 0
  %v470 = vsel %vm265, %v460, 0
  %v473 = vsel %vm265, %v461, 0
  %v476 = vsel %vm265, %v462, 0
  %478 = vmatprep.subr.bf16.mxu0 0
  %479 = vmatpush1.bf16.msra.mxu0 0
  %480 = vmatprep.subr.bf16.mxu0 0
  %481 = vmatpush1.bf16.msra.mxu0 0
  %482 = vmatprep.subr.bf16.mxu0 0
  %483 = vmatpush1.bf16.msra.mxu0 0
  %484 = vmatprep.subr.bf16.mxu0 0
  %485 = vmatpush1.bf16.msra.mxu0 0
  %486 = vmatprep.subr.bf16.mxu0 0
  %487 = vmatpush1.bf16.msra.mxu0 0
  %488 = vmatprep.subr.bf16.mxu0 0
  %489 = vmatpush1.bf16.msra.mxu0 0
  %490 = vmatprep.subr.bf16.mxu0 0
  %491 = vmatpush1.bf16.msra.mxu0 0
  %492 = vmatprep.subr.bf16.mxu0 %v470
  %493 = vmatpush1.bf16.msra.mxu0 %v467
  %494 = vmatprep.subr.bf16.mxu0 0
  %495 = vmatpush2.bf16.msra.mxu0 0
  %496 = vmatprep.subr.bf16.mxu0 0
  %497 = vmatpush2.bf16.msra.mxu0 0
  %498 = vmatprep.subr.bf16.mxu0 0
  %499 = vmatpush2.bf16.msra.mxu0 0
  %500 = vmatprep.subr.bf16.mxu0 0
  %501 = vmatpush2.bf16.msra.mxu0 0
  %502 = vmatprep.subr.bf16.mxu0 0
  %503 = vmatpush2.bf16.msra.mxu0 0
  %504 = vmatprep.subr.bf16.mxu0 0
  %505 = vmatpush2.bf16.msra.mxu0 0
  %506 = vmatprep.subr.bf16.mxu0 0
  %507 = vmatpush2.bf16.msra.mxu0 0
  %508 = vmatprep.subr.bf16.mxu0 0
  %509 = vmatpush2.bf16.msra.mxu0 0
  %510 = vmatprep.mubr.bf16.mxu0 0
  %511 = vmatmul.mubr.bf16.gmra.mxu0 %v464
  %v512 = vpop.f32.mrf.mxu0
  %v513 = vadd.f32 0.0, %v512
  %v514 = vpop.f32.mrf.mxu0
  %v515 = vadd.f32 0.0, %v514
  %v516 = vpop.f32.mrf.mxu0
  %v517 = vpop.f32.mrf.mxu0
  %518 = vdwg.mxu0
  %519 = vmatprep.subr.bf16.mxu0 0
  %520 = vmatpush1.bf16.msra.mxu0 0
  %521 = vmatprep.subr.bf16.mxu0 0
  %522 = vmatpush1.bf16.msra.mxu0 0
  %523 = vmatprep.subr.bf16.mxu0 0
  %524 = vmatpush1.bf16.msra.mxu0 0
  %525 = vmatprep.subr.bf16.mxu0 0
  %526 = vmatpush1.bf16.msra.mxu0 0
  %527 = vmatprep.subr.bf16.mxu0 0
  %528 = vmatpush1.bf16.msra.mxu0 0
  %529 = vmatprep.subr.bf16.mxu0 0
  %530 = vmatpush1.bf16.msra.mxu0 0
  %531 = vmatprep.subr.bf16.mxu0 0
  %532 = vmatpush1.bf16.msra.mxu0 0
  %533 = vmatprep.subr.bf16.mxu0 %v476
  %534 = vmatpush1.bf16.msra.mxu0 %v473
  %535 = vmatprep.subr.bf16.mxu0 0
  %536 = vmatpush2.bf16.msra.mxu0 0
  %537 = vmatprep.subr.bf16.mxu0 0
  %538 = vmatpush2.bf16.msra.mxu0 0
  %539 = vmatprep.subr.bf16.mxu0 0
  %540 = vmatpush2.bf16.msra.mxu0 0
  %541 = vmatprep.subr.bf16.mxu0 0
  %542 = vmatpush2.bf16.msra.mxu0 0
  %543 = vmatprep.subr.bf16.mxu0 0
  %544 = vmatpush2.bf16.msra.mxu0 0
  %545 = vmatprep.subr.bf16.mxu0 0
  %546 = vmatpush2.bf16.msra.mxu0 0
  %547 = vmatprep.subr.bf16.mxu0 0
  %548 = vmatpush2.bf16.msra.mxu0 0
  %549 = vmatprep.subr.bf16.mxu0 0
  %550 = vmatpush2.bf16.msra.mxu0 0
  %551 = vmatprep.mubr.bf16.mxu0 0
  %552 = vmatmul.mubr.bf16.gmra.mxu0 %v464
  %v553 = vpop.f32.mrf.mxu0
  %v554 = vadd.f32 0.0, %v553
  %v555 = vpop.f32.mrf.mxu0
  %v556 = vadd.f32 0.0, %v555
  %v557 = vpop.f32.mrf.mxu0
  %v558 = vpop.f32.mrf.mxu0
  %559 = vdwg.mxu0
  %v560 = vadd.f32 %v410, %v513
  %v561 = vadd.f32 %v412, %v515
  %v562 = vadd.f32 %v451, %v554
  %v563 = vadd.f32 %v453, %v556
  %564 = vrot.lane.b32.xlu0 %v27, 1
  %v565 = vpop.permute.xlu0 %564
  %566 = vrot.lane.b32.xlu0 %v28, 1
  %v567 = vpop.permute.xlu0 %566
  %568 = vrot.lane.b32.xlu0 %v30, 1
  %v569 = vpop.permute.xlu0 %568
  %570 = vrot.lane.b32.xlu0 %v31, 1
  %v571 = vpop.permute.xlu0 %570
  %v572 = vsel %vm224, %v569, %v571
  %v573 = vsel %vm224, %v567, %v569
  %v574 = vsel %vm224, %v565, %v567
  %v575 = vsel %vm224, %v571, %v565
  %576 = vrot.lane.b32.xlu0 %v27, 127
  %v577 = vpop.permute.xlu0 %576
  %578 = vrot.lane.b32.xlu0 %v28, 127
  %v579 = vpop.permute.xlu0 %578
  %580 = vrot.lane.b32.xlu0 %v30, 127
  %v581 = vpop.permute.xlu0 %580
  %582 = vrot.lane.b32.xlu0 %v31, 127
  %v583 = vpop.permute.xlu0 %582
  %v584 = vsel %vm237, %v581, %v583
  %v585 = vsel %vm237, %v579, %v581
  %v586 = vsel %vm237, %v577, %v579
  %v587 = vsel %vm237, %v583, %v577
  %v588 = vsel %vm165, %v586, %v575
  %v589 = vsel %vm166, %v585, %v574
  %v590 = vsel %vm167, %v584, %v573
  %v591 = vsel %vm168, %v587, %v572
  %v592 = vsel %vm177, %v575, %v586
  %v593 = vsel %vm178, %v574, %v585
  %v594 = vsel %vm179, %v573, %v584
  %v595 = vsel %vm180, %v572, %v587
  %s596 = scalar_lea.vmem %s1, 12
  %v597 = vld [vmem:[%s596] sm:$0xf]
  %v598 = vpack.c.bf16 %v588, %v588
  %v599 = vpack.c.bf16 %v589, %v589
  %v600 = vpack.c.bf16 %v590, %v590
  %v601 = vpack.c.bf16 %v591, %v591
  %v603 = vsel %vm261, %v597, 0
  %v606 = vsel %vm265, %v598, 0
  %v609 = vsel %vm265, %v599, 0
  %v612 = vsel %vm265, %v600, 0
  %v615 = vsel %vm265, %v601, 0
  %617 = vmatprep.subr.bf16.mxu0 0
  %618 = vmatpush1.bf16.msra.mxu0 0
  %619 = vmatprep.subr.bf16.mxu0 0
  %620 = vmatpush1.bf16.msra.mxu0 0
  %621 = vmatprep.subr.bf16.mxu0 0
  %622 = vmatpush1.bf16.msra.mxu0 0
  %623 = vmatprep.subr.bf16.mxu0 0
  %624 = vmatpush1.bf16.msra.mxu0 0
  %625 = vmatprep.subr.bf16.mxu0 0
  %626 = vmatpush1.bf16.msra.mxu0 0
  %627 = vmatprep.subr.bf16.mxu0 0
  %628 = vmatpush1.bf16.msra.mxu0 0
  %629 = vmatprep.subr.bf16.mxu0 0
  %630 = vmatpush1.bf16.msra.mxu0 0
  %631 = vmatprep.subr.bf16.mxu0 %v609
  %632 = vmatpush1.bf16.msra.mxu0 %v606
  %633 = vmatprep.subr.bf16.mxu0 0
  %634 = vmatpush2.bf16.msra.mxu0 0
  %635 = vmatprep.subr.bf16.mxu0 0
  %636 = vmatpush2.bf16.msra.mxu0 0
  %637 = vmatprep.subr.bf16.mxu0 0
  %638 = vmatpush2.bf16.msra.mxu0 0
  %639 = vmatprep.subr.bf16.mxu0 0
  %640 = vmatpush2.bf16.msra.mxu0 0
  %641 = vmatprep.subr.bf16.mxu0 0
  %642 = vmatpush2.bf16.msra.mxu0 0
  %643 = vmatprep.subr.bf16.mxu0 0
  %644 = vmatpush2.bf16.msra.mxu0 0
  %645 = vmatprep.subr.bf16.mxu0 0
  %646 = vmatpush2.bf16.msra.mxu0 0
  %647 = vmatprep.subr.bf16.mxu0 0
  %648 = vmatpush2.bf16.msra.mxu0 0
  %649 = vmatprep.mubr.bf16.mxu0 0
  %650 = vmatmul.mubr.bf16.gmra.mxu0 %v603
  %v651 = vpop.f32.mrf.mxu0
  %v652 = vadd.f32 0.0, %v651
  %v653 = vpop.f32.mrf.mxu0
  %v654 = vadd.f32 0.0, %v653
  %v655 = vpop.f32.mrf.mxu0
  %v656 = vpop.f32.mrf.mxu0
  %657 = vdwg.mxu0
  %658 = vmatprep.subr.bf16.mxu0 0
  %659 = vmatpush1.bf16.msra.mxu0 0
  %660 = vmatprep.subr.bf16.mxu0 0
  %661 = vmatpush1.bf16.msra.mxu0 0
  %662 = vmatprep.subr.bf16.mxu0 0
  %663 = vmatpush1.bf16.msra.mxu0 0
  %664 = vmatprep.subr.bf16.mxu0 0
  %665 = vmatpush1.bf16.msra.mxu0 0
  %666 = vmatprep.subr.bf16.mxu0 0
  %667 = vmatpush1.bf16.msra.mxu0 0
  %668 = vmatprep.subr.bf16.mxu0 0
  %669 = vmatpush1.bf16.msra.mxu0 0
  %670 = vmatprep.subr.bf16.mxu0 0
  %671 = vmatpush1.bf16.msra.mxu0 0
  %672 = vmatprep.subr.bf16.mxu0 %v615
  %673 = vmatpush1.bf16.msra.mxu0 %v612
  %674 = vmatprep.subr.bf16.mxu0 0
  %675 = vmatpush2.bf16.msra.mxu0 0
  %676 = vmatprep.subr.bf16.mxu0 0
  %677 = vmatpush2.bf16.msra.mxu0 0
  %678 = vmatprep.subr.bf16.mxu0 0
  %679 = vmatpush2.bf16.msra.mxu0 0
  %680 = vmatprep.subr.bf16.mxu0 0
  %681 = vmatpush2.bf16.msra.mxu0 0
  %682 = vmatprep.subr.bf16.mxu0 0
  %683 = vmatpush2.bf16.msra.mxu0 0
  %684 = vmatprep.subr.bf16.mxu0 0
  %685 = vmatpush2.bf16.msra.mxu0 0
  %686 = vmatprep.subr.bf16.mxu0 0
  %687 = vmatpush2.bf16.msra.mxu0 0
  %688 = vmatprep.subr.bf16.mxu0 0
  %689 = vmatpush2.bf16.msra.mxu0 0
  %690 = vmatprep.mubr.bf16.mxu0 0
  %691 = vmatmul.mubr.bf16.gmra.mxu0 %v603
  %v692 = vpop.f32.mrf.mxu0
  %v693 = vadd.f32 0.0, %v692
  %v694 = vpop.f32.mrf.mxu0
  %v695 = vadd.f32 0.0, %v694
  %v696 = vpop.f32.mrf.mxu0
  %v697 = vpop.f32.mrf.mxu0
  %698 = vdwg.mxu0
  %v699 = vadd.f32 %v560, %v652
  %v700 = vadd.f32 %v561, %v654
  %v701 = vadd.f32 %v562, %v693
  %v702 = vadd.f32 %v563, %v695
  %s703 = scalar_lea.vmem %s1, 16
  %v704 = vld [vmem:[%s703] sm:$0xf]
  %v705 = vpack.c.bf16 %v27, %v27
  %v706 = vpack.c.bf16 %v28, %v28
  %v707 = vpack.c.bf16 %v30, %v30
  %v708 = vpack.c.bf16 %v31, %v31
  %v710 = vsel %vm261, %v704, 0
  %v713 = vsel %vm265, %v705, 0
  %v716 = vsel %vm265, %v706, 0
  %v719 = vsel %vm265, %v707, 0
  %v722 = vsel %vm265, %v708, 0
  %724 = vmatprep.subr.bf16.mxu0 0
  %725 = vmatpush1.bf16.msra.mxu0 0
  %726 = vmatprep.subr.bf16.mxu0 0
  %727 = vmatpush1.bf16.msra.mxu0 0
  %728 = vmatprep.subr.bf16.mxu0 0
  %729 = vmatpush1.bf16.msra.mxu0 0
  %730 = vmatprep.subr.bf16.mxu0 0
  %731 = vmatpush1.bf16.msra.mxu0 0
  %732 = vmatprep.subr.bf16.mxu0 0
  %733 = vmatpush1.bf16.msra.mxu0 0
  %734 = vmatprep.subr.bf16.mxu0 0
  %735 = vmatpush1.bf16.msra.mxu0 0
  %736 = vmatprep.subr.bf16.mxu0 0
  %737 = vmatpush1.bf16.msra.mxu0 0
  %738 = vmatprep.subr.bf16.mxu0 %v716
  %739 = vmatpush1.bf16.msra.mxu0 %v713
  %740 = vmatprep.subr.bf16.mxu0 0
  %741 = vmatpush2.bf16.msra.mxu0 0
  %742 = vmatprep.subr.bf16.mxu0 0
  %743 = vmatpush2.bf16.msra.mxu0 0
  %744 = vmatprep.subr.bf16.mxu0 0
  %745 = vmatpush2.bf16.msra.mxu0 0
  %746 = vmatprep.subr.bf16.mxu0 0
  %747 = vmatpush2.bf16.msra.mxu0 0
  %748 = vmatprep.subr.bf16.mxu0 0
  %749 = vmatpush2.bf16.msra.mxu0 0
  %750 = vmatprep.subr.bf16.mxu0 0
  %751 = vmatpush2.bf16.msra.mxu0 0
  %752 = vmatprep.subr.bf16.mxu0 0
  %753 = vmatpush2.bf16.msra.mxu0 0
  %754 = vmatprep.subr.bf16.mxu0 0
  %755 = vmatpush2.bf16.msra.mxu0 0
  %756 = vmatprep.mubr.bf16.mxu0 0
  %757 = vmatmul.mubr.bf16.gmra.mxu0 %v710
  %v758 = vpop.f32.mrf.mxu0
  %v759 = vadd.f32 0.0, %v758
  %v760 = vpop.f32.mrf.mxu0
  %v761 = vadd.f32 0.0, %v760
  %v762 = vpop.f32.mrf.mxu0
  %v763 = vpop.f32.mrf.mxu0
  %764 = vdwg.mxu0
  %765 = vmatprep.subr.bf16.mxu0 0
  %766 = vmatpush1.bf16.msra.mxu0 0
  %767 = vmatprep.subr.bf16.mxu0 0
  %768 = vmatpush1.bf16.msra.mxu0 0
  %769 = vmatprep.subr.bf16.mxu0 0
  %770 = vmatpush1.bf16.msra.mxu0 0
  %771 = vmatprep.subr.bf16.mxu0 0
  %772 = vmatpush1.bf16.msra.mxu0 0
  %773 = vmatprep.subr.bf16.mxu0 0
  %774 = vmatpush1.bf16.msra.mxu0 0
  %775 = vmatprep.subr.bf16.mxu0 0
  %776 = vmatpush1.bf16.msra.mxu0 0
  %777 = vmatprep.subr.bf16.mxu0 0
  %778 = vmatpush1.bf16.msra.mxu0 0
  %779 = vmatprep.subr.bf16.mxu0 %v722
  %780 = vmatpush1.bf16.msra.mxu0 %v719
  %781 = vmatprep.subr.bf16.mxu0 0
  %782 = vmatpush2.bf16.msra.mxu0 0
  %783 = vmatprep.subr.bf16.mxu0 0
  %784 = vmatpush2.bf16.msra.mxu0 0
  %785 = vmatprep.subr.bf16.mxu0 0
  %786 = vmatpush2.bf16.msra.mxu0 0
  %787 = vmatprep.subr.bf16.mxu0 0
  %788 = vmatpush2.bf16.msra.mxu0 0
  %789 = vmatprep.subr.bf16.mxu0 0
  %790 = vmatpush2.bf16.msra.mxu0 0
  %791 = vmatprep.subr.bf16.mxu0 0
  %792 = vmatpush2.bf16.msra.mxu0 0
  %793 = vmatprep.subr.bf16.mxu0 0
  %794 = vmatpush2.bf16.msra.mxu0 0
  %795 = vmatprep.subr.bf16.mxu0 0
  %796 = vmatpush2.bf16.msra.mxu0 0
  %797 = vmatprep.mubr.bf16.mxu0 0
  %798 = vmatmul.mubr.bf16.gmra.mxu0 %v710
  %v799 = vpop.f32.mrf.mxu0
  %v800 = vadd.f32 0.0, %v799
  %v801 = vpop.f32.mrf.mxu0
  %v802 = vadd.f32 0.0, %v801
  %v803 = vpop.f32.mrf.mxu0
  %v804 = vpop.f32.mrf.mxu0
  %805 = vdwg.mxu0
  %v806 = vadd.f32 %v699, %v759
  %v807 = vadd.f32 %v700, %v761
  %v808 = vadd.f32 %v701, %v800
  %v809 = vadd.f32 %v702, %v802
  %s810 = scalar_lea.vmem %s1, 20
  %v811 = vld [vmem:[%s810] sm:$0xf]
  %v812 = vpack.c.bf16 %v592, %v592
  %v813 = vpack.c.bf16 %v593, %v593
  %v814 = vpack.c.bf16 %v594, %v594
  %v815 = vpack.c.bf16 %v595, %v595
  %v817 = vsel %vm261, %v811, 0
  %v820 = vsel %vm265, %v812, 0
  %v823 = vsel %vm265, %v813, 0
  %v826 = vsel %vm265, %v814, 0
  %v829 = vsel %vm265, %v815, 0
  %831 = vmatprep.subr.bf16.mxu0 0
  %832 = vmatpush1.bf16.msra.mxu0 0
  %833 = vmatprep.subr.bf16.mxu0 0
  %834 = vmatpush1.bf16.msra.mxu0 0
  %835 = vmatprep.subr.bf16.mxu0 0
  %836 = vmatpush1.bf16.msra.mxu0 0
  %837 = vmatprep.subr.bf16.mxu0 0
  %838 = vmatpush1.bf16.msra.mxu0 0
  %839 = vmatprep.subr.bf16.mxu0 0
  %840 = vmatpush1.bf16.msra.mxu0 0
  %841 = vmatprep.subr.bf16.mxu0 0
  %842 = vmatpush1.bf16.msra.mxu0 0
  %843 = vmatprep.subr.bf16.mxu0 0
  %844 = vmatpush1.bf16.msra.mxu0 0
  %845 = vmatprep.subr.bf16.mxu0 %v823
  %846 = vmatpush1.bf16.msra.mxu0 %v820
  %847 = vmatprep.subr.bf16.mxu0 0
  %848 = vmatpush2.bf16.msra.mxu0 0
  %849 = vmatprep.subr.bf16.mxu0 0
  %850 = vmatpush2.bf16.msra.mxu0 0
  %851 = vmatprep.subr.bf16.mxu0 0
  %852 = vmatpush2.bf16.msra.mxu0 0
  %853 = vmatprep.subr.bf16.mxu0 0
  %854 = vmatpush2.bf16.msra.mxu0 0
  %855 = vmatprep.subr.bf16.mxu0 0
  %856 = vmatpush2.bf16.msra.mxu0 0
  %857 = vmatprep.subr.bf16.mxu0 0
  %858 = vmatpush2.bf16.msra.mxu0 0
  %859 = vmatprep.subr.bf16.mxu0 0
  %860 = vmatpush2.bf16.msra.mxu0 0
  %861 = vmatprep.subr.bf16.mxu0 0
  %862 = vmatpush2.bf16.msra.mxu0 0
  %863 = vmatprep.mubr.bf16.mxu0 0
  %864 = vmatmul.mubr.bf16.gmra.mxu0 %v817
  %v865 = vpop.f32.mrf.mxu0
  %v866 = vadd.f32 0.0, %v865
  %v867 = vpop.f32.mrf.mxu0
  %v868 = vadd.f32 0.0, %v867
  %v869 = vpop.f32.mrf.mxu0
  %v870 = vpop.f32.mrf.mxu0
  %871 = vdwg.mxu0
  %872 = vmatprep.subr.bf16.mxu0 0
  %873 = vmatpush1.bf16.msra.mxu0 0
  %874 = vmatprep.subr.bf16.mxu0 0
  %875 = vmatpush1.bf16.msra.mxu0 0
  %876 = vmatprep.subr.bf16.mxu0 0
  %877 = vmatpush1.bf16.msra.mxu0 0
  %878 = vmatprep.subr.bf16.mxu0 0
  %879 = vmatpush1.bf16.msra.mxu0 0
  %880 = vmatprep.subr.bf16.mxu0 0
  %881 = vmatpush1.bf16.msra.mxu0 0
  %882 = vmatprep.subr.bf16.mxu0 0
  %883 = vmatpush1.bf16.msra.mxu0 0
  %884 = vmatprep.subr.bf16.mxu0 0
  %885 = vmatpush1.bf16.msra.mxu0 0
  %886 = vmatprep.subr.bf16.mxu0 %v829
  %887 = vmatpush1.bf16.msra.mxu0 %v826
  %888 = vmatprep.subr.bf16.mxu0 0
  %889 = vmatpush2.bf16.msra.mxu0 0
  %890 = vmatprep.subr.bf16.mxu0 0
  %891 = vmatpush2.bf16.msra.mxu0 0
  %892 = vmatprep.subr.bf16.mxu0 0
  %893 = vmatpush2.bf16.msra.mxu0 0
  %894 = vmatprep.subr.bf16.mxu0 0
  %895 = vmatpush2.bf16.msra.mxu0 0
  %896 = vmatprep.subr.bf16.mxu0 0
  %897 = vmatpush2.bf16.msra.mxu0 0
  %898 = vmatprep.subr.bf16.mxu0 0
  %899 = vmatpush2.bf16.msra.mxu0 0
  %900 = vmatprep.subr.bf16.mxu0 0
  %901 = vmatpush2.bf16.msra.mxu0 0
  %902 = vmatprep.subr.bf16.mxu0 0
  %903 = vmatpush2.bf16.msra.mxu0 0
  %904 = vmatprep.mubr.bf16.mxu0 0
  %905 = vmatmul.mubr.bf16.gmra.mxu0 %v817
  %v906 = vpop.f32.mrf.mxu0
  %v907 = vadd.f32 0.0, %v906
  %v908 = vpop.f32.mrf.mxu0
  %v909 = vadd.f32 0.0, %v908
  %v910 = vpop.f32.mrf.mxu0
  %v911 = vpop.f32.mrf.mxu0
  %912 = vdwg.mxu0
  %v913 = vadd.f32 %v806, %v866
  %v914 = vadd.f32 %v807, %v868
  %v915 = vadd.f32 %v808, %v907
  %v916 = vadd.f32 %v809, %v909
  %917 = vrot.lane.b32.xlu0 %v212, 1
  %v918 = vpop.permute.xlu0 %917
  %919 = vrot.lane.b32.xlu0 %v213, 1
  %v920 = vpop.permute.xlu0 %919
  %921 = vrot.lane.b32.xlu0 %v214, 1
  %v922 = vpop.permute.xlu0 %921
  %923 = vrot.lane.b32.xlu0 %v215, 1
  %v924 = vpop.permute.xlu0 %923
  %v925 = vsel %vm224, %v922, %v924
  %v926 = vsel %vm224, %v920, %v922
  %v927 = vsel %vm224, %v918, %v920
  %v928 = vsel %vm224, %v924, %v918
  %929 = vrot.lane.b32.xlu0 %v212, 127
  %v930 = vpop.permute.xlu0 %929
  %931 = vrot.lane.b32.xlu0 %v213, 127
  %v932 = vpop.permute.xlu0 %931
  %933 = vrot.lane.b32.xlu0 %v214, 127
  %v934 = vpop.permute.xlu0 %933
  %935 = vrot.lane.b32.xlu0 %v215, 127
  %v936 = vpop.permute.xlu0 %935
  %v937 = vsel %vm237, %v934, %v936
  %v938 = vsel %vm237, %v932, %v934
  %v939 = vsel %vm237, %v930, %v932
  %v940 = vsel %vm237, %v936, %v930
  %v941 = vsel %vm165, %v939, %v928
  %v942 = vsel %vm166, %v938, %v927
  %v943 = vsel %vm167, %v937, %v926
  %v944 = vsel %vm168, %v940, %v925
  %v945 = vsel %vm177, %v928, %v939
  %v946 = vsel %vm178, %v927, %v938
  %v947 = vsel %vm179, %v926, %v937
  %v948 = vsel %vm180, %v925, %v940
  %s949 = scalar_lea.vmem %s1, 24
  %v950 = vld [vmem:[%s949] sm:$0xf]
  %v951 = vpack.c.bf16 %v941, %v941
  %v952 = vpack.c.bf16 %v942, %v942
  %v953 = vpack.c.bf16 %v943, %v943
  %v954 = vpack.c.bf16 %v944, %v944
  %v956 = vsel %vm261, %v950, 0
  %v959 = vsel %vm265, %v951, 0
  %v962 = vsel %vm265, %v952, 0
  %v965 = vsel %vm265, %v953, 0
  %v968 = vsel %vm265, %v954, 0
  %970 = vmatprep.subr.bf16.mxu0 0
  %971 = vmatpush1.bf16.msra.mxu0 0
  %972 = vmatprep.subr.bf16.mxu0 0
  %973 = vmatpush1.bf16.msra.mxu0 0
  %974 = vmatprep.subr.bf16.mxu0 0
  %975 = vmatpush1.bf16.msra.mxu0 0
  %976 = vmatprep.subr.bf16.mxu0 0
  %977 = vmatpush1.bf16.msra.mxu0 0
  %978 = vmatprep.subr.bf16.mxu0 0
  %979 = vmatpush1.bf16.msra.mxu0 0
  %980 = vmatprep.subr.bf16.mxu0 0
  %981 = vmatpush1.bf16.msra.mxu0 0
  %982 = vmatprep.subr.bf16.mxu0 0
  %983 = vmatpush1.bf16.msra.mxu0 0
  %984 = vmatprep.subr.bf16.mxu0 %v962
  %985 = vmatpush1.bf16.msra.mxu0 %v959
  %986 = vmatprep.subr.bf16.mxu0 0
  %987 = vmatpush2.bf16.msra.mxu0 0
  %988 = vmatprep.subr.bf16.mxu0 0
  %989 = vmatpush2.bf16.msra.mxu0 0
  %990 = vmatprep.subr.bf16.mxu0 0
  %991 = vmatpush2.bf16.msra.mxu0 0
  %992 = vmatprep.subr.bf16.mxu0 0
  %993 = vmatpush2.bf16.msra.mxu0 0
  %994 = vmatprep.subr.bf16.mxu0 0
  %995 = vmatpush2.bf16.msra.mxu0 0
  %996 = vmatprep.subr.bf16.mxu0 0
  %997 = vmatpush2.bf16.msra.mxu0 0
  %998 = vmatprep.subr.bf16.mxu0 0
  %999 = vmatpush2.bf16.msra.mxu0 0
  %1000 = vmatprep.subr.bf16.mxu0 0
  %1001 = vmatpush2.bf16.msra.mxu0 0
  %1002 = vmatprep.mubr.bf16.mxu0 0
  %1003 = vmatmul.mubr.bf16.gmra.mxu0 %v956
  %v1004 = vpop.f32.mrf.mxu0
  %v1005 = vadd.f32 0.0, %v1004
  %v1006 = vpop.f32.mrf.mxu0
  %v1007 = vadd.f32 0.0, %v1006
  %v1008 = vpop.f32.mrf.mxu0
  %v1009 = vpop.f32.mrf.mxu0
  %1010 = vdwg.mxu0
  %1011 = vmatprep.subr.bf16.mxu0 0
  %1012 = vmatpush1.bf16.msra.mxu0 0
  %1013 = vmatprep.subr.bf16.mxu0 0
  %1014 = vmatpush1.bf16.msra.mxu0 0
  %1015 = vmatprep.subr.bf16.mxu0 0
  %1016 = vmatpush1.bf16.msra.mxu0 0
  %1017 = vmatprep.subr.bf16.mxu0 0
  %1018 = vmatpush1.bf16.msra.mxu0 0
  %1019 = vmatprep.subr.bf16.mxu0 0
  %1020 = vmatpush1.bf16.msra.mxu0 0
  %1021 = vmatprep.subr.bf16.mxu0 0
  %1022 = vmatpush1.bf16.msra.mxu0 0
  %1023 = vmatprep.subr.bf16.mxu0 0
  %1024 = vmatpush1.bf16.msra.mxu0 0
  %1025 = vmatprep.subr.bf16.mxu0 %v968
  %1026 = vmatpush1.bf16.msra.mxu0 %v965
  %1027 = vmatprep.subr.bf16.mxu0 0
  %1028 = vmatpush2.bf16.msra.mxu0 0
  %1029 = vmatprep.subr.bf16.mxu0 0
  %1030 = vmatpush2.bf16.msra.mxu0 0
  %1031 = vmatprep.subr.bf16.mxu0 0
  %1032 = vmatpush2.bf16.msra.mxu0 0
  %1033 = vmatprep.subr.bf16.mxu0 0
  %1034 = vmatpush2.bf16.msra.mxu0 0
  %1035 = vmatprep.subr.bf16.mxu0 0
  %1036 = vmatpush2.bf16.msra.mxu0 0
  %1037 = vmatprep.subr.bf16.mxu0 0
  %1038 = vmatpush2.bf16.msra.mxu0 0
  %1039 = vmatprep.subr.bf16.mxu0 0
  %1040 = vmatpush2.bf16.msra.mxu0 0
  %1041 = vmatprep.subr.bf16.mxu0 0
  %1042 = vmatpush2.bf16.msra.mxu0 0
  %1043 = vmatprep.mubr.bf16.mxu0 0
  %1044 = vmatmul.mubr.bf16.gmra.mxu0 %v956
  %v1045 = vpop.f32.mrf.mxu0
  %v1046 = vadd.f32 0.0, %v1045
  %v1047 = vpop.f32.mrf.mxu0
  %v1048 = vadd.f32 0.0, %v1047
  %v1049 = vpop.f32.mrf.mxu0
  %v1050 = vpop.f32.mrf.mxu0
  %1051 = vdwg.mxu0
  %v1052 = vadd.f32 %v913, %v1005
  %v1053 = vadd.f32 %v914, %v1007
  %v1054 = vadd.f32 %v915, %v1046
  %v1055 = vadd.f32 %v916, %v1048
  %s1056 = scalar_lea.vmem %s1, 28
  %v1057 = vld [vmem:[%s1056] sm:$0xf]
  %v1058 = vpack.c.bf16 %v212, %v212
  %v1059 = vpack.c.bf16 %v213, %v213
  %v1060 = vpack.c.bf16 %v214, %v214
  %v1061 = vpack.c.bf16 %v215, %v215
  %v1063 = vsel %vm261, %v1057, 0
  %v1066 = vsel %vm265, %v1058, 0
  %v1069 = vsel %vm265, %v1059, 0
  %v1072 = vsel %vm265, %v1060, 0
  %v1075 = vsel %vm265, %v1061, 0
  %1077 = vmatprep.subr.bf16.mxu0 0
  %1078 = vmatpush1.bf16.msra.mxu0 0
  %1079 = vmatprep.subr.bf16.mxu0 0
  %1080 = vmatpush1.bf16.msra.mxu0 0
  %1081 = vmatprep.subr.bf16.mxu0 0
  %1082 = vmatpush1.bf16.msra.mxu0 0
  %1083 = vmatprep.subr.bf16.mxu0 0
  %1084 = vmatpush1.bf16.msra.mxu0 0
  %1085 = vmatprep.subr.bf16.mxu0 0
  %1086 = vmatpush1.bf16.msra.mxu0 0
  %1087 = vmatprep.subr.bf16.mxu0 0
  %1088 = vmatpush1.bf16.msra.mxu0 0
  %1089 = vmatprep.subr.bf16.mxu0 0
  %1090 = vmatpush1.bf16.msra.mxu0 0
  %1091 = vmatprep.subr.bf16.mxu0 %v1069
  %1092 = vmatpush1.bf16.msra.mxu0 %v1066
  %1093 = vmatprep.subr.bf16.mxu0 0
  %1094 = vmatpush2.bf16.msra.mxu0 0
  %1095 = vmatprep.subr.bf16.mxu0 0
  %1096 = vmatpush2.bf16.msra.mxu0 0
  %1097 = vmatprep.subr.bf16.mxu0 0
  %1098 = vmatpush2.bf16.msra.mxu0 0
  %1099 = vmatprep.subr.bf16.mxu0 0
  %1100 = vmatpush2.bf16.msra.mxu0 0
  %1101 = vmatprep.subr.bf16.mxu0 0
  %1102 = vmatpush2.bf16.msra.mxu0 0
  %1103 = vmatprep.subr.bf16.mxu0 0
  %1104 = vmatpush2.bf16.msra.mxu0 0
  %1105 = vmatprep.subr.bf16.mxu0 0
  %1106 = vmatpush2.bf16.msra.mxu0 0
  %1107 = vmatprep.subr.bf16.mxu0 0
  %1108 = vmatpush2.bf16.msra.mxu0 0
  %1109 = vmatprep.mubr.bf16.mxu0 0
  %1110 = vmatmul.mubr.bf16.gmra.mxu0 %v1063
  %v1111 = vpop.f32.mrf.mxu0
  %v1112 = vadd.f32 0.0, %v1111
  %v1113 = vpop.f32.mrf.mxu0
  %v1114 = vadd.f32 0.0, %v1113
  %v1115 = vpop.f32.mrf.mxu0
  %v1116 = vpop.f32.mrf.mxu0
  %1117 = vdwg.mxu0
  %1118 = vmatprep.subr.bf16.mxu0 0
  %1119 = vmatpush1.bf16.msra.mxu0 0
  %1120 = vmatprep.subr.bf16.mxu0 0
  %1121 = vmatpush1.bf16.msra.mxu0 0
  %1122 = vmatprep.subr.bf16.mxu0 0
  %1123 = vmatpush1.bf16.msra.mxu0 0
  %1124 = vmatprep.subr.bf16.mxu0 0
  %1125 = vmatpush1.bf16.msra.mxu0 0
  %1126 = vmatprep.subr.bf16.mxu0 0
  %1127 = vmatpush1.bf16.msra.mxu0 0
  %1128 = vmatprep.subr.bf16.mxu0 0
  %1129 = vmatpush1.bf16.msra.mxu0 0
  %1130 = vmatprep.subr.bf16.mxu0 0
  %1131 = vmatpush1.bf16.msra.mxu0 0
  %1132 = vmatprep.subr.bf16.mxu0 %v1075
  %1133 = vmatpush1.bf16.msra.mxu0 %v1072
  %1134 = vmatprep.subr.bf16.mxu0 0
  %1135 = vmatpush2.bf16.msra.mxu0 0
  %1136 = vmatprep.subr.bf16.mxu0 0
  %1137 = vmatpush2.bf16.msra.mxu0 0
  %1138 = vmatprep.subr.bf16.mxu0 0
  %1139 = vmatpush2.bf16.msra.mxu0 0
  %1140 = vmatprep.subr.bf16.mxu0 0
  %1141 = vmatpush2.bf16.msra.mxu0 0
  %1142 = vmatprep.subr.bf16.mxu0 0
  %1143 = vmatpush2.bf16.msra.mxu0 0
  %1144 = vmatprep.subr.bf16.mxu0 0
  %1145 = vmatpush2.bf16.msra.mxu0 0
  %1146 = vmatprep.subr.bf16.mxu0 0
  %1147 = vmatpush2.bf16.msra.mxu0 0
  %1148 = vmatprep.subr.bf16.mxu0 0
  %1149 = vmatpush2.bf16.msra.mxu0 0
  %1150 = vmatprep.mubr.bf16.mxu0 0
  %1151 = vmatmul.mubr.bf16.gmra.mxu0 %v1063
  %v1152 = vpop.f32.mrf.mxu0
  %v1153 = vadd.f32 0.0, %v1152
  %v1154 = vpop.f32.mrf.mxu0
  %v1155 = vadd.f32 0.0, %v1154
  %v1156 = vpop.f32.mrf.mxu0
  %v1157 = vpop.f32.mrf.mxu0
  %1158 = vdwg.mxu0
  %v1159 = vadd.f32 %v1052, %v1112
  %v1160 = vadd.f32 %v1053, %v1114
  %v1161 = vadd.f32 %v1054, %v1153
  %v1162 = vadd.f32 %v1055, %v1155
  %s1163 = scalar_lea.vmem %s1, 32
  %v1164 = vld [vmem:[%s1163] sm:$0xf]
  %v1165 = vpack.c.bf16 %v945, %v945
  %v1166 = vpack.c.bf16 %v946, %v946
  %v1167 = vpack.c.bf16 %v947, %v947
  %v1168 = vpack.c.bf16 %v948, %v948
  %v1170 = vsel %vm261, %v1164, 0
  %v1173 = vsel %vm265, %v1165, 0
  %v1176 = vsel %vm265, %v1166, 0
  %v1179 = vsel %vm265, %v1167, 0
  %v1182 = vsel %vm265, %v1168, 0
  %1184 = vmatprep.subr.bf16.mxu0 0
  %1185 = vmatpush1.bf16.msra.mxu0 0
  %1186 = vmatprep.subr.bf16.mxu0 0
  %1187 = vmatpush1.bf16.msra.mxu0 0
  %1188 = vmatprep.subr.bf16.mxu0 0
  %1189 = vmatpush1.bf16.msra.mxu0 0
  %1190 = vmatprep.subr.bf16.mxu0 0
  %1191 = vmatpush1.bf16.msra.mxu0 0
  %1192 = vmatprep.subr.bf16.mxu0 0
  %1193 = vmatpush1.bf16.msra.mxu0 0
  %1194 = vmatprep.subr.bf16.mxu0 0
  %1195 = vmatpush1.bf16.msra.mxu0 0
  %1196 = vmatprep.subr.bf16.mxu0 0
  %1197 = vmatpush1.bf16.msra.mxu0 0
  %1198 = vmatprep.subr.bf16.mxu0 %v1176
  %1199 = vmatpush1.bf16.msra.mxu0 %v1173
  %1200 = vmatprep.subr.bf16.mxu0 0
  %1201 = vmatpush2.bf16.msra.mxu0 0
  %1202 = vmatprep.subr.bf16.mxu0 0
  %1203 = vmatpush2.bf16.msra.mxu0 0
  %1204 = vmatprep.subr.bf16.mxu0 0
  %1205 = vmatpush2.bf16.msra.mxu0 0
  %1206 = vmatprep.subr.bf16.mxu0 0
  %1207 = vmatpush2.bf16.msra.mxu0 0
  %1208 = vmatprep.subr.bf16.mxu0 0
  %1209 = vmatpush2.bf16.msra.mxu0 0
  %1210 = vmatprep.subr.bf16.mxu0 0
  %1211 = vmatpush2.bf16.msra.mxu0 0
  %1212 = vmatprep.subr.bf16.mxu0 0
  %1213 = vmatpush2.bf16.msra.mxu0 0
  %1214 = vmatprep.subr.bf16.mxu0 0
  %1215 = vmatpush2.bf16.msra.mxu0 0
  %1216 = vmatprep.mubr.bf16.mxu0 0
  %1217 = vmatmul.mubr.bf16.gmra.mxu0 %v1170
  %v1218 = vpop.f32.mrf.mxu0
  %v1219 = vadd.f32 0.0, %v1218
  %v1220 = vpop.f32.mrf.mxu0
  %v1221 = vadd.f32 0.0, %v1220
  %v1222 = vpop.f32.mrf.mxu0
  %v1223 = vpop.f32.mrf.mxu0
  %1224 = vdwg.mxu0
  %1225 = vmatprep.subr.bf16.mxu0 0
  %1226 = vmatpush1.bf16.msra.mxu0 0
  %1227 = vmatprep.subr.bf16.mxu0 0
  %1228 = vmatpush1.bf16.msra.mxu0 0
  %1229 = vmatprep.subr.bf16.mxu0 0
  %1230 = vmatpush1.bf16.msra.mxu0 0
  %1231 = vmatprep.subr.bf16.mxu0 0
  %1232 = vmatpush1.bf16.msra.mxu0 0
  %1233 = vmatprep.subr.bf16.mxu0 0
  %1234 = vmatpush1.bf16.msra.mxu0 0
  %1235 = vmatprep.subr.bf16.mxu0 0
  %1236 = vmatpush1.bf16.msra.mxu0 0
  %1237 = vmatprep.subr.bf16.mxu0 0
  %1238 = vmatpush1.bf16.msra.mxu0 0
  %1239 = vmatprep.subr.bf16.mxu0 %v1182
  %1240 = vmatpush1.bf16.msra.mxu0 %v1179
  %1241 = vmatprep.subr.bf16.mxu0 0
  %1242 = vmatpush2.bf16.msra.mxu0 0
  %1243 = vmatprep.subr.bf16.mxu0 0
  %1244 = vmatpush2.bf16.msra.mxu0 0
  %1245 = vmatprep.subr.bf16.mxu0 0
  %1246 = vmatpush2.bf16.msra.mxu0 0
  %1247 = vmatprep.subr.bf16.mxu0 0
  %1248 = vmatpush2.bf16.msra.mxu0 0
  %1249 = vmatprep.subr.bf16.mxu0 0
  %1250 = vmatpush2.bf16.msra.mxu0 0
  %1251 = vmatprep.subr.bf16.mxu0 0
  %1252 = vmatpush2.bf16.msra.mxu0 0
  %1253 = vmatprep.subr.bf16.mxu0 0
  %1254 = vmatpush2.bf16.msra.mxu0 0
  %1255 = vmatprep.subr.bf16.mxu0 0
  %1256 = vmatpush2.bf16.msra.mxu0 0
  %1257 = vmatprep.mubr.bf16.mxu0 0
  %1258 = vmatmul.mubr.bf16.gmra.mxu0 %v1170
  %v1259 = vpop.f32.mrf.mxu0
  %v1260 = vadd.f32 0.0, %v1259
  %v1261 = vpop.f32.mrf.mxu0
  %v1262 = vadd.f32 0.0, %v1261
  %v1263 = vpop.f32.mrf.mxu0
  %v1264 = vpop.f32.mrf.mxu0
  %1265 = vdwg.mxu0
  %v1266 = vadd.f32 %v1159, %v1219
  %v1267 = vadd.f32 %v1160, %v1221
  %v1268 = vadd.f32 %v1161, %v1260
  %v1269 = vadd.f32 %v1162, %v1262
  %1271 = vset.pattern.permute.xlu0 0
  %1272 = vperm.xlu0 %1271, %v181
  %v1273 = vpop.permute.xlu0 %1272
  %v1275 = vadd.f32 %v1266, %v1273
  %v1276 = vadd.f32 %v1267, %v1273
  %v1277 = vadd.f32 %v1268, %v1273
  %v1278 = vadd.f32 %v1269, %v1273
  %v1279 = vld [vmem:[%s2] sm:$0xff]
  %v1280 = vmul.f32 %v1275, %v1275
  %v1281 = vmul.f32 %v1276, %v1276
  %v1282 = vmul.f32 %v1277, %v1277
  %v1283 = vmul.f32 %v1278, %v1278
  %1284 = vset.pattern.permute.xlu0 1
  %1285 = vperm.xlu0 %1284, %v181
  %v1286 = vpop.permute.xlu0 %1285
  %v1289 = vsel %vm261, %v1279, 0
  %1291 = vmatprep.subr.mxu0 0.0
  %1292 = vmatpush1.msra.mxu0 0.0
  %1293 = vmatprep.subr.mxu0 0.0
  %1294 = vmatpush1.msra.mxu0 0.0
  %1295 = vmatprep.subr.mxu0 0.0
  %1296 = vmatpush1.msra.mxu0 0.0
  %1297 = vmatprep.subr.mxu0 0.0
  %1298 = vmatpush1.msra.mxu0 0.0
  %1299 = vmatprep.subr.mxu0 0.0
  %1300 = vmatpush1.msra.mxu0 0.0
  %1301 = vmatprep.subr.mxu0 0.0
  %1302 = vmatpush1.msra.mxu0 0.0
  %1303 = vmatprep.subr.mxu0 0.0
  %1304 = vmatpush1.msra.mxu0 0.0
  %1305 = vmatprep.subr.mxu0 0.0
  %1306 = vmatpush1.msra.mxu0 0.0
  %1307 = vmatprep.subr.mxu0 0.0
  %1308 = vmatpush1.msra.mxu0 0.0
  %1309 = vmatprep.subr.mxu0 0.0
  %1310 = vmatpush1.msra.mxu0 0.0
  %1311 = vmatprep.subr.mxu0 0.0
  %1312 = vmatpush1.msra.mxu0 0.0
  %1313 = vmatprep.subr.mxu0 0.0
  %1314 = vmatpush1.msra.mxu0 0.0
  %1315 = vmatprep.subr.mxu0 0.0
  %1316 = vmatpush1.msra.mxu0 0.0
  %1317 = vmatprep.subr.mxu0 0.0
  %1318 = vmatpush1.msra.mxu0 0.0
  %1319 = vmatprep.subr.mxu0 0.0
  %1320 = vmatpush1.msra.mxu0 0.0
  %1321 = vmatprep.subr.mxu0 %v1281
  %1322 = vmatpush1.msra.mxu0 %v1280
  %1323 = vmatprep.subr.mxu0 0.0
  %1324 = vmatpush2.msra.mxu0 0.0
  %1325 = vmatprep.subr.mxu0 0.0
  %1326 = vmatpush2.msra.mxu0 0.0
  %1327 = vmatprep.subr.mxu0 0.0
  %1328 = vmatpush2.msra.mxu0 0.0
  %1329 = vmatprep.subr.mxu0 0.0
  %1330 = vmatpush2.msra.mxu0 0.0
  %1331 = vmatprep.subr.mxu0 0.0
  %1332 = vmatpush2.msra.mxu0 0.0
  %1333 = vmatprep.subr.mxu0 0.0
  %1334 = vmatpush2.msra.mxu0 0.0
  %1335 = vmatprep.subr.mxu0 0.0
  %1336 = vmatpush2.msra.mxu0 0.0
  %1337 = vmatprep.subr.mxu0 0.0
  %1338 = vmatpush2.msra.mxu0 0.0
  %1339 = vmatprep.subr.mxu0 0.0
  %1340 = vmatpush2.msra.mxu0 0.0
  %1341 = vmatprep.subr.mxu0 0.0
  %1342 = vmatpush2.msra.mxu0 0.0
  %1343 = vmatprep.subr.mxu0 0.0
  %1344 = vmatpush2.msra.mxu0 0.0
  %1345 = vmatprep.subr.mxu0 0.0
  %1346 = vmatpush2.msra.mxu0 0.0
  %1347 = vmatprep.subr.mxu0 0.0
  %1348 = vmatpush2.msra.mxu0 0.0
  %1349 = vmatprep.subr.mxu0 0.0
  %1350 = vmatpush2.msra.mxu0 0.0
  %1351 = vmatprep.subr.mxu0 0.0
  %1352 = vmatpush2.msra.mxu0 0.0
  %1353 = vmatprep.subr.mxu0 0.0
  %1354 = vmatpush2.msra.mxu0 0.0
  %1355 = vmatprep.mubr.f32.mxu0 0.0
  %1356 = vmatmul.mubr.f32.gmra.mxu0 %v1289
  %v1357 = vpop.f32.mrf.mxu0
  %v1358 = vadd.f32 %v1286, %v1357
  %v1359 = vpop.f32.mrf.mxu0
  %v1360 = vadd.f32 %v1286, %v1359
  %1361 = vdwg.mxu0
  %1362 = vmatprep.subr.mxu0 0.0
  %1363 = vmatpush1.msra.mxu0 0.0
  %1364 = vmatprep.subr.mxu0 0.0
  %1365 = vmatpush1.msra.mxu0 0.0
  %1366 = vmatprep.subr.mxu0 0.0
  %1367 = vmatpush1.msra.mxu0 0.0
  %1368 = vmatprep.subr.mxu0 0.0
  %1369 = vmatpush1.msra.mxu0 0.0
  %1370 = vmatprep.subr.mxu0 0.0
  %1371 = vmatpush1.msra.mxu0 0.0
  %1372 = vmatprep.subr.mxu0 0.0
  %1373 = vmatpush1.msra.mxu0 0.0
  %1374 = vmatprep.subr.mxu0 0.0
  %1375 = vmatpush1.msra.mxu0 0.0
  %1376 = vmatprep.subr.mxu0 0.0
  %1377 = vmatpush1.msra.mxu0 0.0
  %1378 = vmatprep.subr.mxu0 0.0
  %1379 = vmatpush1.msra.mxu0 0.0
  %1380 = vmatprep.subr.mxu0 0.0
  %1381 = vmatpush1.msra.mxu0 0.0
  %1382 = vmatprep.subr.mxu0 0.0
  %1383 = vmatpush1.msra.mxu0 0.0
  %1384 = vmatprep.subr.mxu0 0.0
  %1385 = vmatpush1.msra.mxu0 0.0
  %1386 = vmatprep.subr.mxu0 0.0
  %1387 = vmatpush1.msra.mxu0 0.0
  %1388 = vmatprep.subr.mxu0 0.0
  %1389 = vmatpush1.msra.mxu0 0.0
  %1390 = vmatprep.subr.mxu0 0.0
  %1391 = vmatpush1.msra.mxu0 0.0
  %1392 = vmatprep.subr.mxu0 %v1283
  %1393 = vmatpush1.msra.mxu0 %v1282
  %1394 = vmatprep.subr.mxu0 0.0
  %1395 = vmatpush2.msra.mxu0 0.0
  %1396 = vmatprep.subr.mxu0 0.0
  %1397 = vmatpush2.msra.mxu0 0.0
  %1398 = vmatprep.subr.mxu0 0.0
  %1399 = vmatpush2.msra.mxu0 0.0
  %1400 = vmatprep.subr.mxu0 0.0
  %1401 = vmatpush2.msra.mxu0 0.0
  %1402 = vmatprep.subr.mxu0 0.0
  %1403 = vmatpush2.msra.mxu0 0.0
  %1404 = vmatprep.subr.mxu0 0.0
  %1405 = vmatpush2.msra.mxu0 0.0
  %1406 = vmatprep.subr.mxu0 0.0
  %1407 = vmatpush2.msra.mxu0 0.0
  %1408 = vmatprep.subr.mxu0 0.0
  %1409 = vmatpush2.msra.mxu0 0.0
  %1410 = vmatprep.subr.mxu0 0.0
  %1411 = vmatpush2.msra.mxu0 0.0
  %1412 = vmatprep.subr.mxu0 0.0
  %1413 = vmatpush2.msra.mxu0 0.0
  %1414 = vmatprep.subr.mxu0 0.0
  %1415 = vmatpush2.msra.mxu0 0.0
  %1416 = vmatprep.subr.mxu0 0.0
  %1417 = vmatpush2.msra.mxu0 0.0
  %1418 = vmatprep.subr.mxu0 0.0
  %1419 = vmatpush2.msra.mxu0 0.0
  %1420 = vmatprep.subr.mxu0 0.0
  %1421 = vmatpush2.msra.mxu0 0.0
  %1422 = vmatprep.subr.mxu0 0.0
  %1423 = vmatpush2.msra.mxu0 0.0
  %1424 = vmatprep.subr.mxu0 0.0
  %1425 = vmatpush2.msra.mxu0 0.0
  %1426 = vmatprep.mubr.f32.mxu0 0.0
  %1427 = vmatmul.mubr.f32.gmra.mxu0 %v1289
  %v1428 = vpop.f32.mrf.mxu0
  %v1429 = vadd.f32 %v1286, %v1428
  %v1430 = vpop.f32.mrf.mxu0
  %v1431 = vadd.f32 %v1286, %v1430
  %1432 = vdwg.mxu0
  %v1433 = vrsqrt.pop %v1358
  %v1434 = vmul.f32 %v1358, %v1433
  %vm1435 = vcmp.eq.f32.partialorder %v1358, inf
  %v1436 = vsel %vm1435, %v1358, %v1434
  %vm1437 = vcmp.eq.f32.partialorder %v1358, 0.0
  %v1438 = vand.u32 %v1358, 2147483648
  %v1439 = vsel %vm1437, %v1438, %v1436
  %v1440 = vrsqrt.pop %v1360
  %v1441 = vmul.f32 %v1360, %v1440
  %vm1442 = vcmp.eq.f32.partialorder %v1360, inf
  %v1443 = vsel %vm1442, %v1360, %v1441
  %vm1444 = vcmp.eq.f32.partialorder %v1360, 0.0
  %v1445 = vand.u32 %v1360, 2147483648
  %v1446 = vsel %vm1444, %v1445, %v1443
  %v1447 = vrsqrt.pop %v1429
  %v1448 = vmul.f32 %v1429, %v1447
  %vm1449 = vcmp.eq.f32.partialorder %v1429, inf
  %v1450 = vsel %vm1449, %v1429, %v1448
  %vm1451 = vcmp.eq.f32.partialorder %v1429, 0.0
  %v1452 = vand.u32 %v1429, 2147483648
  %v1453 = vsel %vm1451, %v1452, %v1450
  %v1454 = vrsqrt.pop %v1431
  %v1455 = vmul.f32 %v1431, %v1454
  %vm1456 = vcmp.eq.f32.partialorder %v1431, inf
  %v1457 = vsel %vm1456, %v1431, %v1455
  %vm1458 = vcmp.eq.f32.partialorder %v1431, 0.0
  %v1459 = vand.u32 %v1431, 2147483648
  %v1460 = vsel %vm1458, %v1459, %v1457
  %v1461 = vmul.f32 %v1275, %v1439
  %v1462 = vmul.f32 %v1276, %v1446
  %v1463 = vmul.f32 %v1277, %v1453
  %v1464 = vmul.f32 %v1278, %v1460
  %vm1465 = vcmp.ge.f32.partialorder %v1461, 0.0
  %vm1466 = vcmp.ge.f32.partialorder %v1462, 0.0
  %vm1467 = vcmp.ge.f32.partialorder %v1463, 0.0
  %vm1468 = vcmp.ge.f32.partialorder %v1464, 0.0
  %1469 = vset.pattern.permute.xlu0 4
  %1470 = vperm.xlu0 %1469, %v181
  %v1471 = vpop.permute.xlu0 %1470
  %v1473 = vmul.f32 %v1471, %v1461
  %v1474 = vmul.f32 %v1471, %v1462
  %v1475 = vmul.f32 %v1471, %v1463
  %v1476 = vmul.f32 %v1471, %v1464
  %v1477 = vsel %vm1465, %v1461, %v1473
  %v1478 = vsel %vm1466, %v1462, %v1474
  %v1479 = vsel %vm1467, %v1463, %v1475
  %v1480 = vsel %vm1468, %v1464, %v1476
  %v1481 = vadd.f32 %v1477, %v1478
  %1482 = vadd.xlane.f32.xlu0 %v1481
  %v1483 = vpop.xlane.xlu0 %1482
  %v1484 = vrcp.pop 256.0
  %v1485 = vmul.f32 %v1483, %v1484
  %v1486 = vld [vmem:[%s3] sm:$0xff]
  %v1488 = vsel %vm261, %v1486, 0
  %1490 = vmatprep.subr.mxu0 0.0
  %1491 = vmatpush1.msra.mxu0 0.0
  %1492 = vmatprep.subr.mxu0 0.0
  %1493 = vmatpush1.msra.mxu0 0.0
  %1494 = vmatprep.subr.mxu0 0.0
  %1495 = vmatpush1.msra.mxu0 0.0
  %1496 = vmatprep.subr.mxu0 0.0
  %1497 = vmatpush1.msra.mxu0 0.0
  %1498 = vmatprep.subr.mxu0 0.0
  %1499 = vmatpush1.msra.mxu0 0.0
  %1500 = vmatprep.subr.mxu0 0.0
  %1501 = vmatpush1.msra.mxu0 0.0
  %1502 = vmatprep.subr.mxu0 0.0
  %1503 = vmatpush1.msra.mxu0 0.0
  %1504 = vmatprep.subr.mxu0 0.0
  %1505 = vmatpush1.msra.mxu0 0.0
  %1506 = vmatprep.subr.mxu0 0.0
  %1507 = vmatpush1.msra.mxu0 0.0
  %1508 = vmatprep.subr.mxu0 0.0
  %1509 = vmatpush1.msra.mxu0 0.0
  %1510 = vmatprep.subr.mxu0 0.0
  %1511 = vmatpush1.msra.mxu0 0.0
  %1512 = vmatprep.subr.mxu0 0.0
  %1513 = vmatpush1.msra.mxu0 0.0
  %1514 = vmatprep.subr.mxu0 0.0
  %1515 = vmatpush1.msra.mxu0 0.0
  %1516 = vmatprep.subr.mxu0 0.0
  %1517 = vmatpush1.msra.mxu0 0.0
  %1518 = vmatprep.subr.mxu0 0.0
  %1519 = vmatpush1.msra.mxu0 0.0
  %1520 = vmatprep.subr.mxu0 0.0
  %1521 = vmatpush1.msra.mxu0 %v1485
  %1522 = vmatprep.subr.mxu0 0.0
  %1523 = vmatpush2.msra.mxu0 0.0
  %1524 = vmatprep.subr.mxu0 0.0
  %1525 = vmatpush2.msra.mxu0 0.0
  %1526 = vmatprep.subr.mxu0 0.0
  %1527 = vmatpush2.msra.mxu0 0.0
  %1528 = vmatprep.subr.mxu0 0.0
  %1529 = vmatpush2.msra.mxu0 0.0
  %1530 = vmatprep.subr.mxu0 0.0
  %1531 = vmatpush2.msra.mxu0 0.0
  %1532 = vmatprep.subr.mxu0 0.0
  %1533 = vmatpush2.msra.mxu0 0.0
  %1534 = vmatprep.subr.mxu0 0.0
  %1535 = vmatpush2.msra.mxu0 0.0
  %1536 = vmatprep.subr.mxu0 0.0
  %1537 = vmatpush2.msra.mxu0 0.0
  %1538 = vmatprep.subr.mxu0 0.0
  %1539 = vmatpush2.msra.mxu0 0.0
  %1540 = vmatprep.subr.mxu0 0.0
  %1541 = vmatpush2.msra.mxu0 0.0
  %1542 = vmatprep.subr.mxu0 0.0
  %1543 = vmatpush2.msra.mxu0 0.0
  %1544 = vmatprep.subr.mxu0 0.0
  %1545 = vmatpush2.msra.mxu0 0.0
  %1546 = vmatprep.subr.mxu0 0.0
  %1547 = vmatpush2.msra.mxu0 0.0
  %1548 = vmatprep.subr.mxu0 0.0
  %1549 = vmatpush2.msra.mxu0 0.0
  %1550 = vmatprep.subr.mxu0 0.0
  %1551 = vmatpush2.msra.mxu0 0.0
  %1552 = vmatprep.subr.mxu0 0.0
  %1553 = vmatpush2.msra.mxu0 0.0
  %1554 = vmatprep.mubr.f32.mxu0 0.0
  %1555 = vmatmul.mubr.f32.gmra.mxu0 %v1488
  %v1556 = vpop.f32.mrf.mxu0
  %v1557 = vadd.f32 0.0, %v1556
  %v1558 = vpop.f32.mrf.mxu0
  %1559 = vdwg.mxu0
  %v1560 = vxor.u32 %v1557, 2147483648
  %v1561 = vmul.f32 %v1560, 1.442695
  %v1562 = vpow.pop %v1561
  %v1563 = vadd.f32 %v1562, 1.0
  %v1564 = vrcp.pop %v1563
  %v1565 = vmul.f32 1.0, %v1564
  %1567 = vset.pattern.permute.xlu0 0
  %1568 = vperm.xlu0 %1567, %v1565
  %v1569 = vpop.permute.xlu0 %1568
  %v1571 = vmul.f32 %v1477, %v1569
  %v1572 = vmul.f32 %v1478, %v1569
  %v1573 = vadd.f32 %v1479, %v1480
  %1574 = vadd.xlane.f32.xlu0 %v1573
  %v1575 = vpop.xlane.xlu0 %1574
  %v1576 = vmul.f32 %v1575, %v1484
  %1577 = vmatprep.subr.mxu0 0.0
  %1578 = vmatpush1.msra.mxu0 0.0
  %1579 = vmatprep.subr.mxu0 0.0
  %1580 = vmatpush1.msra.mxu0 0.0
  %1581 = vmatprep.subr.mxu0 0.0
  %1582 = vmatpush1.msra.mxu0 0.0
  %1583 = vmatprep.subr.mxu0 0.0
  %1584 = vmatpush1.msra.mxu0 0.0
  %1585 = vmatprep.subr.mxu0 0.0
  %1586 = vmatpush1.msra.mxu0 0.0
  %1587 = vmatprep.subr.mxu0 0.0
  %1588 = vmatpush1.msra.mxu0 0.0
  %1589 = vmatprep.subr.mxu0 0.0
  %1590 = vmatpush1.msra.mxu0 0.0
  %1591 = vmatprep.subr.mxu0 0.0
  %1592 = vmatpush1.msra.mxu0 0.0
  %1593 = vmatprep.subr.mxu0 0.0
  %1594 = vmatpush1.msra.mxu0 0.0
  %1595 = vmatprep.subr.mxu0 0.0
  %1596 = vmatpush1.msra.mxu0 0.0
  %1597 = vmatprep.subr.mxu0 0.0
  %1598 = vmatpush1.msra.mxu0 0.0
  %1599 = vmatprep.subr.mxu0 0.0
  %1600 = vmatpush1.msra.mxu0 0.0
  %1601 = vmatprep.subr.mxu0 0.0
  %1602 = vmatpush1.msra.mxu0 0.0
  %1603 = vmatprep.subr.mxu0 0.0
  %1604 = vmatpush1.msra.mxu0 0.0
  %1605 = vmatprep.subr.mxu0 0.0
  %1606 = vmatpush1.msra.mxu0 0.0
  %1607 = vmatprep.subr.mxu0 0.0
  %1608 = vmatpush1.msra.mxu0 %v1576
  %1609 = vmatprep.subr.mxu0 0.0
  %1610 = vmatpush2.msra.mxu0 0.0
  %1611 = vmatprep.subr.mxu0 0.0
  %1612 = vmatpush2.msra.mxu0 0.0
  %1613 = vmatprep.subr.mxu0 0.0
  %1614 = vmatpush2.msra.mxu0 0.0
  %1615 = vmatprep.subr.mxu0 0.0
  %1616 = vmatpush2.msra.mxu0 0.0
  %1617 = vmatprep.subr.mxu0 0.0
  %1618 = vmatpush2.msra.mxu0 0.0
  %1619 = vmatprep.subr.mxu0 0.0
  %1620 = vmatpush2.msra.mxu0 0.0
  %1621 = vmatprep.subr.mxu0 0.0
  %1622 = vmatpush2.msra.mxu0 0.0
  %1623 = vmatprep.subr.mxu0 0.0
  %1624 = vmatpush2.msra.mxu0 0.0
  %1625 = vmatprep.subr.mxu0 0.0
  %1626 = vmatpush2.msra.mxu0 0.0
  %1627 = vmatprep.subr.mxu0 0.0
  %1628 = vmatpush2.msra.mxu0 0.0
  %1629 = vmatprep.subr.mxu0 0.0
  %1630 = vmatpush2.msra.mxu0 0.0
  %1631 = vmatprep.subr.mxu0 0.0
  %1632 = vmatpush2.msra.mxu0 0.0
  %1633 = vmatprep.subr.mxu0 0.0
  %1634 = vmatpush2.msra.mxu0 0.0
  %1635 = vmatprep.subr.mxu0 0.0
  %1636 = vmatpush2.msra.mxu0 0.0
  %1637 = vmatprep.subr.mxu0 0.0
  %1638 = vmatpush2.msra.mxu0 0.0
  %1639 = vmatprep.subr.mxu0 0.0
  %1640 = vmatpush2.msra.mxu0 0.0
  %1641 = vmatprep.mubr.f32.mxu0 0.0
  %1642 = vmatmul.mubr.f32.gmra.mxu0 %v1488
  %v1643 = vpop.f32.mrf.mxu0
  %v1644 = vadd.f32 0.0, %v1643
  %v1645 = vpop.f32.mrf.mxu0
  %1646 = vdwg.mxu0
  %v1647 = vxor.u32 %v1644, 2147483648
  %v1648 = vmul.f32 %v1647, 1.442695
  %v1649 = vpow.pop %v1648
  %v1650 = vadd.f32 %v1649, 1.0
  %v1651 = vrcp.pop %v1650
  %v1652 = vmul.f32 1.0, %v1651
  %1654 = vset.pattern.permute.xlu0 0
  %1655 = vperm.xlu0 %1654, %v1652
  %v1656 = vpop.permute.xlu0 %1655
  %v1658 = vmul.f32 %v1479, %v1656
  %v1659 = vmul.f32 %v1480, %v1656
  %1660 = vrot.lane.b32.xlu0 %v1571, 16
  %v1661 = vpop.permute.xlu0 %1660
  %1662 = vrot.lane.b32.xlu0 %v1572, 16
  %v1663 = vpop.permute.xlu0 %1662
  %1664 = vrot.lane.b32.xlu0 %v1658, 16
  %v1665 = vpop.permute.xlu0 %1664
  %1666 = vrot.lane.b32.xlu0 %v1659, 16
  %v1667 = vpop.permute.xlu0 %1666
  %v1668 = vsel %vm190, %v1665, %v1667
  %v1669 = vsel %vm190, %v1663, %v1665
  %v1670 = vsel %vm190, %v1661, %v1663
  %v1671 = vsel %vm190, %v1667, %v1661
  %1672 = vrot.lane.b32.xlu0 %v1571, 112
  %v1673 = vpop.permute.xlu0 %1672
  %1674 = vrot.lane.b32.xlu0 %v1572, 112
  %v1675 = vpop.permute.xlu0 %1674
  %1676 = vrot.lane.b32.xlu0 %v1658, 112
  %v1677 = vpop.permute.xlu0 %1676
  %1678 = vrot.lane.b32.xlu0 %v1659, 112
  %v1679 = vpop.permute.xlu0 %1678
  %v1680 = vsel %vm203, %v1677, %v1679
  %v1681 = vsel %vm203, %v1675, %v1677
  %v1682 = vsel %vm203, %v1673, %v1675
  %v1683 = vsel %vm203, %v1679, %v1673
  %v1684 = vsel %vm141, %v1682, %v1671
  %v1685 = vsel %vm142, %v1681, %v1670
  %v1686 = vsel %vm143, %v1680, %v1669
  %v1687 = vsel %vm144, %v1683, %v1668
  %v1688 = vsel %vm153, %v1671, %v1682
  %v1689 = vsel %vm154, %v1670, %v1681
  %v1690 = vsel %vm155, %v1669, %v1680
  %v1691 = vsel %vm156, %v1668, %v1683
  %1692 = vrot.lane.b32.xlu0 %v1684, 1
  %v1693 = vpop.permute.xlu0 %1692
  %1694 = vrot.lane.b32.xlu0 %v1685, 1
  %v1695 = vpop.permute.xlu0 %1694
  %1696 = vrot.lane.b32.xlu0 %v1686, 1
  %v1697 = vpop.permute.xlu0 %1696
  %1698 = vrot.lane.b32.xlu0 %v1687, 1
  %v1699 = vpop.permute.xlu0 %1698
  %v1700 = vsel %vm224, %v1697, %v1699
  %v1701 = vsel %vm224, %v1695, %v1697
  %v1702 = vsel %vm224, %v1693, %v1695
  %v1703 = vsel %vm224, %v1699, %v1693
  %1704 = vrot.lane.b32.xlu0 %v1684, 127
  %v1705 = vpop.permute.xlu0 %1704
  %1706 = vrot.lane.b32.xlu0 %v1685, 127
  %v1707 = vpop.permute.xlu0 %1706
  %1708 = vrot.lane.b32.xlu0 %v1686, 127
  %v1709 = vpop.permute.xlu0 %1708
  %1710 = vrot.lane.b32.xlu0 %v1687, 127
  %v1711 = vpop.permute.xlu0 %1710
  %v1712 = vsel %vm237, %v1709, %v1711
  %v1713 = vsel %vm237, %v1707, %v1709
  %v1714 = vsel %vm237, %v1705, %v1707
  %v1715 = vsel %vm237, %v1711, %v1705
  %v1716 = vsel %vm165, %v1714, %v1703
  %v1717 = vsel %vm166, %v1713, %v1702
  %v1718 = vsel %vm167, %v1712, %v1701
  %v1719 = vsel %vm168, %v1715, %v1700
  %v1720 = vsel %vm177, %v1703, %v1714
  %v1721 = vsel %vm178, %v1702, %v1713
  %v1722 = vsel %vm179, %v1701, %v1712
  %v1723 = vsel %vm180, %v1700, %v1715
  %v1724 = vld [vmem:[%s4] sm:$0xf]
  %v1725 = vpack.c.bf16 %v1716, %v1716
  %v1726 = vpack.c.bf16 %v1717, %v1717
  %v1727 = vpack.c.bf16 %v1718, %v1718
  %v1728 = vpack.c.bf16 %v1719, %v1719
  %s1729 = scalar_lea.vmem %s4, 4
  %v1730 = vld [vmem:[%s1729] sm:$0xf]
  %v1731 = vpack.c.bf16 %v1684, %v1684
  %v1732 = vpack.c.bf16 %v1685, %v1685
  %v1733 = vpack.c.bf16 %v1686, %v1686
  %v1734 = vpack.c.bf16 %v1687, %v1687
  %v1736 = vsel %vm261, %v1730, 0
  %v1739 = vsel %vm265, %v1731, 0
  %v1742 = vsel %vm265, %v1732, 0
  %v1745 = vsel %vm265, %v1733, 0
  %v1748 = vsel %vm265, %v1734, 0
  %1750 = vmatprep.subr.bf16.mxu0 0
  %1751 = vmatpush1.bf16.msra.mxu0 0
  %1752 = vmatprep.subr.bf16.mxu0 0
  %1753 = vmatpush1.bf16.msra.mxu0 0
  %1754 = vmatprep.subr.bf16.mxu0 0
  %1755 = vmatpush1.bf16.msra.mxu0 0
  %1756 = vmatprep.subr.bf16.mxu0 0
  %1757 = vmatpush1.bf16.msra.mxu0 0
  %1758 = vmatprep.subr.bf16.mxu0 0
  %1759 = vmatpush1.bf16.msra.mxu0 0
  %1760 = vmatprep.subr.bf16.mxu0 0
  %1761 = vmatpush1.bf16.msra.mxu0 0
  %1762 = vmatprep.subr.bf16.mxu0 0
  %1763 = vmatpush1.bf16.msra.mxu0 0
  %1764 = vmatprep.subr.bf16.mxu0 %v1742
  %1765 = vmatpush1.bf16.msra.mxu0 %v1739
  %1766 = vmatprep.subr.bf16.mxu0 0
  %1767 = vmatpush2.bf16.msra.mxu0 0
  %1768 = vmatprep.subr.bf16.mxu0 0
  %1769 = vmatpush2.bf16.msra.mxu0 0
  %1770 = vmatprep.subr.bf16.mxu0 0
  %1771 = vmatpush2.bf16.msra.mxu0 0
  %1772 = vmatprep.subr.bf16.mxu0 0
  %1773 = vmatpush2.bf16.msra.mxu0 0
  %1774 = vmatprep.subr.bf16.mxu0 0
  %1775 = vmatpush2.bf16.msra.mxu0 0
  %1776 = vmatprep.subr.bf16.mxu0 0
  %1777 = vmatpush2.bf16.msra.mxu0 0
  %1778 = vmatprep.subr.bf16.mxu0 0
  %1779 = vmatpush2.bf16.msra.mxu0 0
  %1780 = vmatprep.subr.bf16.mxu0 0
  %1781 = vmatpush2.bf16.msra.mxu0 0
  %1782 = vmatprep.mubr.bf16.mxu0 0
  %1783 = vmatmul.mubr.bf16.gmra.mxu0 %v1736
  %v1784 = vpop.f32.mrf.mxu0
  %v1785 = vadd.f32 0.0, %v1784
  %v1786 = vpop.f32.mrf.mxu0
  %v1787 = vadd.f32 0.0, %v1786
  %v1788 = vpop.f32.mrf.mxu0
  %v1789 = vpop.f32.mrf.mxu0
  %1790 = vdwg.mxu0
  %1791 = vmatprep.subr.bf16.mxu0 0
  %1792 = vmatpush1.bf16.msra.mxu0 0
  %1793 = vmatprep.subr.bf16.mxu0 0
  %1794 = vmatpush1.bf16.msra.mxu0 0
  %1795 = vmatprep.subr.bf16.mxu0 0
  %1796 = vmatpush1.bf16.msra.mxu0 0
  %1797 = vmatprep.subr.bf16.mxu0 0
  %1798 = vmatpush1.bf16.msra.mxu0 0
  %1799 = vmatprep.subr.bf16.mxu0 0
  %1800 = vmatpush1.bf16.msra.mxu0 0
  %1801 = vmatprep.subr.bf16.mxu0 0
  %1802 = vmatpush1.bf16.msra.mxu0 0
  %1803 = vmatprep.subr.bf16.mxu0 0
  %1804 = vmatpush1.bf16.msra.mxu0 0
  %1805 = vmatprep.subr.bf16.mxu0 %v1748
  %1806 = vmatpush1.bf16.msra.mxu0 %v1745
  %1807 = vmatprep.subr.bf16.mxu0 0
  %1808 = vmatpush2.bf16.msra.mxu0 0
  %1809 = vmatprep.subr.bf16.mxu0 0
  %1810 = vmatpush2.bf16.msra.mxu0 0
  %1811 = vmatprep.subr.bf16.mxu0 0
  %1812 = vmatpush2.bf16.msra.mxu0 0
  %1813 = vmatprep.subr.bf16.mxu0 0
  %1814 = vmatpush2.bf16.msra.mxu0 0
  %1815 = vmatprep.subr.bf16.mxu0 0
  %1816 = vmatpush2.bf16.msra.mxu0 0
  %1817 = vmatprep.subr.bf16.mxu0 0
  %1818 = vmatpush2.bf16.msra.mxu0 0
  %1819 = vmatprep.subr.bf16.mxu0 0
  %1820 = vmatpush2.bf16.msra.mxu0 0
  %1821 = vmatprep.subr.bf16.mxu0 0
  %1822 = vmatpush2.bf16.msra.mxu0 0
  %1823 = vmatprep.mubr.bf16.mxu0 0
  %1824 = vmatmul.mubr.bf16.gmra.mxu0 %v1736
  %v1825 = vpop.f32.mrf.mxu0
  %v1826 = vadd.f32 0.0, %v1825
  %v1827 = vpop.f32.mrf.mxu0
  %v1828 = vadd.f32 0.0, %v1827
  %v1829 = vpop.f32.mrf.mxu0
  %v1830 = vpop.f32.mrf.mxu0
  %1831 = vdwg.mxu0
  %v1833 = vsel %vm261, %v1724, 0
  %v1836 = vsel %vm265, %v1725, 0
  %v1839 = vsel %vm265, %v1726, 0
  %v1842 = vsel %vm265, %v1727, 0
  %v1845 = vsel %vm265, %v1728, 0
  %1847 = vmatprep.subr.bf16.mxu0 0
  %1848 = vmatpush1.bf16.msra.mxu0 0
  %1849 = vmatprep.subr.bf16.mxu0 0
  %1850 = vmatpush1.bf16.msra.mxu0 0
  %1851 = vmatprep.subr.bf16.mxu0 0
  %1852 = vmatpush1.bf16.msra.mxu0 0
  %1853 = vmatprep.subr.bf16.mxu0 0
  %1854 = vmatpush1.bf16.msra.mxu0 0
  %1855 = vmatprep.subr.bf16.mxu0 0
  %1856 = vmatpush1.bf16.msra.mxu0 0
  %1857 = vmatprep.subr.bf16.mxu0 0
  %1858 = vmatpush1.bf16.msra.mxu0 0
  %1859 = vmatprep.subr.bf16.mxu0 0
  %1860 = vmatpush1.bf16.msra.mxu0 0
  %1861 = vmatprep.subr.bf16.mxu0 %v1839
  %1862 = vmatpush1.bf16.msra.mxu0 %v1836
  %1863 = vmatprep.subr.bf16.mxu0 0
  %1864 = vmatpush2.bf16.msra.mxu0 0
  %1865 = vmatprep.subr.bf16.mxu0 0
  %1866 = vmatpush2.bf16.msra.mxu0 0
  %1867 = vmatprep.subr.bf16.mxu0 0
  %1868 = vmatpush2.bf16.msra.mxu0 0
  %1869 = vmatprep.subr.bf16.mxu0 0
  %1870 = vmatpush2.bf16.msra.mxu0 0
  %1871 = vmatprep.subr.bf16.mxu0 0
  %1872 = vmatpush2.bf16.msra.mxu0 0
  %1873 = vmatprep.subr.bf16.mxu0 0
  %1874 = vmatpush2.bf16.msra.mxu0 0
  %1875 = vmatprep.subr.bf16.mxu0 0
  %1876 = vmatpush2.bf16.msra.mxu0 0
  %1877 = vmatprep.subr.bf16.mxu0 0
  %1878 = vmatpush2.bf16.msra.mxu0 0
  %1879 = vmatprep.mubr.bf16.mxu0 0
  %1880 = vmatmul.mubr.bf16.gmra.mxu0 %v1833
  %v1881 = vpop.f32.mrf.mxu0
  %v1882 = vadd.f32 %v1785, %v1881
  %v1883 = vpop.f32.mrf.mxu0
  %v1884 = vadd.f32 %v1787, %v1883
  %v1885 = vpop.f32.mrf.mxu0
  %v1886 = vpop.f32.mrf.mxu0
  %1887 = vdwg.mxu0
  %1888 = vmatprep.subr.bf16.mxu0 0
  %1889 = vmatpush1.bf16.msra.mxu0 0
  %1890 = vmatprep.subr.bf16.mxu0 0
  %1891 = vmatpush1.bf16.msra.mxu0 0
  %1892 = vmatprep.subr.bf16.mxu0 0
  %1893 = vmatpush1.bf16.msra.mxu0 0
  %1894 = vmatprep.subr.bf16.mxu0 0
  %1895 = vmatpush1.bf16.msra.mxu0 0
  %1896 = vmatprep.subr.bf16.mxu0 0
  %1897 = vmatpush1.bf16.msra.mxu0 0
  %1898 = vmatprep.subr.bf16.mxu0 0
  %1899 = vmatpush1.bf16.msra.mxu0 0
  %1900 = vmatprep.subr.bf16.mxu0 0
  %1901 = vmatpush1.bf16.msra.mxu0 0
  %1902 = vmatprep.subr.bf16.mxu0 %v1845
  %1903 = vmatpush1.bf16.msra.mxu0 %v1842
  %1904 = vmatprep.subr.bf16.mxu0 0
  %1905 = vmatpush2.bf16.msra.mxu0 0
  %1906 = vmatprep.subr.bf16.mxu0 0
  %1907 = vmatpush2.bf16.msra.mxu0 0
  %1908 = vmatprep.subr.bf16.mxu0 0
  %1909 = vmatpush2.bf16.msra.mxu0 0
  %1910 = vmatprep.subr.bf16.mxu0 0
  %1911 = vmatpush2.bf16.msra.mxu0 0
  %1912 = vmatprep.subr.bf16.mxu0 0
  %1913 = vmatpush2.bf16.msra.mxu0 0
  %1914 = vmatprep.subr.bf16.mxu0 0
  %1915 = vmatpush2.bf16.msra.mxu0 0
  %1916 = vmatprep.subr.bf16.mxu0 0
  %1917 = vmatpush2.bf16.msra.mxu0 0
  %1918 = vmatprep.subr.bf16.mxu0 0
  %1919 = vmatpush2.bf16.msra.mxu0 0
  %1920 = vmatprep.mubr.bf16.mxu0 0
  %1921 = vmatmul.mubr.bf16.gmra.mxu0 %v1833
  %v1922 = vpop.f32.mrf.mxu0
  %v1923 = vadd.f32 %v1826, %v1922
  %v1924 = vpop.f32.mrf.mxu0
  %v1925 = vadd.f32 %v1828, %v1924
  %v1926 = vpop.f32.mrf.mxu0
  %v1927 = vpop.f32.mrf.mxu0
  %1928 = vdwg.mxu0
  %s1929 = scalar_lea.vmem %s4, 8
  %v1930 = vld [vmem:[%s1929] sm:$0xf]
  %v1931 = vpack.c.bf16 %v1720, %v1720
  %v1932 = vpack.c.bf16 %v1721, %v1721
  %v1933 = vpack.c.bf16 %v1722, %v1722
  %v1934 = vpack.c.bf16 %v1723, %v1723
  %v1936 = vsel %vm261, %v1930, 0
  %v1939 = vsel %vm265, %v1931, 0
  %v1942 = vsel %vm265, %v1932, 0
  %v1945 = vsel %vm265, %v1933, 0
  %v1948 = vsel %vm265, %v1934, 0
  %1950 = vmatprep.subr.bf16.mxu0 0
  %1951 = vmatpush1.bf16.msra.mxu0 0
  %1952 = vmatprep.subr.bf16.mxu0 0
  %1953 = vmatpush1.bf16.msra.mxu0 0
  %1954 = vmatprep.subr.bf16.mxu0 0
  %1955 = vmatpush1.bf16.msra.mxu0 0
  %1956 = vmatprep.subr.bf16.mxu0 0
  %1957 = vmatpush1.bf16.msra.mxu0 0
  %1958 = vmatprep.subr.bf16.mxu0 0
  %1959 = vmatpush1.bf16.msra.mxu0 0
  %1960 = vmatprep.subr.bf16.mxu0 0
  %1961 = vmatpush1.bf16.msra.mxu0 0
  %1962 = vmatprep.subr.bf16.mxu0 0
  %1963 = vmatpush1.bf16.msra.mxu0 0
  %1964 = vmatprep.subr.bf16.mxu0 %v1942
  %1965 = vmatpush1.bf16.msra.mxu0 %v1939
  %1966 = vmatprep.subr.bf16.mxu0 0
  %1967 = vmatpush2.bf16.msra.mxu0 0
  %1968 = vmatprep.subr.bf16.mxu0 0
  %1969 = vmatpush2.bf16.msra.mxu0 0
  %1970 = vmatprep.subr.bf16.mxu0 0
  %1971 = vmatpush2.bf16.msra.mxu0 0
  %1972 = vmatprep.subr.bf16.mxu0 0
  %1973 = vmatpush2.bf16.msra.mxu0 0
  %1974 = vmatprep.subr.bf16.mxu0 0
  %1975 = vmatpush2.bf16.msra.mxu0 0
  %1976 = vmatprep.subr.bf16.mxu0 0
  %1977 = vmatpush2.bf16.msra.mxu0 0
  %1978 = vmatprep.subr.bf16.mxu0 0
  %1979 = vmatpush2.bf16.msra.mxu0 0
  %1980 = vmatprep.subr.bf16.mxu0 0
  %1981 = vmatpush2.bf16.msra.mxu0 0
  %1982 = vmatprep.mubr.bf16.mxu0 0
  %1983 = vmatmul.mubr.bf16.gmra.mxu0 %v1936
  %v1984 = vpop.f32.mrf.mxu0
  %v1985 = vadd.f32 0.0, %v1984
  %v1986 = vpop.f32.mrf.mxu0
  %v1987 = vadd.f32 0.0, %v1986
  %v1988 = vpop.f32.mrf.mxu0
  %v1989 = vpop.f32.mrf.mxu0
  %1990 = vdwg.mxu0
  %1991 = vmatprep.subr.bf16.mxu0 0
  %1992 = vmatpush1.bf16.msra.mxu0 0
  %1993 = vmatprep.subr.bf16.mxu0 0
  %1994 = vmatpush1.bf16.msra.mxu0 0
  %1995 = vmatprep.subr.bf16.mxu0 0
  %1996 = vmatpush1.bf16.msra.mxu0 0
  %1997 = vmatprep.subr.bf16.mxu0 0
  %1998 = vmatpush1.bf16.msra.mxu0 0
  %1999 = vmatprep.subr.bf16.mxu0 0
  %2000 = vmatpush1.bf16.msra.mxu0 0
  %2001 = vmatprep.subr.bf16.mxu0 0
  %2002 = vmatpush1.bf16.msra.mxu0 0
  %2003 = vmatprep.subr.bf16.mxu0 0
  %2004 = vmatpush1.bf16.msra.mxu0 0
  %2005 = vmatprep.subr.bf16.mxu0 %v1948
  %2006 = vmatpush1.bf16.msra.mxu0 %v1945
  %2007 = vmatprep.subr.bf16.mxu0 0
  %2008 = vmatpush2.bf16.msra.mxu0 0
  %2009 = vmatprep.subr.bf16.mxu0 0
  %2010 = vmatpush2.bf16.msra.mxu0 0
  %2011 = vmatprep.subr.bf16.mxu0 0
  %2012 = vmatpush2.bf16.msra.mxu0 0
  %2013 = vmatprep.subr.bf16.mxu0 0
  %2014 = vmatpush2.bf16.msra.mxu0 0
  %2015 = vmatprep.subr.bf16.mxu0 0
  %2016 = vmatpush2.bf16.msra.mxu0 0
  %2017 = vmatprep.subr.bf16.mxu0 0
  %2018 = vmatpush2.bf16.msra.mxu0 0
  %2019 = vmatprep.subr.bf16.mxu0 0
  %2020 = vmatpush2.bf16.msra.mxu0 0
  %2021 = vmatprep.subr.bf16.mxu0 0
  %2022 = vmatpush2.bf16.msra.mxu0 0
  %2023 = vmatprep.mubr.bf16.mxu0 0
  %2024 = vmatmul.mubr.bf16.gmra.mxu0 %v1936
  %v2025 = vpop.f32.mrf.mxu0
  %v2026 = vadd.f32 0.0, %v2025
  %v2027 = vpop.f32.mrf.mxu0
  %v2028 = vadd.f32 0.0, %v2027
  %v2029 = vpop.f32.mrf.mxu0
  %v2030 = vpop.f32.mrf.mxu0
  %2031 = vdwg.mxu0
  %v2032 = vadd.f32 %v1882, %v1985
  %v2033 = vadd.f32 %v1884, %v1987
  %v2034 = vadd.f32 %v1923, %v2026
  %v2035 = vadd.f32 %v1925, %v2028
  %2036 = vrot.lane.b32.xlu0 %v1571, 1
  %v2037 = vpop.permute.xlu0 %2036
  %2038 = vrot.lane.b32.xlu0 %v1572, 1
  %v2039 = vpop.permute.xlu0 %2038
  %2040 = vrot.lane.b32.xlu0 %v1658, 1
  %v2041 = vpop.permute.xlu0 %2040
  %2042 = vrot.lane.b32.xlu0 %v1659, 1
  %v2043 = vpop.permute.xlu0 %2042
  %v2044 = vsel %vm224, %v2041, %v2043
  %v2045 = vsel %vm224, %v2039, %v2041
  %v2046 = vsel %vm224, %v2037, %v2039
  %v2047 = vsel %vm224, %v2043, %v2037
  %2048 = vrot.lane.b32.xlu0 %v1571, 127
  %v2049 = vpop.permute.xlu0 %2048
  %2050 = vrot.lane.b32.xlu0 %v1572, 127
  %v2051 = vpop.permute.xlu0 %2050
  %2052 = vrot.lane.b32.xlu0 %v1658, 127
  %v2053 = vpop.permute.xlu0 %2052
  %2054 = vrot.lane.b32.xlu0 %v1659, 127
  %v2055 = vpop.permute.xlu0 %2054
  %v2056 = vsel %vm237, %v2053, %v2055
  %v2057 = vsel %vm237, %v2051, %v2053
  %v2058 = vsel %vm237, %v2049, %v2051
  %v2059 = vsel %vm237, %v2055, %v2049
  %v2060 = vsel %vm165, %v2058, %v2047
  %v2061 = vsel %vm166, %v2057, %v2046
  %v2062 = vsel %vm167, %v2056, %v2045
  %v2063 = vsel %vm168, %v2059, %v2044
  %v2064 = vsel %vm177, %v2047, %v2058
  %v2065 = vsel %vm178, %v2046, %v2057
  %v2066 = vsel %vm179, %v2045, %v2056
  %v2067 = vsel %vm180, %v2044, %v2059
  %s2068 = scalar_lea.vmem %s4, 12
  %v2069 = vld [vmem:[%s2068] sm:$0xf]
  %v2070 = vpack.c.bf16 %v2060, %v2060
  %v2071 = vpack.c.bf16 %v2061, %v2061
  %v2072 = vpack.c.bf16 %v2062, %v2062
  %v2073 = vpack.c.bf16 %v2063, %v2063
  %v2075 = vsel %vm261, %v2069, 0
  %v2078 = vsel %vm265, %v2070, 0
  %v2081 = vsel %vm265, %v2071, 0
  %v2084 = vsel %vm265, %v2072, 0
  %v2087 = vsel %vm265, %v2073, 0
  %2089 = vmatprep.subr.bf16.mxu0 0
  %2090 = vmatpush1.bf16.msra.mxu0 0
  %2091 = vmatprep.subr.bf16.mxu0 0
  %2092 = vmatpush1.bf16.msra.mxu0 0
  %2093 = vmatprep.subr.bf16.mxu0 0
  %2094 = vmatpush1.bf16.msra.mxu0 0
  %2095 = vmatprep.subr.bf16.mxu0 0
  %2096 = vmatpush1.bf16.msra.mxu0 0
  %2097 = vmatprep.subr.bf16.mxu0 0
  %2098 = vmatpush1.bf16.msra.mxu0 0
  %2099 = vmatprep.subr.bf16.mxu0 0
  %2100 = vmatpush1.bf16.msra.mxu0 0
  %2101 = vmatprep.subr.bf16.mxu0 0
  %2102 = vmatpush1.bf16.msra.mxu0 0
  %2103 = vmatprep.subr.bf16.mxu0 %v2081
  %2104 = vmatpush1.bf16.msra.mxu0 %v2078
  %2105 = vmatprep.subr.bf16.mxu0 0
  %2106 = vmatpush2.bf16.msra.mxu0 0
  %2107 = vmatprep.subr.bf16.mxu0 0
  %2108 = vmatpush2.bf16.msra.mxu0 0
  %2109 = vmatprep.subr.bf16.mxu0 0
  %2110 = vmatpush2.bf16.msra.mxu0 0
  %2111 = vmatprep.subr.bf16.mxu0 0
  %2112 = vmatpush2.bf16.msra.mxu0 0
  %2113 = vmatprep.subr.bf16.mxu0 0
  %2114 = vmatpush2.bf16.msra.mxu0 0
  %2115 = vmatprep.subr.bf16.mxu0 0
  %2116 = vmatpush2.bf16.msra.mxu0 0
  %2117 = vmatprep.subr.bf16.mxu0 0
  %2118 = vmatpush2.bf16.msra.mxu0 0
  %2119 = vmatprep.subr.bf16.mxu0 0
  %2120 = vmatpush2.bf16.msra.mxu0 0
  %2121 = vmatprep.mubr.bf16.mxu0 0
  %2122 = vmatmul.mubr.bf16.gmra.mxu0 %v2075
  %v2123 = vpop.f32.mrf.mxu0
  %v2124 = vadd.f32 0.0, %v2123
  %v2125 = vpop.f32.mrf.mxu0
  %v2126 = vadd.f32 0.0, %v2125
  %v2127 = vpop.f32.mrf.mxu0
  %v2128 = vpop.f32.mrf.mxu0
  %2129 = vdwg.mxu0
  %2130 = vmatprep.subr.bf16.mxu0 0
  %2131 = vmatpush1.bf16.msra.mxu0 0
  %2132 = vmatprep.subr.bf16.mxu0 0
  %2133 = vmatpush1.bf16.msra.mxu0 0
  %2134 = vmatprep.subr.bf16.mxu0 0
  %2135 = vmatpush1.bf16.msra.mxu0 0
  %2136 = vmatprep.subr.bf16.mxu0 0
  %2137 = vmatpush1.bf16.msra.mxu0 0
  %2138 = vmatprep.subr.bf16.mxu0 0
  %2139 = vmatpush1.bf16.msra.mxu0 0
  %2140 = vmatprep.subr.bf16.mxu0 0
  %2141 = vmatpush1.bf16.msra.mxu0 0
  %2142 = vmatprep.subr.bf16.mxu0 0
  %2143 = vmatpush1.bf16.msra.mxu0 0
  %2144 = vmatprep.subr.bf16.mxu0 %v2087
  %2145 = vmatpush1.bf16.msra.mxu0 %v2084
  %2146 = vmatprep.subr.bf16.mxu0 0
  %2147 = vmatpush2.bf16.msra.mxu0 0
  %2148 = vmatprep.subr.bf16.mxu0 0
  %2149 = vmatpush2.bf16.msra.mxu0 0
  %2150 = vmatprep.subr.bf16.mxu0 0
  %2151 = vmatpush2.bf16.msra.mxu0 0
  %2152 = vmatprep.subr.bf16.mxu0 0
  %2153 = vmatpush2.bf16.msra.mxu0 0
  %2154 = vmatprep.subr.bf16.mxu0 0
  %2155 = vmatpush2.bf16.msra.mxu0 0
  %2156 = vmatprep.subr.bf16.mxu0 0
  %2157 = vmatpush2.bf16.msra.mxu0 0
  %2158 = vmatprep.subr.bf16.mxu0 0
  %2159 = vmatpush2.bf16.msra.mxu0 0
  %2160 = vmatprep.subr.bf16.mxu0 0
  %2161 = vmatpush2.bf16.msra.mxu0 0
  %2162 = vmatprep.mubr.bf16.mxu0 0
  %2163 = vmatmul.mubr.bf16.gmra.mxu0 %v2075
  %v2164 = vpop.f32.mrf.mxu0
  %v2165 = vadd.f32 0.0, %v2164
  %v2166 = vpop.f32.mrf.mxu0
  %v2167 = vadd.f32 0.0, %v2166
  %v2168 = vpop.f32.mrf.mxu0
  %v2169 = vpop.f32.mrf.mxu0
  %2170 = vdwg.mxu0
  %v2171 = vadd.f32 %v2032, %v2124
  %v2172 = vadd.f32 %v2033, %v2126
  %v2173 = vadd.f32 %v2034, %v2165
  %v2174 = vadd.f32 %v2035, %v2167
  %s2175 = scalar_lea.vmem %s4, 16
  %v2176 = vld [vmem:[%s2175] sm:$0xf]
  %v2177 = vpack.c.bf16 %v1571, %v1571
  %v2178 = vpack.c.bf16 %v1572, %v1572
  %v2179 = vpack.c.bf16 %v1658, %v1658
  %v2180 = vpack.c.bf16 %v1659, %v1659
  %v2182 = vsel %vm261, %v2176, 0
  %v2185 = vsel %vm265, %v2177, 0
  %v2188 = vsel %vm265, %v2178, 0
  %v2191 = vsel %vm265, %v2179, 0
  %v2194 = vsel %vm265, %v2180, 0
  %2196 = vmatprep.subr.bf16.mxu0 0
  %2197 = vmatpush1.bf16.msra.mxu0 0
  %2198 = vmatprep.subr.bf16.mxu0 0
  %2199 = vmatpush1.bf16.msra.mxu0 0
  %2200 = vmatprep.subr.bf16.mxu0 0
  %2201 = vmatpush1.bf16.msra.mxu0 0
  %2202 = vmatprep.subr.bf16.mxu0 0
  %2203 = vmatpush1.bf16.msra.mxu0 0
  %2204 = vmatprep.subr.bf16.mxu0 0
  %2205 = vmatpush1.bf16.msra.mxu0 0
  %2206 = vmatprep.subr.bf16.mxu0 0
  %2207 = vmatpush1.bf16.msra.mxu0 0
  %2208 = vmatprep.subr.bf16.mxu0 0
  %2209 = vmatpush1.bf16.msra.mxu0 0
  %2210 = vmatprep.subr.bf16.mxu0 %v2188
  %2211 = vmatpush1.bf16.msra.mxu0 %v2185
  %2212 = vmatprep.subr.bf16.mxu0 0
  %2213 = vmatpush2.bf16.msra.mxu0 0
  %2214 = vmatprep.subr.bf16.mxu0 0
  %2215 = vmatpush2.bf16.msra.mxu0 0
  %2216 = vmatprep.subr.bf16.mxu0 0
  %2217 = vmatpush2.bf16.msra.mxu0 0
  %2218 = vmatprep.subr.bf16.mxu0 0
  %2219 = vmatpush2.bf16.msra.mxu0 0
  %2220 = vmatprep.subr.bf16.mxu0 0
  %2221 = vmatpush2.bf16.msra.mxu0 0
  %2222 = vmatprep.subr.bf16.mxu0 0
  %2223 = vmatpush2.bf16.msra.mxu0 0
  %2224 = vmatprep.subr.bf16.mxu0 0
  %2225 = vmatpush2.bf16.msra.mxu0 0
  %2226 = vmatprep.subr.bf16.mxu0 0
  %2227 = vmatpush2.bf16.msra.mxu0 0
  %2228 = vmatprep.mubr.bf16.mxu0 0
  %2229 = vmatmul.mubr.bf16.gmra.mxu0 %v2182
  %v2230 = vpop.f32.mrf.mxu0
  %v2231 = vadd.f32 0.0, %v2230
  %v2232 = vpop.f32.mrf.mxu0
  %v2233 = vadd.f32 0.0, %v2232
  %v2234 = vpop.f32.mrf.mxu0
  %v2235 = vpop.f32.mrf.mxu0
  %2236 = vdwg.mxu0
  %2237 = vmatprep.subr.bf16.mxu0 0
  %2238 = vmatpush1.bf16.msra.mxu0 0
  %2239 = vmatprep.subr.bf16.mxu0 0
  %2240 = vmatpush1.bf16.msra.mxu0 0
  %2241 = vmatprep.subr.bf16.mxu0 0
  %2242 = vmatpush1.bf16.msra.mxu0 0
  %2243 = vmatprep.subr.bf16.mxu0 0
  %2244 = vmatpush1.bf16.msra.mxu0 0
  %2245 = vmatprep.subr.bf16.mxu0 0
  %2246 = vmatpush1.bf16.msra.mxu0 0
  %2247 = vmatprep.subr.bf16.mxu0 0
  %2248 = vmatpush1.bf16.msra.mxu0 0
  %2249 = vmatprep.subr.bf16.mxu0 0
  %2250 = vmatpush1.bf16.msra.mxu0 0
  %2251 = vmatprep.subr.bf16.mxu0 %v2194
  %2252 = vmatpush1.bf16.msra.mxu0 %v2191
  %2253 = vmatprep.subr.bf16.mxu0 0
  %2254 = vmatpush2.bf16.msra.mxu0 0
  %2255 = vmatprep.subr.bf16.mxu0 0
  %2256 = vmatpush2.bf16.msra.mxu0 0
  %2257 = vmatprep.subr.bf16.mxu0 0
  %2258 = vmatpush2.bf16.msra.mxu0 0
  %2259 = vmatprep.subr.bf16.mxu0 0
  %2260 = vmatpush2.bf16.msra.mxu0 0
  %2261 = vmatprep.subr.bf16.mxu0 0
  %2262 = vmatpush2.bf16.msra.mxu0 0
  %2263 = vmatprep.subr.bf16.mxu0 0
  %2264 = vmatpush2.bf16.msra.mxu0 0
  %2265 = vmatprep.subr.bf16.mxu0 0
  %2266 = vmatpush2.bf16.msra.mxu0 0
  %2267 = vmatprep.subr.bf16.mxu0 0
  %2268 = vmatpush2.bf16.msra.mxu0 0
  %2269 = vmatprep.mubr.bf16.mxu0 0
  %2270 = vmatmul.mubr.bf16.gmra.mxu0 %v2182
  %v2271 = vpop.f32.mrf.mxu0
  %v2272 = vadd.f32 0.0, %v2271
  %v2273 = vpop.f32.mrf.mxu0
  %v2274 = vadd.f32 0.0, %v2273
  %v2275 = vpop.f32.mrf.mxu0
  %v2276 = vpop.f32.mrf.mxu0
  %2277 = vdwg.mxu0
  %v2278 = vadd.f32 %v2171, %v2231
  %v2279 = vadd.f32 %v2172, %v2233
  %v2280 = vadd.f32 %v2173, %v2272
  %v2281 = vadd.f32 %v2174, %v2274
  %s2282 = scalar_lea.vmem %s4, 20
  %v2283 = vld [vmem:[%s2282] sm:$0xf]
  %v2284 = vpack.c.bf16 %v2064, %v2064
  %v2285 = vpack.c.bf16 %v2065, %v2065
  %v2286 = vpack.c.bf16 %v2066, %v2066
  %v2287 = vpack.c.bf16 %v2067, %v2067
  %v2289 = vsel %vm261, %v2283, 0
  %v2292 = vsel %vm265, %v2284, 0
  %v2295 = vsel %vm265, %v2285, 0
  %v2298 = vsel %vm265, %v2286, 0
  %v2301 = vsel %vm265, %v2287, 0
  %2303 = vmatprep.subr.bf16.mxu0 0
  %2304 = vmatpush1.bf16.msra.mxu0 0
  %2305 = vmatprep.subr.bf16.mxu0 0
  %2306 = vmatpush1.bf16.msra.mxu0 0
  %2307 = vmatprep.subr.bf16.mxu0 0
  %2308 = vmatpush1.bf16.msra.mxu0 0
  %2309 = vmatprep.subr.bf16.mxu0 0
  %2310 = vmatpush1.bf16.msra.mxu0 0
  %2311 = vmatprep.subr.bf16.mxu0 0
  %2312 = vmatpush1.bf16.msra.mxu0 0
  %2313 = vmatprep.subr.bf16.mxu0 0
  %2314 = vmatpush1.bf16.msra.mxu0 0
  %2315 = vmatprep.subr.bf16.mxu0 0
  %2316 = vmatpush1.bf16.msra.mxu0 0
  %2317 = vmatprep.subr.bf16.mxu0 %v2295
  %2318 = vmatpush1.bf16.msra.mxu0 %v2292
  %2319 = vmatprep.subr.bf16.mxu0 0
  %2320 = vmatpush2.bf16.msra.mxu0 0
  %2321 = vmatprep.subr.bf16.mxu0 0
  %2322 = vmatpush2.bf16.msra.mxu0 0
  %2323 = vmatprep.subr.bf16.mxu0 0
  %2324 = vmatpush2.bf16.msra.mxu0 0
  %2325 = vmatprep.subr.bf16.mxu0 0
  %2326 = vmatpush2.bf16.msra.mxu0 0
  %2327 = vmatprep.subr.bf16.mxu0 0
  %2328 = vmatpush2.bf16.msra.mxu0 0
  %2329 = vmatprep.subr.bf16.mxu0 0
  %2330 = vmatpush2.bf16.msra.mxu0 0
  %2331 = vmatprep.subr.bf16.mxu0 0
  %2332 = vmatpush2.bf16.msra.mxu0 0
  %2333 = vmatprep.subr.bf16.mxu0 0
  %2334 = vmatpush2.bf16.msra.mxu0 0
  %2335 = vmatprep.mubr.bf16.mxu0 0
  %2336 = vmatmul.mubr.bf16.gmra.mxu0 %v2289
  %v2337 = vpop.f32.mrf.mxu0
  %v2338 = vadd.f32 0.0, %v2337
  %v2339 = vpop.f32.mrf.mxu0
  %v2340 = vadd.f32 0.0, %v2339
  %v2341 = vpop.f32.mrf.mxu0
  %v2342 = vpop.f32.mrf.mxu0
  %2343 = vdwg.mxu0
  %2344 = vmatprep.subr.bf16.mxu0 0
  %2345 = vmatpush1.bf16.msra.mxu0 0
  %2346 = vmatprep.subr.bf16.mxu0 0
  %2347 = vmatpush1.bf16.msra.mxu0 0
  %2348 = vmatprep.subr.bf16.mxu0 0
  %2349 = vmatpush1.bf16.msra.mxu0 0
  %2350 = vmatprep.subr.bf16.mxu0 0
  %2351 = vmatpush1.bf16.msra.mxu0 0
  %2352 = vmatprep.subr.bf16.mxu0 0
  %2353 = vmatpush1.bf16.msra.mxu0 0
  %2354 = vmatprep.subr.bf16.mxu0 0
  %2355 = vmatpush1.bf16.msra.mxu0 0
  %2356 = vmatprep.subr.bf16.mxu0 0
  %2357 = vmatpush1.bf16.msra.mxu0 0
  %2358 = vmatprep.subr.bf16.mxu0 %v2301
  %2359 = vmatpush1.bf16.msra.mxu0 %v2298
  %2360 = vmatprep.subr.bf16.mxu0 0
  %2361 = vmatpush2.bf16.msra.mxu0 0
  %2362 = vmatprep.subr.bf16.mxu0 0
  %2363 = vmatpush2.bf16.msra.mxu0 0
  %2364 = vmatprep.subr.bf16.mxu0 0
  %2365 = vmatpush2.bf16.msra.mxu0 0
  %2366 = vmatprep.subr.bf16.mxu0 0
  %2367 = vmatpush2.bf16.msra.mxu0 0
  %2368 = vmatprep.subr.bf16.mxu0 0
  %2369 = vmatpush2.bf16.msra.mxu0 0
  %2370 = vmatprep.subr.bf16.mxu0 0
  %2371 = vmatpush2.bf16.msra.mxu0 0
  %2372 = vmatprep.subr.bf16.mxu0 0
  %2373 = vmatpush2.bf16.msra.mxu0 0
  %2374 = vmatprep.subr.bf16.mxu0 0
  %2375 = vmatpush2.bf16.msra.mxu0 0
  %2376 = vmatprep.mubr.bf16.mxu0 0
  %2377 = vmatmul.mubr.bf16.gmra.mxu0 %v2289
  %v2378 = vpop.f32.mrf.mxu0
  %v2379 = vadd.f32 0.0, %v2378
  %v2380 = vpop.f32.mrf.mxu0
  %v2381 = vadd.f32 0.0, %v2380
  %v2382 = vpop.f32.mrf.mxu0
  %v2383 = vpop.f32.mrf.mxu0
  %2384 = vdwg.mxu0
  %v2385 = vadd.f32 %v2278, %v2338
  %v2386 = vadd.f32 %v2279, %v2340
  %v2387 = vadd.f32 %v2280, %v2379
  %v2388 = vadd.f32 %v2281, %v2381
  %2389 = vrot.lane.b32.xlu0 %v1688, 1
  %v2390 = vpop.permute.xlu0 %2389
  %2391 = vrot.lane.b32.xlu0 %v1689, 1
  %v2392 = vpop.permute.xlu0 %2391
  %2393 = vrot.lane.b32.xlu0 %v1690, 1
  %v2394 = vpop.permute.xlu0 %2393
  %2395 = vrot.lane.b32.xlu0 %v1691, 1
  %v2396 = vpop.permute.xlu0 %2395
  %v2397 = vsel %vm224, %v2394, %v2396
  %v2398 = vsel %vm224, %v2392, %v2394
  %v2399 = vsel %vm224, %v2390, %v2392
  %v2400 = vsel %vm224, %v2396, %v2390
  %2401 = vrot.lane.b32.xlu0 %v1688, 127
  %v2402 = vpop.permute.xlu0 %2401
  %2403 = vrot.lane.b32.xlu0 %v1689, 127
  %v2404 = vpop.permute.xlu0 %2403
  %2405 = vrot.lane.b32.xlu0 %v1690, 127
  %v2406 = vpop.permute.xlu0 %2405
  %2407 = vrot.lane.b32.xlu0 %v1691, 127
  %v2408 = vpop.permute.xlu0 %2407
  %v2409 = vsel %vm237, %v2406, %v2408
  %v2410 = vsel %vm237, %v2404, %v2406
  %v2411 = vsel %vm237, %v2402, %v2404
  %v2412 = vsel %vm237, %v2408, %v2402
  %v2413 = vsel %vm165, %v2411, %v2400
  %v2414 = vsel %vm166, %v2410, %v2399
  %v2415 = vsel %vm167, %v2409, %v2398
  %v2416 = vsel %vm168, %v2412, %v2397
  %v2417 = vsel %vm177, %v2400, %v2411
  %v2418 = vsel %vm178, %v2399, %v2410
  %v2419 = vsel %vm179, %v2398, %v2409
  %v2420 = vsel %vm180, %v2397, %v2412
  %s2421 = scalar_lea.vmem %s4, 24
  %v2422 = vld [vmem:[%s2421] sm:$0xf]
  %v2423 = vpack.c.bf16 %v2413, %v2413
  %v2424 = vpack.c.bf16 %v2414, %v2414
  %v2425 = vpack.c.bf16 %v2415, %v2415
  %v2426 = vpack.c.bf16 %v2416, %v2416
  %v2428 = vsel %vm261, %v2422, 0
  %v2431 = vsel %vm265, %v2423, 0
  %v2434 = vsel %vm265, %v2424, 0
  %v2437 = vsel %vm265, %v2425, 0
  %v2440 = vsel %vm265, %v2426, 0
  %2442 = vmatprep.subr.bf16.mxu0 0
  %2443 = vmatpush1.bf16.msra.mxu0 0
  %2444 = vmatprep.subr.bf16.mxu0 0
  %2445 = vmatpush1.bf16.msra.mxu0 0
  %2446 = vmatprep.subr.bf16.mxu0 0
  %2447 = vmatpush1.bf16.msra.mxu0 0
  %2448 = vmatprep.subr.bf16.mxu0 0
  %2449 = vmatpush1.bf16.msra.mxu0 0
  %2450 = vmatprep.subr.bf16.mxu0 0
  %2451 = vmatpush1.bf16.msra.mxu0 0
  %2452 = vmatprep.subr.bf16.mxu0 0
  %2453 = vmatpush1.bf16.msra.mxu0 0
  %2454 = vmatprep.subr.bf16.mxu0 0
  %2455 = vmatpush1.bf16.msra.mxu0 0
  %2456 = vmatprep.subr.bf16.mxu0 %v2434
  %2457 = vmatpush1.bf16.msra.mxu0 %v2431
  %2458 = vmatprep.subr.bf16.mxu0 0
  %2459 = vmatpush2.bf16.msra.mxu0 0
  %2460 = vmatprep.subr.bf16.mxu0 0
  %2461 = vmatpush2.bf16.msra.mxu0 0
  %2462 = vmatprep.subr.bf16.mxu0 0
  %2463 = vmatpush2.bf16.msra.mxu0 0
  %2464 = vmatprep.subr.bf16.mxu0 0
  %2465 = vmatpush2.bf16.msra.mxu0 0
  %2466 = vmatprep.subr.bf16.mxu0 0
  %2467 = vmatpush2.bf16.msra.mxu0 0
  %2468 = vmatprep.subr.bf16.mxu0 0
  %2469 = vmatpush2.bf16.msra.mxu0 0
  %2470 = vmatprep.subr.bf16.mxu0 0
  %2471 = vmatpush2.bf16.msra.mxu0 0
  %2472 = vmatprep.subr.bf16.mxu0 0
  %2473 = vmatpush2.bf16.msra.mxu0 0
  %2474 = vmatprep.mubr.bf16.mxu0 0
  %2475 = vmatmul.mubr.bf16.gmra.mxu0 %v2428
  %v2476 = vpop.f32.mrf.mxu0
  %v2477 = vadd.f32 0.0, %v2476
  %v2478 = vpop.f32.mrf.mxu0
  %v2479 = vadd.f32 0.0, %v2478
  %v2480 = vpop.f32.mrf.mxu0
  %v2481 = vpop.f32.mrf.mxu0
  %2482 = vdwg.mxu0
  %2483 = vmatprep.subr.bf16.mxu0 0
  %2484 = vmatpush1.bf16.msra.mxu0 0
  %2485 = vmatprep.subr.bf16.mxu0 0
  %2486 = vmatpush1.bf16.msra.mxu0 0
  %2487 = vmatprep.subr.bf16.mxu0 0
  %2488 = vmatpush1.bf16.msra.mxu0 0
  %2489 = vmatprep.subr.bf16.mxu0 0
  %2490 = vmatpush1.bf16.msra.mxu0 0
  %2491 = vmatprep.subr.bf16.mxu0 0
  %2492 = vmatpush1.bf16.msra.mxu0 0
  %2493 = vmatprep.subr.bf16.mxu0 0
  %2494 = vmatpush1.bf16.msra.mxu0 0
  %2495 = vmatprep.subr.bf16.mxu0 0
  %2496 = vmatpush1.bf16.msra.mxu0 0
  %2497 = vmatprep.subr.bf16.mxu0 %v2440
  %2498 = vmatpush1.bf16.msra.mxu0 %v2437
  %2499 = vmatprep.subr.bf16.mxu0 0
  %2500 = vmatpush2.bf16.msra.mxu0 0
  %2501 = vmatprep.subr.bf16.mxu0 0
  %2502 = vmatpush2.bf16.msra.mxu0 0
  %2503 = vmatprep.subr.bf16.mxu0 0
  %2504 = vmatpush2.bf16.msra.mxu0 0
  %2505 = vmatprep.subr.bf16.mxu0 0
  %2506 = vmatpush2.bf16.msra.mxu0 0
  %2507 = vmatprep.subr.bf16.mxu0 0
  %2508 = vmatpush2.bf16.msra.mxu0 0
  %2509 = vmatprep.subr.bf16.mxu0 0
  %2510 = vmatpush2.bf16.msra.mxu0 0
  %2511 = vmatprep.subr.bf16.mxu0 0
  %2512 = vmatpush2.bf16.msra.mxu0 0
  %2513 = vmatprep.subr.bf16.mxu0 0
  %2514 = vmatpush2.bf16.msra.mxu0 0
  %2515 = vmatprep.mubr.bf16.mxu0 0
  %2516 = vmatmul.mubr.bf16.gmra.mxu0 %v2428
  %v2517 = vpop.f32.mrf.mxu0
  %v2518 = vadd.f32 0.0, %v2517
  %v2519 = vpop.f32.mrf.mxu0
  %v2520 = vadd.f32 0.0, %v2519
  %v2521 = vpop.f32.mrf.mxu0
  %v2522 = vpop.f32.mrf.mxu0
  %2523 = vdwg.mxu0
  %v2524 = vadd.f32 %v2385, %v2477
  %v2525 = vadd.f32 %v2386, %v2479
  %v2526 = vadd.f32 %v2387, %v2518
  %v2527 = vadd.f32 %v2388, %v2520
  %s2528 = scalar_lea.vmem %s4, 28
  %v2529 = vld [vmem:[%s2528] sm:$0xf]
  %v2530 = vpack.c.bf16 %v1688, %v1688
  %v2531 = vpack.c.bf16 %v1689, %v1689
  %v2532 = vpack.c.bf16 %v1690, %v1690
  %v2533 = vpack.c.bf16 %v1691, %v1691
  %v2535 = vsel %vm261, %v2529, 0
  %v2538 = vsel %vm265, %v2530, 0
  %v2541 = vsel %vm265, %v2531, 0
  %v2544 = vsel %vm265, %v2532, 0
  %v2547 = vsel %vm265, %v2533, 0
  %2549 = vmatprep.subr.bf16.mxu0 0
  %2550 = vmatpush1.bf16.msra.mxu0 0
  %2551 = vmatprep.subr.bf16.mxu0 0
  %2552 = vmatpush1.bf16.msra.mxu0 0
  %2553 = vmatprep.subr.bf16.mxu0 0
  %2554 = vmatpush1.bf16.msra.mxu0 0
  %2555 = vmatprep.subr.bf16.mxu0 0
  %2556 = vmatpush1.bf16.msra.mxu0 0
  %2557 = vmatprep.subr.bf16.mxu0 0
  %2558 = vmatpush1.bf16.msra.mxu0 0
  %2559 = vmatprep.subr.bf16.mxu0 0
  %2560 = vmatpush1.bf16.msra.mxu0 0
  %2561 = vmatprep.subr.bf16.mxu0 0
  %2562 = vmatpush1.bf16.msra.mxu0 0
  %2563 = vmatprep.subr.bf16.mxu0 %v2541
  %2564 = vmatpush1.bf16.msra.mxu0 %v2538
  %2565 = vmatprep.subr.bf16.mxu0 0
  %2566 = vmatpush2.bf16.msra.mxu0 0
  %2567 = vmatprep.subr.bf16.mxu0 0
  %2568 = vmatpush2.bf16.msra.mxu0 0
  %2569 = vmatprep.subr.bf16.mxu0 0
  %2570 = vmatpush2.bf16.msra.mxu0 0
  %2571 = vmatprep.subr.bf16.mxu0 0
  %2572 = vmatpush2.bf16.msra.mxu0 0
  %2573 = vmatprep.subr.bf16.mxu0 0
  %2574 = vmatpush2.bf16.msra.mxu0 0
  %2575 = vmatprep.subr.bf16.mxu0 0
  %2576 = vmatpush2.bf16.msra.mxu0 0
  %2577 = vmatprep.subr.bf16.mxu0 0
  %2578 = vmatpush2.bf16.msra.mxu0 0
  %2579 = vmatprep.subr.bf16.mxu0 0
  %2580 = vmatpush2.bf16.msra.mxu0 0
  %2581 = vmatprep.mubr.bf16.mxu0 0
  %2582 = vmatmul.mubr.bf16.gmra.mxu0 %v2535
  %v2583 = vpop.f32.mrf.mxu0
  %v2584 = vadd.f32 0.0, %v2583
  %v2585 = vpop.f32.mrf.mxu0
  %v2586 = vadd.f32 0.0, %v2585
  %v2587 = vpop.f32.mrf.mxu0
  %v2588 = vpop.f32.mrf.mxu0
  %2589 = vdwg.mxu0
  %2590 = vmatprep.subr.bf16.mxu0 0
  %2591 = vmatpush1.bf16.msra.mxu0 0
  %2592 = vmatprep.subr.bf16.mxu0 0
  %2593 = vmatpush1.bf16.msra.mxu0 0
  %2594 = vmatprep.subr.bf16.mxu0 0
  %2595 = vmatpush1.bf16.msra.mxu0 0
  %2596 = vmatprep.subr.bf16.mxu0 0
  %2597 = vmatpush1.bf16.msra.mxu0 0
  %2598 = vmatprep.subr.bf16.mxu0 0
  %2599 = vmatpush1.bf16.msra.mxu0 0
  %2600 = vmatprep.subr.bf16.mxu0 0
  %2601 = vmatpush1.bf16.msra.mxu0 0
  %2602 = vmatprep.subr.bf16.mxu0 0
  %2603 = vmatpush1.bf16.msra.mxu0 0
  %2604 = vmatprep.subr.bf16.mxu0 %v2547
  %2605 = vmatpush1.bf16.msra.mxu0 %v2544
  %2606 = vmatprep.subr.bf16.mxu0 0
  %2607 = vmatpush2.bf16.msra.mxu0 0
  %2608 = vmatprep.subr.bf16.mxu0 0
  %2609 = vmatpush2.bf16.msra.mxu0 0
  %2610 = vmatprep.subr.bf16.mxu0 0
  %2611 = vmatpush2.bf16.msra.mxu0 0
  %2612 = vmatprep.subr.bf16.mxu0 0
  %2613 = vmatpush2.bf16.msra.mxu0 0
  %2614 = vmatprep.subr.bf16.mxu0 0
  %2615 = vmatpush2.bf16.msra.mxu0 0
  %2616 = vmatprep.subr.bf16.mxu0 0
  %2617 = vmatpush2.bf16.msra.mxu0 0
  %2618 = vmatprep.subr.bf16.mxu0 0
  %2619 = vmatpush2.bf16.msra.mxu0 0
  %2620 = vmatprep.subr.bf16.mxu0 0
  %2621 = vmatpush2.bf16.msra.mxu0 0
  %2622 = vmatprep.mubr.bf16.mxu0 0
  %2623 = vmatmul.mubr.bf16.gmra.mxu0 %v2535
  %v2624 = vpop.f32.mrf.mxu0
  %v2625 = vadd.f32 0.0, %v2624
  %v2626 = vpop.f32.mrf.mxu0
  %v2627 = vadd.f32 0.0, %v2626
  %v2628 = vpop.f32.mrf.mxu0
  %v2629 = vpop.f32.mrf.mxu0
  %2630 = vdwg.mxu0
  %v2631 = vadd.f32 %v2524, %v2584
  %v2632 = vadd.f32 %v2525, %v2586
  %v2633 = vadd.f32 %v2526, %v2625
  %v2634 = vadd.f32 %v2527, %v2627
  %s2635 = scalar_lea.vmem %s4, 32
  %v2636 = vld [vmem:[%s2635] sm:$0xf]
  %v2637 = vpack.c.bf16 %v2417, %v2417
  %v2638 = vpack.c.bf16 %v2418, %v2418
  %v2639 = vpack.c.bf16 %v2419, %v2419
  %v2640 = vpack.c.bf16 %v2420, %v2420
  %v2642 = vsel %vm261, %v2636, 0
  %v2645 = vsel %vm265, %v2637, 0
  %v2648 = vsel %vm265, %v2638, 0
  %v2651 = vsel %vm265, %v2639, 0
  %v2654 = vsel %vm265, %v2640, 0
  %2656 = vmatprep.subr.bf16.mxu0 0
  %2657 = vmatpush1.bf16.msra.mxu0 0
  %2658 = vmatprep.subr.bf16.mxu0 0
  %2659 = vmatpush1.bf16.msra.mxu0 0
  %2660 = vmatprep.subr.bf16.mxu0 0
  %2661 = vmatpush1.bf16.msra.mxu0 0
  %2662 = vmatprep.subr.bf16.mxu0 0
  %2663 = vmatpush1.bf16.msra.mxu0 0
  %2664 = vmatprep.subr.bf16.mxu0 0
  %2665 = vmatpush1.bf16.msra.mxu0 0
  %2666 = vmatprep.subr.bf16.mxu0 0
  %2667 = vmatpush1.bf16.msra.mxu0 0
  %2668 = vmatprep.subr.bf16.mxu0 0
  %2669 = vmatpush1.bf16.msra.mxu0 0
  %2670 = vmatprep.subr.bf16.mxu0 %v2648
  %2671 = vmatpush1.bf16.msra.mxu0 %v2645
  %2672 = vmatprep.subr.bf16.mxu0 0
  %2673 = vmatpush2.bf16.msra.mxu0 0
  %2674 = vmatprep.subr.bf16.mxu0 0
  %2675 = vmatpush2.bf16.msra.mxu0 0
  %2676 = vmatprep.subr.bf16.mxu0 0
  %2677 = vmatpush2.bf16.msra.mxu0 0
  %2678 = vmatprep.subr.bf16.mxu0 0
  %2679 = vmatpush2.bf16.msra.mxu0 0
  %2680 = vmatprep.subr.bf16.mxu0 0
  %2681 = vmatpush2.bf16.msra.mxu0 0
  %2682 = vmatprep.subr.bf16.mxu0 0
  %2683 = vmatpush2.bf16.msra.mxu0 0
  %2684 = vmatprep.subr.bf16.mxu0 0
  %2685 = vmatpush2.bf16.msra.mxu0 0
  %2686 = vmatprep.subr.bf16.mxu0 0
  %2687 = vmatpush2.bf16.msra.mxu0 0
  %2688 = vmatprep.mubr.bf16.mxu0 0
  %2689 = vmatmul.mubr.bf16.gmra.mxu0 %v2642
  %v2690 = vpop.f32.mrf.mxu0
  %v2691 = vadd.f32 0.0, %v2690
  %v2692 = vpop.f32.mrf.mxu0
  %v2693 = vadd.f32 0.0, %v2692
  %v2694 = vpop.f32.mrf.mxu0
  %v2695 = vpop.f32.mrf.mxu0
  %2696 = vdwg.mxu0
  %2697 = vmatprep.subr.bf16.mxu0 0
  %2698 = vmatpush1.bf16.msra.mxu0 0
  %2699 = vmatprep.subr.bf16.mxu0 0
  %2700 = vmatpush1.bf16.msra.mxu0 0
  %2701 = vmatprep.subr.bf16.mxu0 0
  %2702 = vmatpush1.bf16.msra.mxu0 0
  %2703 = vmatprep.subr.bf16.mxu0 0
  %2704 = vmatpush1.bf16.msra.mxu0 0
  %2705 = vmatprep.subr.bf16.mxu0 0
  %2706 = vmatpush1.bf16.msra.mxu0 0
  %2707 = vmatprep.subr.bf16.mxu0 0
  %2708 = vmatpush1.bf16.msra.mxu0 0
  %2709 = vmatprep.subr.bf16.mxu0 0
  %2710 = vmatpush1.bf16.msra.mxu0 0
  %2711 = vmatprep.subr.bf16.mxu0 %v2654
  %2712 = vmatpush1.bf16.msra.mxu0 %v2651
  %2713 = vmatprep.subr.bf16.mxu0 0
  %2714 = vmatpush2.bf16.msra.mxu0 0
  %2715 = vmatprep.subr.bf16.mxu0 0
  %2716 = vmatpush2.bf16.msra.mxu0 0
  %2717 = vmatprep.subr.bf16.mxu0 0
  %2718 = vmatpush2.bf16.msra.mxu0 0
  %2719 = vmatprep.subr.bf16.mxu0 0
  %2720 = vmatpush2.bf16.msra.mxu0 0
  %2721 = vmatprep.subr.bf16.mxu0 0
  %2722 = vmatpush2.bf16.msra.mxu0 0
  %2723 = vmatprep.subr.bf16.mxu0 0
  %2724 = vmatpush2.bf16.msra.mxu0 0
  %2725 = vmatprep.subr.bf16.mxu0 0
  %2726 = vmatpush2.bf16.msra.mxu0 0
  %2727 = vmatprep.subr.bf16.mxu0 0
  %2728 = vmatpush2.bf16.msra.mxu0 0
  %2729 = vmatprep.mubr.bf16.mxu0 0
  %2730 = vmatmul.mubr.bf16.gmra.mxu0 %v2642
  %v2731 = vpop.f32.mrf.mxu0
  %v2732 = vadd.f32 0.0, %v2731
  %v2733 = vpop.f32.mrf.mxu0
  %v2734 = vadd.f32 0.0, %v2733
  %v2735 = vpop.f32.mrf.mxu0
  %v2736 = vpop.f32.mrf.mxu0
  %2737 = vdwg.mxu0
  %v2738 = vadd.f32 %v2631, %v2691
  %v2739 = vadd.f32 %v2632, %v2693
  %v2740 = vadd.f32 %v2633, %v2732
  %v2741 = vadd.f32 %v2634, %v2734
  %2742 = vset.pattern.permute.xlu0 2
  %2743 = vperm.xlu0 %2742, %v181
  %v2744 = vpop.permute.xlu0 %2743
  %v2746 = vadd.f32 %v2738, %v2744
  %v2747 = vadd.f32 %v2739, %v2744
  %v2748 = vadd.f32 %v2740, %v2744
  %v2749 = vadd.f32 %v2741, %v2744
  %v2750 = vld [vmem:[%s5] sm:$0xff]
  %v2751 = vmul.f32 %v2746, %v2746
  %v2752 = vmul.f32 %v2747, %v2747
  %v2753 = vmul.f32 %v2748, %v2748
  %v2754 = vmul.f32 %v2749, %v2749
  %2755 = vset.pattern.permute.xlu0 3
  %2756 = vperm.xlu0 %2755, %v181
  %v2757 = vpop.permute.xlu0 %2756
  %v2760 = vsel %vm261, %v2750, 0
  %2762 = vmatprep.subr.mxu0 0.0
  %2763 = vmatpush1.msra.mxu0 0.0
  %2764 = vmatprep.subr.mxu0 0.0
  %2765 = vmatpush1.msra.mxu0 0.0
  %2766 = vmatprep.subr.mxu0 0.0
  %2767 = vmatpush1.msra.mxu0 0.0
  %2768 = vmatprep.subr.mxu0 0.0
  %2769 = vmatpush1.msra.mxu0 0.0
  %2770 = vmatprep.subr.mxu0 0.0
  %2771 = vmatpush1.msra.mxu0 0.0
  %2772 = vmatprep.subr.mxu0 0.0
  %2773 = vmatpush1.msra.mxu0 0.0
  %2774 = vmatprep.subr.mxu0 0.0
  %2775 = vmatpush1.msra.mxu0 0.0
  %2776 = vmatprep.subr.mxu0 0.0
  %2777 = vmatpush1.msra.mxu0 0.0
  %2778 = vmatprep.subr.mxu0 0.0
  %2779 = vmatpush1.msra.mxu0 0.0
  %2780 = vmatprep.subr.mxu0 0.0
  %2781 = vmatpush1.msra.mxu0 0.0
  %2782 = vmatprep.subr.mxu0 0.0
  %2783 = vmatpush1.msra.mxu0 0.0
  %2784 = vmatprep.subr.mxu0 0.0
  %2785 = vmatpush1.msra.mxu0 0.0
  %2786 = vmatprep.subr.mxu0 0.0
  %2787 = vmatpush1.msra.mxu0 0.0
  %2788 = vmatprep.subr.mxu0 0.0
  %2789 = vmatpush1.msra.mxu0 0.0
  %2790 = vmatprep.subr.mxu0 0.0
  %2791 = vmatpush1.msra.mxu0 0.0
  %2792 = vmatprep.subr.mxu0 %v2752
  %2793 = vmatpush1.msra.mxu0 %v2751
  %2794 = vmatprep.subr.mxu0 0.0
  %2795 = vmatpush2.msra.mxu0 0.0
  %2796 = vmatprep.subr.mxu0 0.0
  %2797 = vmatpush2.msra.mxu0 0.0
  %2798 = vmatprep.subr.mxu0 0.0
  %2799 = vmatpush2.msra.mxu0 0.0
  %2800 = vmatprep.subr.mxu0 0.0
  %2801 = vmatpush2.msra.mxu0 0.0
  %2802 = vmatprep.subr.mxu0 0.0
  %2803 = vmatpush2.msra.mxu0 0.0
  %2804 = vmatprep.subr.mxu0 0.0
  %2805 = vmatpush2.msra.mxu0 0.0
  %2806 = vmatprep.subr.mxu0 0.0
  %2807 = vmatpush2.msra.mxu0 0.0
  %2808 = vmatprep.subr.mxu0 0.0
  %2809 = vmatpush2.msra.mxu0 0.0
  %2810 = vmatprep.subr.mxu0 0.0
  %2811 = vmatpush2.msra.mxu0 0.0
  %2812 = vmatprep.subr.mxu0 0.0
  %2813 = vmatpush2.msra.mxu0 0.0
  %2814 = vmatprep.subr.mxu0 0.0
  %2815 = vmatpush2.msra.mxu0 0.0
  %2816 = vmatprep.subr.mxu0 0.0
  %2817 = vmatpush2.msra.mxu0 0.0
  %2818 = vmatprep.subr.mxu0 0.0
  %2819 = vmatpush2.msra.mxu0 0.0
  %2820 = vmatprep.subr.mxu0 0.0
  %2821 = vmatpush2.msra.mxu0 0.0
  %2822 = vmatprep.subr.mxu0 0.0
  %2823 = vmatpush2.msra.mxu0 0.0
  %2824 = vmatprep.subr.mxu0 0.0
  %2825 = vmatpush2.msra.mxu0 0.0
  %2826 = vmatprep.mubr.f32.mxu0 0.0
  %2827 = vmatmul.mubr.f32.gmra.mxu0 %v2760
  %v2828 = vpop.f32.mrf.mxu0
  %v2829 = vadd.f32 %v2757, %v2828
  %v2830 = vpop.f32.mrf.mxu0
  %v2831 = vadd.f32 %v2757, %v2830
  %2832 = vdwg.mxu0
  %2833 = vmatprep.subr.mxu0 0.0
  %2834 = vmatpush1.msra.mxu0 0.0
  %2835 = vmatprep.subr.mxu0 0.0
  %2836 = vmatpush1.msra.mxu0 0.0
  %2837 = vmatprep.subr.mxu0 0.0
  %2838 = vmatpush1.msra.mxu0 0.0
  %2839 = vmatprep.subr.mxu0 0.0
  %2840 = vmatpush1.msra.mxu0 0.0
  %2841 = vmatprep.subr.mxu0 0.0
  %2842 = vmatpush1.msra.mxu0 0.0
  %2843 = vmatprep.subr.mxu0 0.0
  %2844 = vmatpush1.msra.mxu0 0.0
  %2845 = vmatprep.subr.mxu0 0.0
  %2846 = vmatpush1.msra.mxu0 0.0
  %2847 = vmatprep.subr.mxu0 0.0
  %2848 = vmatpush1.msra.mxu0 0.0
  %2849 = vmatprep.subr.mxu0 0.0
  %2850 = vmatpush1.msra.mxu0 0.0
  %2851 = vmatprep.subr.mxu0 0.0
  %2852 = vmatpush1.msra.mxu0 0.0
  %2853 = vmatprep.subr.mxu0 0.0
  %2854 = vmatpush1.msra.mxu0 0.0
  %2855 = vmatprep.subr.mxu0 0.0
  %2856 = vmatpush1.msra.mxu0 0.0
  %2857 = vmatprep.subr.mxu0 0.0
  %2858 = vmatpush1.msra.mxu0 0.0
  %2859 = vmatprep.subr.mxu0 0.0
  %2860 = vmatpush1.msra.mxu0 0.0
  %2861 = vmatprep.subr.mxu0 0.0
  %2862 = vmatpush1.msra.mxu0 0.0
  %2863 = vmatprep.subr.mxu0 %v2754
  %2864 = vmatpush1.msra.mxu0 %v2753
  %2865 = vmatprep.subr.mxu0 0.0
  %2866 = vmatpush2.msra.mxu0 0.0
  %2867 = vmatprep.subr.mxu0 0.0
  %2868 = vmatpush2.msra.mxu0 0.0
  %2869 = vmatprep.subr.mxu0 0.0
  %2870 = vmatpush2.msra.mxu0 0.0
  %2871 = vmatprep.subr.mxu0 0.0
  %2872 = vmatpush2.msra.mxu0 0.0
  %2873 = vmatprep.subr.mxu0 0.0
  %2874 = vmatpush2.msra.mxu0 0.0
  %2875 = vmatprep.subr.mxu0 0.0
  %2876 = vmatpush2.msra.mxu0 0.0
  %2877 = vmatprep.subr.mxu0 0.0
  %2878 = vmatpush2.msra.mxu0 0.0
  %2879 = vmatprep.subr.mxu0 0.0
  %2880 = vmatpush2.msra.mxu0 0.0
  %2881 = vmatprep.subr.mxu0 0.0
  %2882 = vmatpush2.msra.mxu0 0.0
  %2883 = vmatprep.subr.mxu0 0.0
  %2884 = vmatpush2.msra.mxu0 0.0
  %2885 = vmatprep.subr.mxu0 0.0
  %2886 = vmatpush2.msra.mxu0 0.0
  %2887 = vmatprep.subr.mxu0 0.0
  %2888 = vmatpush2.msra.mxu0 0.0
  %2889 = vmatprep.subr.mxu0 0.0
  %2890 = vmatpush2.msra.mxu0 0.0
  %2891 = vmatprep.subr.mxu0 0.0
  %2892 = vmatpush2.msra.mxu0 0.0
  %2893 = vmatprep.subr.mxu0 0.0
  %2894 = vmatpush2.msra.mxu0 0.0
  %2895 = vmatprep.subr.mxu0 0.0
  %2896 = vmatpush2.msra.mxu0 0.0
  %2897 = vmatprep.mubr.f32.mxu0 0.0
  %2898 = vmatmul.mubr.f32.gmra.mxu0 %v2760
  %v2899 = vpop.f32.mrf.mxu0
  %v2900 = vadd.f32 %v2757, %v2899
  %v2901 = vpop.f32.mrf.mxu0
  %v2902 = vadd.f32 %v2757, %v2901
  %2903 = vdwg.mxu0
  %v2904 = vrsqrt.pop %v2829
  %v2905 = vmul.f32 %v2829, %v2904
  %vm2906 = vcmp.eq.f32.partialorder %v2829, inf
  %v2907 = vsel %vm2906, %v2829, %v2905
  %vm2908 = vcmp.eq.f32.partialorder %v2829, 0.0
  %v2909 = vand.u32 %v2829, 2147483648
  %v2910 = vsel %vm2908, %v2909, %v2907
  %v2911 = vrsqrt.pop %v2831
  %v2912 = vmul.f32 %v2831, %v2911
  %vm2913 = vcmp.eq.f32.partialorder %v2831, inf
  %v2914 = vsel %vm2913, %v2831, %v2912
  %vm2915 = vcmp.eq.f32.partialorder %v2831, 0.0
  %v2916 = vand.u32 %v2831, 2147483648
  %v2917 = vsel %vm2915, %v2916, %v2914
  %v2918 = vrsqrt.pop %v2900
  %v2919 = vmul.f32 %v2900, %v2918
  %vm2920 = vcmp.eq.f32.partialorder %v2900, inf
  %v2921 = vsel %vm2920, %v2900, %v2919
  %vm2922 = vcmp.eq.f32.partialorder %v2900, 0.0
  %v2923 = vand.u32 %v2900, 2147483648
  %v2924 = vsel %vm2922, %v2923, %v2921
  %v2925 = vrsqrt.pop %v2902
  %v2926 = vmul.f32 %v2902, %v2925
  %vm2927 = vcmp.eq.f32.partialorder %v2902, inf
  %v2928 = vsel %vm2927, %v2902, %v2926
  %vm2929 = vcmp.eq.f32.partialorder %v2902, 0.0
  %v2930 = vand.u32 %v2902, 2147483648
  %v2931 = vsel %vm2929, %v2930, %v2928
  %v2932 = vmul.f32 %v2746, %v2910
  %v2933 = vmul.f32 %v2747, %v2917
  %v2934 = vmul.f32 %v2748, %v2924
  %v2935 = vmul.f32 %v2749, %v2931
  %v2936 = vadd.f32 %v27, %v2932
  %v2937 = vadd.f32 %v28, %v2933
  %v2938 = vadd.f32 %v30, %v2934
  %v2939 = vadd.f32 %v31, %v2935
  %2940 = vst [vmem:[%s7] sm:$0xff] %v2936
  %2941 = vst [vmem:[%s7 + $0x8] sm:$0xff] %v2937
  %s2942 = scalar_lea.vmem %s7, 16
  %2943 = vst [vmem:[%s2942] sm:$0xff] %v2938
  %2944 = vst [vmem:[%s2942 + $0x8] sm:$0xff] %v2939
  // Predicated region
  $region30: #{decoding_res_block.1} parent=0 // pred_check
    _
  $region31: #{decoding_res_block.1} parent=0 // pred_check_branch
    %2946 = sbr.rel (0) target = $region33
  $region32: #{decoding_res_block.1} parent=0 // pred_region
    _
  $region33: #{decoding_res_block.1} parent=0 // pred_fallthru
    _
  // Predicated region
  $region34: #{decoding_res_block.1} parent=0 // pred_check
    _
  $region35: #{decoding_res_block.1} parent=0 // pred_check_branch
    %2948 = sbr.rel (0) target = $region37
  $region36: #{decoding_res_block.1} parent=0 // pred_region
    _
  $region37: #{decoding_res_block.1} parent=0 // pred_fallthru
    _

</llo_original>
